<compile_context>
chip_gen: v7x
topology: tpu7x:2x2x1
jax: 0.10.0
libtpu: 0.0.40
codegen_flags: <defaults>
</compile_context>

<pallas_src>
import functools

import jax
import jax.numpy as jnp
import numpy as np
from jax.experimental import pallas as pl
from jax.experimental.pallas import tpu as pltpu  # noqa: F401  (no scratch/DMA needed)

# ---------------- model config (small, consistent with the module) ----------
IMG, PATCH, CIN = 16, 4, 4
EMBED, HEADS, DEPTH = 32, 4, 2
MLP_RATIO = 4.0
MLP_HIDDEN = int(EMBED * MLP_RATIO)   # 128
NUM_CLASSES = 10
HEAD_DIM = EMBED // HEADS             # 8
NP = (IMG // PATCH) ** 2              # 16 patches
SEQ = NP + 1                          # +1 cls token -> 17
SEQ_PAD = 24                          # padded to a sublane multiple (8)
EPS = 1e-6                            # LayerNorm eps
PATCH_K = CIN * PATCH * PATCH         # 64
LANE = 128                            # lane-dense padding for head / small params

assert MLP_HIDDEN <= LANE and 3 * EMBED <= LANE  # smalls-packing assumption


def _layernorm(x, w, b, eps):
    mu = jnp.mean(x, axis=-1, keepdims=True)
    var = jnp.mean((x - mu) ** 2, axis=-1, keepdims=True)
    return (x - mu) * jax.lax.rsqrt(var + eps) * w + b


# --------------------------- fused ViT kernel --------------------------------
def vit_fused_kernel(
    patches_ref, patch_w_ref, tok_add_ref, wqkv_ref, wproj_ref,
    w1_ref, w2_ref, head_w_ref, smalls_ref,
    o_ref,
    *, batch, depth, num_heads, head_dim, seq, seq_pad, eps,
):
    f32, bf16 = jnp.float32, jnp.bfloat16
    C = num_heads * head_dim
    BS = batch * seq_pad
    scale = head_dim ** -0.5

    # ---- patch embedding + token assembly: one matmul + one add -------------
    # patches were zero-padded in the wrapper (cls slot row 0 and pad rows are
    # zero), tok_add carries cls_token+pos[0] and pos[1:]+conv_bias.
    emb = jnp.dot(patches_ref[...].reshape(BS, PATCH_K), patch_w_ref[...],
                  preferred_element_type=f32)                       # (BS, C)
    x = emb + jnp.concatenate([tok_add_ref[...]] * batch, axis=0)   # (BS, C) f32

    # ---- attention mask (hoisted, built once): a query row may only attend to
    # real (non-pad) keys of its own image ------------------------------------
    ri = jax.lax.broadcasted_iota(jnp.int32, (BS, BS), 0)
    ci = jax.lax.broadcasted_iota(jnp.int32, (BS, BS), 1)
    valid = None
    for b in range(batch):
        rows_b = (ri >= b * seq_pad) & (ri < (b + 1) * seq_pad)
        keys_b = (ci >= b * seq_pad) & (ci < b * seq_pad + seq)
        vb = rows_b & keys_b
        valid = vb if valid is None else (valid | vb)
    mask_add = jnp.where(valid, 0.0, -1e30).astype(f32)             # (BS, BS)

    for d in range(depth):                                          # DEPTH=2, static
        smd = smalls_ref[d]                                         # (8, 128) f32
        ln1w, ln1b = smd[0:1, :C], smd[1:2, :C]
        bqkv, bproj = smd[2:3, :3 * C], smd[3:4, :C]
        ln2w, ln2b = smd[4:5, :C], smd[5:6, :C]
        b1, b2 = smd[6:7, :MLP_HIDDEN], smd[7:8, :C]

        # ---- pre-LN multi-head self-attention ----
        xn = _layernorm(x, ln1w, ln1b, eps)
        qkv = jnp.dot(xn.astype(bf16), wqkv_ref[d],
                      preferred_element_type=f32) + bqkv            # (BS, 3C) f32
        qkv = qkv.astype(bf16)
        # head split: aligned full-height lane slices of the single fused QKV
        # product, stacked so heads become the leading batch dim.
        q = jnp.stack([qkv[:, 0 * C + h * head_dim: 0 * C + (h + 1) * head_dim]
                       for h in range(num_heads)])                  # (H, BS, D)
        k = jnp.stack([qkv[:, 1 * C + h * head_dim: 1 * C + (h + 1) * head_dim]
                       for h in range(num_heads)])
        v = jnp.stack([qkv[:, 2 * C + h * head_dim: 2 * C + (h + 1) * head_dim]
                       for h in range(num_heads)])
        # one batched score matmul over all heads & both images ('bqd,bkd->bqk')
        s = jax.lax.dot_general(q, k, (((2,), (2,)), ((0,), (0,))),
                                preferred_element_type=f32) * scale  # (H, BS, BS)
        s = s + mask_add
        s = s - jnp.max(s, axis=-1, keepdims=True)
        p = jnp.exp(s)
        p = p * pl.reciprocal(jnp.sum(p, axis=-1, keepdims=True), approx=True)
        # one batched P @ V ('bqk,bkd->bqd')
        o = jax.lax.dot_general(p.astype(bf16), v, (((2,), (1,)), ((0,), (0,))),
                                preferred_element_type=f32)          # (H, BS, D)
        # per-head partial output projection summed over heads == proj(concat)
        attn = jax.lax.dot_general(o.astype(bf16), wproj_ref[d],
                                   (((2,), (1,)), ((0,), (0,))),
                                   preferred_element_type=f32)       # (H, BS, C)
        proj = attn[0]
        for h in range(1, num_heads):
            proj = proj + attn[h]
        x = x + proj + bproj

        # ---- pre-LN MLP (exact erf GELU, matching torch.nn.GELU) ----
        xn2 = _layernorm(x, ln2w, ln2b, eps)
        h1 = jnp.dot(xn2.astype(bf16), w1_ref[d],
                     preferred_element_type=f32) + b1                # (BS, HID)
        h1 = 0.5 * h1 * (1.0 + jax.lax.erf(h1 * 0.7071067811865476))
        x = x + jnp.dot(h1.astype(bf16), w2_ref[d],
                        preferred_element_type=f32) + b2

    # ---- final LayerNorm on the cls rows only + lane-dense head -------------
    cls = jnp.concatenate([x[b * seq_pad: b * seq_pad + 1, :]
                           for b in range(batch)], axis=0)           # (B, C)
    smg = smalls_ref[depth]                                          # globals slab
    cls_n = _layernorm(cls, smg[0:1, :C], smg[1:2, :C], eps)
    logits = jnp.dot(cls_n.astype(bf16), head_w_ref[...],
                     preferred_element_type=f32) + smg[2:3, :]       # (B, 128)
    o_ref[...] = logits.astype(o_ref.dtype)


# --------------------------- pallas_call wrapper ------------------------------
def vit_forward(x, params):
    B, Cin, H, W = x.shape
    gh, gw = H // PATCH, W // PATCH

    # Patch extraction (Conv2d with kernel=stride=patch == patchify + matmul);
    # feature flatten order (c, py, px) matches the conv-weight reshape order.
    patches = (x.reshape(B, Cin, gh, PATCH, gw, PATCH)
                 .transpose(0, 2, 4, 1, 3, 5)
                 .reshape(B, NP, PATCH_K))
    # Zero-pad the sequence so the patch matmul covers the whole padded
    # sequence in one shot: row 0 is the cls slot, rows SEQ..SEQ_PAD-1 are pad.
    patches_pad = jnp.zeros((B, SEQ_PAD, PATCH_K), jnp.float32)
    patches_pad = patches_pad.at[:, 1:SEQ, :].set(patches).astype(jnp.bfloat16)

    kern = functools.partial(
        vit_fused_kernel, batch=B, depth=DEPTH, num_heads=HEADS,
        head_dim=HEAD_DIM, seq=SEQ, seq_pad=SEQ_PAD, eps=EPS)

    # Single gridless pallas_call: everything resident in VMEM (<<1 MiB), so
    # whole-array blocks, no batch grid, no per-step pipelining.
    # TODO(synk): only add a leading "parallel" batch grid axis (v7x megacore)
    # once B is large enough (~>=8) to amortize the duplicated weight DMAs.
    logits_pad = pl.pallas_call(
        kern,
        out_shape=jax.ShapeDtypeStruct((B, LANE), jnp.float32),
    )(
        patches_pad,
        params["patch_w"], params["tok_add"],
        params["wqkv"], params["wproj_h"], params["w1"], params["w2"],
        params["head_w"], params["smalls"],
    )
    return logits_pad[:, :NUM_CLASSES]


# ------------------------- parameter initialization --------------------------
def trunc_normal(key, shape, std):
    return (std * jax.random.truncated_normal(key, -2.0, 2.0, shape)).astype(jnp.float32)


def init_params(key):
    """Returns kernel-ready parameters matching the PyTorch module's init."""
    k_conv, k_cls, k_pos, k_blocks, k_head = jax.random.split(key, 5)
    p = {}

    # PatchEmbed Conv2d(CIN, EMBED, k=s=PATCH): kaiming_normal fan_out, zero bias
    fan_out = EMBED * PATCH * PATCH
    conv_w = jax.random.normal(k_conv, (EMBED, CIN, PATCH, PATCH), jnp.float32) * float(
        np.sqrt(2.0 / fan_out))
    p["patch_w"] = conv_w.reshape(EMBED, PATCH_K).T.astype(jnp.bfloat16)  # (K, C)
    patch_b = jnp.zeros((EMBED,), jnp.float32)

    cls_token = trunc_normal(k_cls, (EMBED,), 0.02)
    pos_embed = trunc_normal(k_pos, (SEQ, EMBED), 0.02)

    # additive token slab: row0 = cls+pos[0]; rows 1..16 = pos[i]+conv_bias; pad=0
    tok_add = jnp.zeros((SEQ_PAD, EMBED), jnp.float32)
    tok_add = tok_add.at[0].set(cls_token + pos_embed[0])
    tok_add = tok_add.at[1:SEQ].set(pos_embed[1:] + patch_b[None, :])
    p["tok_add"] = tok_add

    # packed small params: per block rows = [ln1_w, ln1_b, bqkv, bproj, ln2_w,
    # ln2_b, b1, b2]; last slab = globals [norm_w, norm_b, head_b].
    smalls = np.zeros((DEPTH + 1, 8, LANE), np.float32)
    wqkv, wproj, w1, w2 = [], [], [], []
    for d, kb in enumerate(jax.random.split(k_blocks, DEPTH)):
        kq, kp, km1, km2 = jax.random.split(kb, 4)
        # torch Linear weights are (out, in); store transposed for y = x @ W^T
        wqkv.append(trunc_normal(kq, (3 * EMBED, EMBED), 0.01).T)            # (C, 3C)
        # proj weight in per-head-row layout (H, D, C): proj(concat) == sum_h o_h @ W_h
        wproj.append(trunc_normal(kp, (EMBED, EMBED), 0.01).T
                     .reshape(HEADS, HEAD_DIM, EMBED))
        w1.append(trunc_normal(km1, (MLP_HIDDEN, EMBED), 0.01).T)            # (C, HID)
        w2.append(trunc_normal(km2, (EMBED, MLP_HIDDEN), 0.01).T)            # (HID, C)
        smalls[d, 0, :EMBED] = 1.0   # ln1_w ; ln1_b / biases stay zero (torch init)
        smalls[d, 4, :EMBED] = 1.0   # ln2_w
    smalls[DEPTH, 0, :EMBED] = 1.0   # final norm_w ; norm_b / head_b stay zero

    p["wqkv"] = jnp.stack(wqkv).astype(jnp.bfloat16)
    p["wproj_h"] = jnp.stack(wproj).astype(jnp.bfloat16)
    p["w1"] = jnp.stack(w1).astype(jnp.bfloat16)
    p["w2"] = jnp.stack(w2).astype(jnp.bfloat16)
    p["smalls"] = jnp.asarray(smalls)

    head_w = trunc_normal(k_head, (NUM_CLASSES, EMBED), 0.01).T              # (C, 10)
    p["head_w"] = (jnp.zeros((EMBED, LANE), jnp.float32)
                   .at[:, :NUM_CLASSES].set(head_w).astype(jnp.bfloat16))    # lane-dense
    return p


if __name__ == "__main__":
    key = jax.random.PRNGKey(0)
    pkey, xkey = jax.random.split(key)
    params = init_params(pkey)
    x = jax.random.normal(xkey, (2, CIN, IMG, IMG), jnp.float32)

    logits = jax.jit(vit_forward)(x, params)
    jax.block_until_ready(logits)
    assert logits.shape == (2, NUM_CLASSES), logits.shape
    assert bool(jnp.all(jnp.isfinite(logits)))
    print("KERNEL_OK")
</pallas_src>

<mosaic_0001>
module attributes {stable_mosaic.version = 11 : i64} {
  func.func @vit_fused_kernel(%arg0: memref<2x24x64xbf16, #tpu.memory_space<vmem>>, %arg1: memref<64x32xbf16, #tpu.memory_space<vmem>>, %arg2: memref<24x32xf32, #tpu.memory_space<vmem>>, %arg3: memref<2x32x96xbf16, #tpu.memory_space<vmem>>, %arg4: memref<2x4x8x32xbf16, #tpu.memory_space<vmem>>, %arg5: memref<2x32x128xbf16, #tpu.memory_space<vmem>>, %arg6: memref<2x128x32xbf16, #tpu.memory_space<vmem>>, %arg7: memref<32x128xbf16, #tpu.memory_space<vmem>>, %arg8: memref<3x8x128xf32, #tpu.memory_space<vmem>>, %arg9: memref<2x128xf32, #tpu.memory_space<vmem>>) attributes {dimension_semantics = [], scalar_prefetch = 0 : i64, scratch_operands = 0 : i64, tpu.core_type = #tpu.core_type<tc>} {
    %c0 = arith.constant 0 : index
    %c0_0 = arith.constant 0 : index
    %c0_1 = arith.constant 0 : index
    %0 = vector.load %arg0[%c0, %c0_0, %c0_1] : memref<2x24x64xbf16, #tpu.memory_space<vmem>>, vector<2x24x64xbf16>
    %1 = vector.shape_cast %0 : vector<2x24x64xbf16> to vector<48x64xbf16>
    %c0_2 = arith.constant 0 : index
    %c0_3 = arith.constant 0 : index
    %2 = vector.load %arg1[%c0_2, %c0_3] : memref<64x32xbf16, #tpu.memory_space<vmem>>, vector<64x32xbf16>
    %cst = arith.constant dense<0.000000e+00> : vector<48x32xf32>
    %3 = tpu.matmul %1, %2, %cst {dimension_numbers = #tpu.dot_dimension_numbers<[1], [0], [0], [1], [0, 0, 1, 1], [], []>} : vector<48x64xbf16>, vector<64x32xbf16>, vector<48x32xf32> -> vector<48x32xf32>
    %c0_4 = arith.constant 0 : index
    %c0_5 = arith.constant 0 : index
    %4 = vector.load %arg2[%c0_4, %c0_5] : memref<24x32xf32, #tpu.memory_space<vmem>>, vector<24x32xf32>
    %5 = tpu.concatenate %4, %4 in 0 : vector<24x32xf32>, vector<24x32xf32> -> vector<48x32xf32>
    %6 = arith.addf %3, %5 : vector<48x32xf32>
    %7 = tpu.iota {dimensions = array<i32: 0>} : vector<48x48xi32>
    %8 = tpu.iota {dimensions = array<i32: 1>} : vector<48x48xi32>
    %c0_i32 = arith.constant 0 : i32
    %9 = vector.broadcast %c0_i32 : i32 to vector<48x48xi32>
    %10 = arith.cmpi sge, %7, %9 : vector<48x48xi32>
    %c24_i32 = arith.constant 24 : i32
    %11 = vector.broadcast %c24_i32 : i32 to vector<48x48xi32>
    %12 = arith.cmpi slt, %7, %11 : vector<48x48xi32>
    %13 = arith.andi %10, %12 : vector<48x48xi1>
    %c0_i32_6 = arith.constant 0 : i32
    %14 = vector.broadcast %c0_i32_6 : i32 to vector<48x48xi32>
    %15 = arith.cmpi sge, %8, %14 : vector<48x48xi32>
    %c17_i32 = arith.constant 17 : i32
    %16 = vector.broadcast %c17_i32 : i32 to vector<48x48xi32>
    %17 = arith.cmpi slt, %8, %16 : vector<48x48xi32>
    %18 = arith.andi %15, %17 : vector<48x48xi1>
    %19 = arith.andi %13, %18 : vector<48x48xi1>
    %c24_i32_7 = arith.constant 24 : i32
    %20 = vector.broadcast %c24_i32_7 : i32 to vector<48x48xi32>
    %21 = arith.cmpi sge, %7, %20 : vector<48x48xi32>
    %c48_i32 = arith.constant 48 : i32
    %22 = vector.broadcast %c48_i32 : i32 to vector<48x48xi32>
    %23 = arith.cmpi slt, %7, %22 : vector<48x48xi32>
    %24 = arith.andi %21, %23 : vector<48x48xi1>
    %c24_i32_8 = arith.constant 24 : i32
    %25 = vector.broadcast %c24_i32_8 : i32 to vector<48x48xi32>
    %26 = arith.cmpi sge, %8, %25 : vector<48x48xi32>
    %c41_i32 = arith.constant 41 : i32
    %27 = vector.broadcast %c41_i32 : i32 to vector<48x48xi32>
    %28 = arith.cmpi slt, %8, %27 : vector<48x48xi32>
    %29 = arith.andi %26, %28 : vector<48x48xi1>
    %30 = arith.andi %24, %29 : vector<48x48xi1>
    %31 = arith.ori %19, %30 : vector<48x48xi1>
    %cst_9 = arith.constant 0.000000e+00 : f32
    %cst_10 = arith.constant -1.000000e+30 : f32
    %32 = vector.broadcast %cst_9 : f32 to vector<48x48xf32>
    %33 = vector.broadcast %cst_10 : f32 to vector<48x48xf32>
    %34 = arith.select %31, %32, %33 : vector<48x48xi1>, vector<48x48xf32>
    %c0_11 = arith.constant 0 : index
    %c0_12 = arith.constant 0 : index
    %c0_13 = arith.constant 0 : index
    %35 = vector.load %arg8[%c0_11, %c0_12, %c0_13] : memref<3x8x128xf32, #tpu.memory_space<vmem>>, vector<1x8x128xf32>
    %36 = vector.shape_cast %35 : vector<1x8x128xf32> to vector<8x128xf32>
    %37 = vector.extract_strided_slice %36 {offsets = [0, 0], sizes = [1, 32], strides = [1, 1]} : vector<8x128xf32> to vector<1x32xf32>
    %38 = vector.extract_strided_slice %36 {offsets = [1, 0], sizes = [1, 32], strides = [1, 1]} : vector<8x128xf32> to vector<1x32xf32>
    %39 = vector.extract_strided_slice %36 {offsets = [2, 0], sizes = [1, 96], strides = [1, 1]} : vector<8x128xf32> to vector<1x96xf32>
    %40 = vector.extract_strided_slice %36 {offsets = [3, 0], sizes = [1, 32], strides = [1, 1]} : vector<8x128xf32> to vector<1x32xf32>
    %41 = vector.extract_strided_slice %36 {offsets = [4, 0], sizes = [1, 32], strides = [1, 1]} : vector<8x128xf32> to vector<1x32xf32>
    %42 = vector.extract_strided_slice %36 {offsets = [5, 0], sizes = [1, 32], strides = [1, 1]} : vector<8x128xf32> to vector<1x32xf32>
    %43 = vector.extract_strided_slice %36 {offsets = [6, 0], sizes = [1, 128], strides = [1, 1]} : vector<8x128xf32> to vector<1x128xf32>
    %44 = vector.extract_strided_slice %36 {offsets = [7, 0], sizes = [1, 32], strides = [1, 1]} : vector<8x128xf32> to vector<1x32xf32>
    %cst_14 = arith.constant dense<0.000000e+00> : vector<48xf32>
    %45 = vector.multi_reduction <add>, %6, %cst_14 [1] : vector<48x32xf32> to vector<48xf32>
    %46 = vector.shape_cast %45 : vector<48xf32> to vector<48x1xf32>
    %cst_15 = arith.constant 3.200000e+01 : f32
    %47 = vector.broadcast %cst_15 : f32 to vector<48x1xf32>
    %48 = arith.divf %46, %47 : vector<48x1xf32>
    %49 = vector.broadcast %48 : vector<48x1xf32> to vector<48x32xf32>
    %50 = arith.subf %6, %49 : vector<48x32xf32>
    %51 = arith.mulf %50, %50 : vector<48x32xf32>
    %cst_16 = arith.constant dense<0.000000e+00> : vector<48xf32>
    %52 = vector.multi_reduction <add>, %51, %cst_16 [1] : vector<48x32xf32> to vector<48xf32>
    %53 = vector.shape_cast %52 : vector<48xf32> to vector<48x1xf32>
    %cst_17 = arith.constant 3.200000e+01 : f32
    %54 = vector.broadcast %cst_17 : f32 to vector<48x1xf32>
    %55 = arith.divf %53, %54 : vector<48x1xf32>
    %56 = vector.broadcast %48 : vector<48x1xf32> to vector<48x32xf32>
    %57 = arith.subf %6, %56 : vector<48x32xf32>
    %cst_18 = arith.constant 9.99999997E-7 : f32
    %58 = vector.broadcast %cst_18 : f32 to vector<48x1xf32>
    %59 = arith.addf %55, %58 : vector<48x1xf32>
    %60 = math.rsqrt %59 : vector<48x1xf32>
    %61 = vector.broadcast %60 : vector<48x1xf32> to vector<48x32xf32>
    %62 = arith.mulf %57, %61 : vector<48x32xf32>
    %63 = vector.broadcast %37 : vector<1x32xf32> to vector<48x32xf32>
    %64 = arith.mulf %62, %63 : vector<48x32xf32>
    %65 = vector.broadcast %38 : vector<1x32xf32> to vector<48x32xf32>
    %66 = arith.addf %64, %65 : vector<48x32xf32>
    %67 = arith.truncf %66 : vector<48x32xf32> to vector<48x32xbf16>
    %c0_19 = arith.constant 0 : index
    %c0_20 = arith.constant 0 : index
    %c0_21 = arith.constant 0 : index
    %68 = vector.load %arg3[%c0_19, %c0_20, %c0_21] : memref<2x32x96xbf16, #tpu.memory_space<vmem>>, vector<1x32x96xbf16>
    %69 = vector.shape_cast %68 : vector<1x32x96xbf16> to vector<32x96xbf16>
    %cst_22 = arith.constant dense<0.000000e+00> : vector<48x96xf32>
    %70 = tpu.matmul %67, %69, %cst_22 {dimension_numbers = #tpu.dot_dimension_numbers<[1], [0], [0], [1], [0, 0, 1, 1], [], []>} : vector<48x32xbf16>, vector<32x96xbf16>, vector<48x96xf32> -> vector<48x96xf32>
    %71 = vector.broadcast %39 : vector<1x96xf32> to vector<48x96xf32>
    %72 = arith.addf %70, %71 : vector<48x96xf32>
    %73 = arith.truncf %72 : vector<48x96xf32> to vector<48x96xbf16>
    %74 = vector.extract_strided_slice %73 {offsets = [0, 0], sizes = [48, 8], strides = [1, 1]} : vector<48x96xbf16> to vector<48x8xbf16>
    %75 = vector.extract_strided_slice %73 {offsets = [0, 8], sizes = [48, 8], strides = [1, 1]} : vector<48x96xbf16> to vector<48x8xbf16>
    %76 = vector.extract_strided_slice %73 {offsets = [0, 16], sizes = [48, 8], strides = [1, 1]} : vector<48x96xbf16> to vector<48x8xbf16>
    %77 = vector.extract_strided_slice %73 {offsets = [0, 24], sizes = [48, 8], strides = [1, 1]} : vector<48x96xbf16> to vector<48x8xbf16>
    %78 = vector.shape_cast %74 : vector<48x8xbf16> to vector<1x48x8xbf16>
    %79 = vector.shape_cast %75 : vector<48x8xbf16> to vector<1x48x8xbf16>
    %80 = vector.shape_cast %76 : vector<48x8xbf16> to vector<1x48x8xbf16>
    %81 = vector.shape_cast %77 : vector<48x8xbf16> to vector<1x48x8xbf16>
    %82 = tpu.concatenate %78, %79, %80, %81 in 0 : vector<1x48x8xbf16>, vector<1x48x8xbf16>, vector<1x48x8xbf16>, vector<1x48x8xbf16> -> vector<4x48x8xbf16>
    %83 = vector.extract_strided_slice %73 {offsets = [0, 32], sizes = [48, 8], strides = [1, 1]} : vector<48x96xbf16> to vector<48x8xbf16>
    %84 = vector.extract_strided_slice %73 {offsets = [0, 40], sizes = [48, 8], strides = [1, 1]} : vector<48x96xbf16> to vector<48x8xbf16>
    %85 = vector.extract_strided_slice %73 {offsets = [0, 48], sizes = [48, 8], strides = [1, 1]} : vector<48x96xbf16> to vector<48x8xbf16>
    %86 = vector.extract_strided_slice %73 {offsets = [0, 56], sizes = [48, 8], strides = [1, 1]} : vector<48x96xbf16> to vector<48x8xbf16>
    %87 = vector.shape_cast %83 : vector<48x8xbf16> to vector<1x48x8xbf16>
    %88 = vector.shape_cast %84 : vector<48x8xbf16> to vector<1x48x8xbf16>
    %89 = vector.shape_cast %85 : vector<48x8xbf16> to vector<1x48x8xbf16>
    %90 = vector.shape_cast %86 : vector<48x8xbf16> to vector<1x48x8xbf16>
    %91 = tpu.concatenate %87, %88, %89, %90 in 0 : vector<1x48x8xbf16>, vector<1x48x8xbf16>, vector<1x48x8xbf16>, vector<1x48x8xbf16> -> vector<4x48x8xbf16>
    %92 = vector.extract_strided_slice %73 {offsets = [0, 64], sizes = [48, 8], strides = [1, 1]} : vector<48x96xbf16> to vector<48x8xbf16>
    %93 = vector.extract_strided_slice %73 {offsets = [0, 72], sizes = [48, 8], strides = [1, 1]} : vector<48x96xbf16> to vector<48x8xbf16>
    %94 = vector.extract_strided_slice %73 {offsets = [0, 80], sizes = [48, 8], strides = [1, 1]} : vector<48x96xbf16> to vector<48x8xbf16>
    %95 = vector.extract_strided_slice %73 {offsets = [0, 88], sizes = [48, 8], strides = [1, 1]} : vector<48x96xbf16> to vector<48x8xbf16>
    %96 = vector.shape_cast %92 : vector<48x8xbf16> to vector<1x48x8xbf16>
    %97 = vector.shape_cast %93 : vector<48x8xbf16> to vector<1x48x8xbf16>
    %98 = vector.shape_cast %94 : vector<48x8xbf16> to vector<1x48x8xbf16>
    %99 = vector.shape_cast %95 : vector<48x8xbf16> to vector<1x48x8xbf16>
    %100 = tpu.concatenate %96, %97, %98, %99 in 0 : vector<1x48x8xbf16>, vector<1x48x8xbf16>, vector<1x48x8xbf16>, vector<1x48x8xbf16> -> vector<4x48x8xbf16>
    %cst_23 = arith.constant dense<0.000000e+00> : vector<4x48x48xf32>
    %101 = tpu.matmul %82, %91, %cst_23 {dimension_numbers = #tpu.dot_dimension_numbers<[2], [2], [1], [1], [0, 0, 0, 1, 1, 1], [0], [0]>} : vector<4x48x8xbf16>, vector<4x48x8xbf16>, vector<4x48x48xf32> -> vector<4x48x48xf32>
    %cst_24 = arith.constant 0.353553385 : f32
    %102 = vector.broadcast %cst_24 : f32 to vector<4x48x48xf32>
    %103 = arith.mulf %101, %102 : vector<4x48x48xf32>
    %104 = vector.shape_cast %34 : vector<48x48xf32> to vector<1x48x48xf32>
    %105 = vector.broadcast %104 : vector<1x48x48xf32> to vector<4x48x48xf32>
    %106 = arith.addf %103, %105 : vector<4x48x48xf32>
    %cst_25 = arith.constant dense<0xFF800000> : vector<4x48xf32>
    %107 = vector.multi_reduction <maximumf>, %106, %cst_25 [2] : vector<4x48x48xf32> to vector<4x48xf32>
    %108 = vector.shape_cast %107 : vector<4x48xf32> to vector<4x48x1xf32>
    %109 = vector.broadcast %108 : vector<4x48x1xf32> to vector<4x48x48xf32>
    %110 = arith.subf %106, %109 : vector<4x48x48xf32>
    %111 = math.exp %110 : vector<4x48x48xf32>
    %cst_26 = arith.constant dense<0.000000e+00> : vector<4x48xf32>
    %112 = vector.multi_reduction <add>, %111, %cst_26 [2] : vector<4x48x48xf32> to vector<4x48xf32>
    %113 = vector.shape_cast %112 : vector<4x48xf32> to vector<4x48x1xf32>
    %114 = tpu.reciprocal %113 {approx = true} : vector<4x48x1xf32> -> vector<4x48x1xf32>
    %115 = vector.broadcast %114 : vector<4x48x1xf32> to vector<4x48x48xf32>
    %116 = arith.mulf %111, %115 : vector<4x48x48xf32>
    %117 = arith.truncf %116 : vector<4x48x48xf32> to vector<4x48x48xbf16>
    %cst_27 = arith.constant dense<0.000000e+00> : vector<4x48x8xf32>
    %118 = tpu.matmul %117, %100, %cst_27 {dimension_numbers = #tpu.dot_dimension_numbers<[2], [1], [1], [2], [0, 0, 0, 1, 1, 2], [0], [0]>} : vector<4x48x48xbf16>, vector<4x48x8xbf16>, vector<4x48x8xf32> -> vector<4x48x8xf32>
    %119 = arith.truncf %118 : vector<4x48x8xf32> to vector<4x48x8xbf16>
    %c0_28 = arith.constant 0 : index
    %c0_29 = arith.constant 0 : index
    %c0_30 = arith.constant 0 : index
    %c0_31 = arith.constant 0 : index
    %120 = vector.load %arg4[%c0_28, %c0_29, %c0_30, %c0_31] : memref<2x4x8x32xbf16, #tpu.memory_space<vmem>>, vector<1x4x8x32xbf16>
    %121 = vector.shape_cast %120 : vector<1x4x8x32xbf16> to vector<4x8x32xbf16>
    %cst_32 = arith.constant dense<0.000000e+00> : vector<4x48x32xf32>
    %122 = tpu.matmul %119, %121, %cst_32 {dimension_numbers = #tpu.dot_dimension_numbers<[2], [1], [1], [2], [0, 0, 0, 1, 1, 2], [0], [0]>} : vector<4x48x8xbf16>, vector<4x8x32xbf16>, vector<4x48x32xf32> -> vector<4x48x32xf32>
    %123 = vector.extract_strided_slice %122 {offsets = [0, 0, 0], sizes = [1, 48, 32], strides = [1, 1, 1]} : vector<4x48x32xf32> to vector<1x48x32xf32>
    %124 = vector.shape_cast %123 : vector<1x48x32xf32> to vector<48x32xf32>
    %125 = vector.extract_strided_slice %122 {offsets = [1, 0, 0], sizes = [1, 48, 32], strides = [1, 1, 1]} : vector<4x48x32xf32> to vector<1x48x32xf32>
    %126 = vector.shape_cast %125 : vector<1x48x32xf32> to vector<48x32xf32>
    %127 = arith.addf %124, %126 : vector<48x32xf32>
    %128 = vector.extract_strided_slice %122 {offsets = [2, 0, 0], sizes = [1, 48, 32], strides = [1, 1, 1]} : vector<4x48x32xf32> to vector<1x48x32xf32>
    %129 = vector.shape_cast %128 : vector<1x48x32xf32> to vector<48x32xf32>
    %130 = arith.addf %127, %129 : vector<48x32xf32>
    %131 = vector.extract_strided_slice %122 {offsets = [3, 0, 0], sizes = [1, 48, 32], strides = [1, 1, 1]} : vector<4x48x32xf32> to vector<1x48x32xf32>
    %132 = vector.shape_cast %131 : vector<1x48x32xf32> to vector<48x32xf32>
    %133 = arith.addf %130, %132 : vector<48x32xf32>
    %134 = arith.addf %6, %133 : vector<48x32xf32>
    %135 = vector.broadcast %40 : vector<1x32xf32> to vector<48x32xf32>
    %136 = arith.addf %134, %135 : vector<48x32xf32>
    %cst_33 = arith.constant dense<0.000000e+00> : vector<48xf32>
    %137 = vector.multi_reduction <add>, %136, %cst_33 [1] : vector<48x32xf32> to vector<48xf32>
    %138 = vector.shape_cast %137 : vector<48xf32> to vector<48x1xf32>
    %cst_34 = arith.constant 3.200000e+01 : f32
    %139 = vector.broadcast %cst_34 : f32 to vector<48x1xf32>
    %140 = arith.divf %138, %139 : vector<48x1xf32>
    %141 = vector.broadcast %140 : vector<48x1xf32> to vector<48x32xf32>
    %142 = arith.subf %136, %141 : vector<48x32xf32>
    %143 = arith.mulf %142, %142 : vector<48x32xf32>
    %cst_35 = arith.constant dense<0.000000e+00> : vector<48xf32>
    %144 = vector.multi_reduction <add>, %143, %cst_35 [1] : vector<48x32xf32> to vector<48xf32>
    %145 = vector.shape_cast %144 : vector<48xf32> to vector<48x1xf32>
    %cst_36 = arith.constant 3.200000e+01 : f32
    %146 = vector.broadcast %cst_36 : f32 to vector<48x1xf32>
    %147 = arith.divf %145, %146 : vector<48x1xf32>
    %148 = vector.broadcast %140 : vector<48x1xf32> to vector<48x32xf32>
    %149 = arith.subf %136, %148 : vector<48x32xf32>
    %cst_37 = arith.constant 9.99999997E-7 : f32
    %150 = vector.broadcast %cst_37 : f32 to vector<48x1xf32>
    %151 = arith.addf %147, %150 : vector<48x1xf32>
    %152 = math.rsqrt %151 : vector<48x1xf32>
    %153 = vector.broadcast %152 : vector<48x1xf32> to vector<48x32xf32>
    %154 = arith.mulf %149, %153 : vector<48x32xf32>
    %155 = vector.broadcast %41 : vector<1x32xf32> to vector<48x32xf32>
    %156 = arith.mulf %154, %155 : vector<48x32xf32>
    %157 = vector.broadcast %42 : vector<1x32xf32> to vector<48x32xf32>
    %158 = arith.addf %156, %157 : vector<48x32xf32>
    %159 = arith.truncf %158 : vector<48x32xf32> to vector<48x32xbf16>
    %c0_38 = arith.constant 0 : index
    %c0_39 = arith.constant 0 : index
    %c0_40 = arith.constant 0 : index
    %160 = vector.load %arg5[%c0_38, %c0_39, %c0_40] : memref<2x32x128xbf16, #tpu.memory_space<vmem>>, vector<1x32x128xbf16>
    %161 = vector.shape_cast %160 : vector<1x32x128xbf16> to vector<32x128xbf16>
    %cst_41 = arith.constant dense<0.000000e+00> : vector<48x128xf32>
    %162 = tpu.matmul %159, %161, %cst_41 {dimension_numbers = #tpu.dot_dimension_numbers<[1], [0], [0], [1], [0, 0, 1, 1], [], []>} : vector<48x32xbf16>, vector<32x128xbf16>, vector<48x128xf32> -> vector<48x128xf32>
    %163 = vector.broadcast %43 : vector<1x128xf32> to vector<48x128xf32>
    %164 = arith.addf %162, %163 : vector<48x128xf32>
    %cst_42 = arith.constant 5.000000e-01 : f32
    %165 = vector.broadcast %cst_42 : f32 to vector<48x128xf32>
    %166 = arith.mulf %165, %164 : vector<48x128xf32>
    %cst_43 = arith.constant 0.707106769 : f32
    %167 = vector.broadcast %cst_43 : f32 to vector<48x128xf32>
    %168 = arith.mulf %164, %167 : vector<48x128xf32>
    %169 = math.erf %168 : vector<48x128xf32>
    %cst_44 = arith.constant 1.000000e+00 : f32
    %170 = vector.broadcast %cst_44 : f32 to vector<48x128xf32>
    %171 = arith.addf %170, %169 : vector<48x128xf32>
    %172 = arith.mulf %166, %171 : vector<48x128xf32>
    %173 = arith.truncf %172 : vector<48x128xf32> to vector<48x128xbf16>
    %c0_45 = arith.constant 0 : index
    %c0_46 = arith.constant 0 : index
    %c0_47 = arith.constant 0 : index
    %174 = vector.load %arg6[%c0_45, %c0_46, %c0_47] : memref<2x128x32xbf16, #tpu.memory_space<vmem>>, vector<1x128x32xbf16>
    %175 = vector.shape_cast %174 : vector<1x128x32xbf16> to vector<128x32xbf16>
    %cst_48 = arith.constant dense<0.000000e+00> : vector<48x32xf32>
    %176 = tpu.matmul %173, %175, %cst_48 {dimension_numbers = #tpu.dot_dimension_numbers<[1], [0], [0], [1], [0, 0, 1, 1], [], []>} : vector<48x128xbf16>, vector<128x32xbf16>, vector<48x32xf32> -> vector<48x32xf32>
    %177 = arith.addf %136, %176 : vector<48x32xf32>
    %178 = vector.broadcast %44 : vector<1x32xf32> to vector<48x32xf32>
    %179 = arith.addf %177, %178 : vector<48x32xf32>
    %c1 = arith.constant 1 : index
    %c0_49 = arith.constant 0 : index
    %c0_50 = arith.constant 0 : index
    %180 = vector.load %arg8[%c1, %c0_49, %c0_50] : memref<3x8x128xf32, #tpu.memory_space<vmem>>, vector<1x8x128xf32>
    %181 = vector.shape_cast %180 : vector<1x8x128xf32> to vector<8x128xf32>
    %182 = vector.extract_strided_slice %181 {offsets = [0, 0], sizes = [1, 32], strides = [1, 1]} : vector<8x128xf32> to vector<1x32xf32>
    %183 = vector.extract_strided_slice %181 {offsets = [1, 0], sizes = [1, 32], strides = [1, 1]} : vector<8x128xf32> to vector<1x32xf32>
    %184 = vector.extract_strided_slice %181 {offsets = [2, 0], sizes = [1, 96], strides = [1, 1]} : vector<8x128xf32> to vector<1x96xf32>
    %185 = vector.extract_strided_slice %181 {offsets = [3, 0], sizes = [1, 32], strides = [1, 1]} : vector<8x128xf32> to vector<1x32xf32>
    %186 = vector.extract_strided_slice %181 {offsets = [4, 0], sizes = [1, 32], strides = [1, 1]} : vector<8x128xf32> to vector<1x32xf32>
    %187 = vector.extract_strided_slice %181 {offsets = [5, 0], sizes = [1, 32], strides = [1, 1]} : vector<8x128xf32> to vector<1x32xf32>
    %188 = vector.extract_strided_slice %181 {offsets = [6, 0], sizes = [1, 128], strides = [1, 1]} : vector<8x128xf32> to vector<1x128xf32>
    %189 = vector.extract_strided_slice %181 {offsets = [7, 0], sizes = [1, 32], strides = [1, 1]} : vector<8x128xf32> to vector<1x32xf32>
    %cst_51 = arith.constant dense<0.000000e+00> : vector<48xf32>
    %190 = vector.multi_reduction <add>, %179, %cst_51 [1] : vector<48x32xf32> to vector<48xf32>
    %191 = vector.shape_cast %190 : vector<48xf32> to vector<48x1xf32>
    %cst_52 = arith.constant 3.200000e+01 : f32
    %192 = vector.broadcast %cst_52 : f32 to vector<48x1xf32>
    %193 = arith.divf %191, %192 : vector<48x1xf32>
    %194 = vector.broadcast %193 : vector<48x1xf32> to vector<48x32xf32>
    %195 = arith.subf %179, %194 : vector<48x32xf32>
    %196 = arith.mulf %195, %195 : vector<48x32xf32>
    %cst_53 = arith.constant dense<0.000000e+00> : vector<48xf32>
    %197 = vector.multi_reduction <add>, %196, %cst_53 [1] : vector<48x32xf32> to vector<48xf32>
    %198 = vector.shape_cast %197 : vector<48xf32> to vector<48x1xf32>
    %cst_54 = arith.constant 3.200000e+01 : f32
    %199 = vector.broadcast %cst_54 : f32 to vector<48x1xf32>
    %200 = arith.divf %198, %199 : vector<48x1xf32>
    %201 = vector.broadcast %193 : vector<48x1xf32> to vector<48x32xf32>
    %202 = arith.subf %179, %201 : vector<48x32xf32>
    %cst_55 = arith.constant 9.99999997E-7 : f32
    %203 = vector.broadcast %cst_55 : f32 to vector<48x1xf32>
    %204 = arith.addf %200, %203 : vector<48x1xf32>
    %205 = math.rsqrt %204 : vector<48x1xf32>
    %206 = vector.broadcast %205 : vector<48x1xf32> to vector<48x32xf32>
    %207 = arith.mulf %202, %206 : vector<48x32xf32>
    %208 = vector.broadcast %182 : vector<1x32xf32> to vector<48x32xf32>
    %209 = arith.mulf %207, %208 : vector<48x32xf32>
    %210 = vector.broadcast %183 : vector<1x32xf32> to vector<48x32xf32>
    %211 = arith.addf %209, %210 : vector<48x32xf32>
    %212 = arith.truncf %211 : vector<48x32xf32> to vector<48x32xbf16>
    %c1_56 = arith.constant 1 : index
    %c0_57 = arith.constant 0 : index
    %c0_58 = arith.constant 0 : index
    %213 = vector.load %arg3[%c1_56, %c0_57, %c0_58] : memref<2x32x96xbf16, #tpu.memory_space<vmem>>, vector<1x32x96xbf16>
    %214 = vector.shape_cast %213 : vector<1x32x96xbf16> to vector<32x96xbf16>
    %cst_59 = arith.constant dense<0.000000e+00> : vector<48x96xf32>
    %215 = tpu.matmul %212, %214, %cst_59 {dimension_numbers = #tpu.dot_dimension_numbers<[1], [0], [0], [1], [0, 0, 1, 1], [], []>} : vector<48x32xbf16>, vector<32x96xbf16>, vector<48x96xf32> -> vector<48x96xf32>
    %216 = vector.broadcast %184 : vector<1x96xf32> to vector<48x96xf32>
    %217 = arith.addf %215, %216 : vector<48x96xf32>
    %218 = arith.truncf %217 : vector<48x96xf32> to vector<48x96xbf16>
    %219 = vector.extract_strided_slice %218 {offsets = [0, 0], sizes = [48, 8], strides = [1, 1]} : vector<48x96xbf16> to vector<48x8xbf16>
    %220 = vector.extract_strided_slice %218 {offsets = [0, 8], sizes = [48, 8], strides = [1, 1]} : vector<48x96xbf16> to vector<48x8xbf16>
    %221 = vector.extract_strided_slice %218 {offsets = [0, 16], sizes = [48, 8], strides = [1, 1]} : vector<48x96xbf16> to vector<48x8xbf16>
    %222 = vector.extract_strided_slice %218 {offsets = [0, 24], sizes = [48, 8], strides = [1, 1]} : vector<48x96xbf16> to vector<48x8xbf16>
    %223 = vector.shape_cast %219 : vector<48x8xbf16> to vector<1x48x8xbf16>
    %224 = vector.shape_cast %220 : vector<48x8xbf16> to vector<1x48x8xbf16>
    %225 = vector.shape_cast %221 : vector<48x8xbf16> to vector<1x48x8xbf16>
    %226 = vector.shape_cast %222 : vector<48x8xbf16> to vector<1x48x8xbf16>
    %227 = tpu.concatenate %223, %224, %225, %226 in 0 : vector<1x48x8xbf16>, vector<1x48x8xbf16>, vector<1x48x8xbf16>, vector<1x48x8xbf16> -> vector<4x48x8xbf16>
    %228 = vector.extract_strided_slice %218 {offsets = [0, 32], sizes = [48, 8], strides = [1, 1]} : vector<48x96xbf16> to vector<48x8xbf16>
    %229 = vector.extract_strided_slice %218 {offsets = [0, 40], sizes = [48, 8], strides = [1, 1]} : vector<48x96xbf16> to vector<48x8xbf16>
    %230 = vector.extract_strided_slice %218 {offsets = [0, 48], sizes = [48, 8], strides = [1, 1]} : vector<48x96xbf16> to vector<48x8xbf16>
    %231 = vector.extract_strided_slice %218 {offsets = [0, 56], sizes = [48, 8], strides = [1, 1]} : vector<48x96xbf16> to vector<48x8xbf16>
    %232 = vector.shape_cast %228 : vector<48x8xbf16> to vector<1x48x8xbf16>
    %233 = vector.shape_cast %229 : vector<48x8xbf16> to vector<1x48x8xbf16>
    %234 = vector.shape_cast %230 : vector<48x8xbf16> to vector<1x48x8xbf16>
    %235 = vector.shape_cast %231 : vector<48x8xbf16> to vector<1x48x8xbf16>
    %236 = tpu.concatenate %232, %233, %234, %235 in 0 : vector<1x48x8xbf16>, vector<1x48x8xbf16>, vector<1x48x8xbf16>, vector<1x48x8xbf16> -> vector<4x48x8xbf16>
    %237 = vector.extract_strided_slice %218 {offsets = [0, 64], sizes = [48, 8], strides = [1, 1]} : vector<48x96xbf16> to vector<48x8xbf16>
    %238 = vector.extract_strided_slice %218 {offsets = [0, 72], sizes = [48, 8], strides = [1, 1]} : vector<48x96xbf16> to vector<48x8xbf16>
    %239 = vector.extract_strided_slice %218 {offsets = [0, 80], sizes = [48, 8], strides = [1, 1]} : vector<48x96xbf16> to vector<48x8xbf16>
    %240 = vector.extract_strided_slice %218 {offsets = [0, 88], sizes = [48, 8], strides = [1, 1]} : vector<48x96xbf16> to vector<48x8xbf16>
    %241 = vector.shape_cast %237 : vector<48x8xbf16> to vector<1x48x8xbf16>
    %242 = vector.shape_cast %238 : vector<48x8xbf16> to vector<1x48x8xbf16>
    %243 = vector.shape_cast %239 : vector<48x8xbf16> to vector<1x48x8xbf16>
    %244 = vector.shape_cast %240 : vector<48x8xbf16> to vector<1x48x8xbf16>
    %245 = tpu.concatenate %241, %242, %243, %244 in 0 : vector<1x48x8xbf16>, vector<1x48x8xbf16>, vector<1x48x8xbf16>, vector<1x48x8xbf16> -> vector<4x48x8xbf16>
    %cst_60 = arith.constant dense<0.000000e+00> : vector<4x48x48xf32>
    %246 = tpu.matmul %227, %236, %cst_60 {dimension_numbers = #tpu.dot_dimension_numbers<[2], [2], [1], [1], [0, 0, 0, 1, 1, 1], [0], [0]>} : vector<4x48x8xbf16>, vector<4x48x8xbf16>, vector<4x48x48xf32> -> vector<4x48x48xf32>
    %cst_61 = arith.constant 0.353553385 : f32
    %247 = vector.broadcast %cst_61 : f32 to vector<4x48x48xf32>
    %248 = arith.mulf %246, %247 : vector<4x48x48xf32>
    %249 = vector.shape_cast %34 : vector<48x48xf32> to vector<1x48x48xf32>
    %250 = vector.broadcast %249 : vector<1x48x48xf32> to vector<4x48x48xf32>
    %251 = arith.addf %248, %250 : vector<4x48x48xf32>
    %cst_62 = arith.constant dense<0xFF800000> : vector<4x48xf32>
    %252 = vector.multi_reduction <maximumf>, %251, %cst_62 [2] : vector<4x48x48xf32> to vector<4x48xf32>
    %253 = vector.shape_cast %252 : vector<4x48xf32> to vector<4x48x1xf32>
    %254 = vector.broadcast %253 : vector<4x48x1xf32> to vector<4x48x48xf32>
    %255 = arith.subf %251, %254 : vector<4x48x48xf32>
    %256 = math.exp %255 : vector<4x48x48xf32>
    %cst_63 = arith.constant dense<0.000000e+00> : vector<4x48xf32>
    %257 = vector.multi_reduction <add>, %256, %cst_63 [2] : vector<4x48x48xf32> to vector<4x48xf32>
    %258 = vector.shape_cast %257 : vector<4x48xf32> to vector<4x48x1xf32>
    %259 = tpu.reciprocal %258 {approx = true} : vector<4x48x1xf32> -> vector<4x48x1xf32>
    %260 = vector.broadcast %259 : vector<4x48x1xf32> to vector<4x48x48xf32>
    %261 = arith.mulf %256, %260 : vector<4x48x48xf32>
    %262 = arith.truncf %261 : vector<4x48x48xf32> to vector<4x48x48xbf16>
    %cst_64 = arith.constant dense<0.000000e+00> : vector<4x48x8xf32>
    %263 = tpu.matmul %262, %245, %cst_64 {dimension_numbers = #tpu.dot_dimension_numbers<[2], [1], [1], [2], [0, 0, 0, 1, 1, 2], [0], [0]>} : vector<4x48x48xbf16>, vector<4x48x8xbf16>, vector<4x48x8xf32> -> vector<4x48x8xf32>
    %264 = arith.truncf %263 : vector<4x48x8xf32> to vector<4x48x8xbf16>
    %c1_65 = arith.constant 1 : index
    %c0_66 = arith.constant 0 : index
    %c0_67 = arith.constant 0 : index
    %c0_68 = arith.constant 0 : index
    %265 = vector.load %arg4[%c1_65, %c0_66, %c0_67, %c0_68] : memref<2x4x8x32xbf16, #tpu.memory_space<vmem>>, vector<1x4x8x32xbf16>
    %266 = vector.shape_cast %265 : vector<1x4x8x32xbf16> to vector<4x8x32xbf16>
    %cst_69 = arith.constant dense<0.000000e+00> : vector<4x48x32xf32>
    %267 = tpu.matmul %264, %266, %cst_69 {dimension_numbers = #tpu.dot_dimension_numbers<[2], [1], [1], [2], [0, 0, 0, 1, 1, 2], [0], [0]>} : vector<4x48x8xbf16>, vector<4x8x32xbf16>, vector<4x48x32xf32> -> vector<4x48x32xf32>
    %268 = vector.extract_strided_slice %267 {offsets = [0, 0, 0], sizes = [1, 48, 32], strides = [1, 1, 1]} : vector<4x48x32xf32> to vector<1x48x32xf32>
    %269 = vector.shape_cast %268 : vector<1x48x32xf32> to vector<48x32xf32>
    %270 = vector.extract_strided_slice %267 {offsets = [1, 0, 0], sizes = [1, 48, 32], strides = [1, 1, 1]} : vector<4x48x32xf32> to vector<1x48x32xf32>
    %271 = vector.shape_cast %270 : vector<1x48x32xf32> to vector<48x32xf32>
    %272 = arith.addf %269, %271 : vector<48x32xf32>
    %273 = vector.extract_strided_slice %267 {offsets = [2, 0, 0], sizes = [1, 48, 32], strides = [1, 1, 1]} : vector<4x48x32xf32> to vector<1x48x32xf32>
    %274 = vector.shape_cast %273 : vector<1x48x32xf32> to vector<48x32xf32>
    %275 = arith.addf %272, %274 : vector<48x32xf32>
    %276 = vector.extract_strided_slice %267 {offsets = [3, 0, 0], sizes = [1, 48, 32], strides = [1, 1, 1]} : vector<4x48x32xf32> to vector<1x48x32xf32>
    %277 = vector.shape_cast %276 : vector<1x48x32xf32> to vector<48x32xf32>
    %278 = arith.addf %275, %277 : vector<48x32xf32>
    %279 = arith.addf %179, %278 : vector<48x32xf32>
    %280 = vector.broadcast %185 : vector<1x32xf32> to vector<48x32xf32>
    %281 = arith.addf %279, %280 : vector<48x32xf32>
    %cst_70 = arith.constant dense<0.000000e+00> : vector<48xf32>
    %282 = vector.multi_reduction <add>, %281, %cst_70 [1] : vector<48x32xf32> to vector<48xf32>
    %283 = vector.shape_cast %282 : vector<48xf32> to vector<48x1xf32>
    %cst_71 = arith.constant 3.200000e+01 : f32
    %284 = vector.broadcast %cst_71 : f32 to vector<48x1xf32>
    %285 = arith.divf %283, %284 : vector<48x1xf32>
    %286 = vector.broadcast %285 : vector<48x1xf32> to vector<48x32xf32>
    %287 = arith.subf %281, %286 : vector<48x32xf32>
    %288 = arith.mulf %287, %287 : vector<48x32xf32>
    %cst_72 = arith.constant dense<0.000000e+00> : vector<48xf32>
    %289 = vector.multi_reduction <add>, %288, %cst_72 [1] : vector<48x32xf32> to vector<48xf32>
    %290 = vector.shape_cast %289 : vector<48xf32> to vector<48x1xf32>
    %cst_73 = arith.constant 3.200000e+01 : f32
    %291 = vector.broadcast %cst_73 : f32 to vector<48x1xf32>
    %292 = arith.divf %290, %291 : vector<48x1xf32>
    %293 = vector.broadcast %285 : vector<48x1xf32> to vector<48x32xf32>
    %294 = arith.subf %281, %293 : vector<48x32xf32>
    %cst_74 = arith.constant 9.99999997E-7 : f32
    %295 = vector.broadcast %cst_74 : f32 to vector<48x1xf32>
    %296 = arith.addf %292, %295 : vector<48x1xf32>
    %297 = math.rsqrt %296 : vector<48x1xf32>
    %298 = vector.broadcast %297 : vector<48x1xf32> to vector<48x32xf32>
    %299 = arith.mulf %294, %298 : vector<48x32xf32>
    %300 = vector.broadcast %186 : vector<1x32xf32> to vector<48x32xf32>
    %301 = arith.mulf %299, %300 : vector<48x32xf32>
    %302 = vector.broadcast %187 : vector<1x32xf32> to vector<48x32xf32>
    %303 = arith.addf %301, %302 : vector<48x32xf32>
    %304 = arith.truncf %303 : vector<48x32xf32> to vector<48x32xbf16>
    %c1_75 = arith.constant 1 : index
    %c0_76 = arith.constant 0 : index
    %c0_77 = arith.constant 0 : index
    %305 = vector.load %arg5[%c1_75, %c0_76, %c0_77] : memref<2x32x128xbf16, #tpu.memory_space<vmem>>, vector<1x32x128xbf16>
    %306 = vector.shape_cast %305 : vector<1x32x128xbf16> to vector<32x128xbf16>
    %cst_78 = arith.constant dense<0.000000e+00> : vector<48x128xf32>
    %307 = tpu.matmul %304, %306, %cst_78 {dimension_numbers = #tpu.dot_dimension_numbers<[1], [0], [0], [1], [0, 0, 1, 1], [], []>} : vector<48x32xbf16>, vector<32x128xbf16>, vector<48x128xf32> -> vector<48x128xf32>
    %308 = vector.broadcast %188 : vector<1x128xf32> to vector<48x128xf32>
    %309 = arith.addf %307, %308 : vector<48x128xf32>
    %cst_79 = arith.constant 5.000000e-01 : f32
    %310 = vector.broadcast %cst_79 : f32 to vector<48x128xf32>
    %311 = arith.mulf %310, %309 : vector<48x128xf32>
    %cst_80 = arith.constant 0.707106769 : f32
    %312 = vector.broadcast %cst_80 : f32 to vector<48x128xf32>
    %313 = arith.mulf %309, %312 : vector<48x128xf32>
    %314 = math.erf %313 : vector<48x128xf32>
    %cst_81 = arith.constant 1.000000e+00 : f32
    %315 = vector.broadcast %cst_81 : f32 to vector<48x128xf32>
    %316 = arith.addf %315, %314 : vector<48x128xf32>
    %317 = arith.mulf %311, %316 : vector<48x128xf32>
    %318 = arith.truncf %317 : vector<48x128xf32> to vector<48x128xbf16>
    %c1_82 = arith.constant 1 : index
    %c0_83 = arith.constant 0 : index
    %c0_84 = arith.constant 0 : index
    %319 = vector.load %arg6[%c1_82, %c0_83, %c0_84] : memref<2x128x32xbf16, #tpu.memory_space<vmem>>, vector<1x128x32xbf16>
    %320 = vector.shape_cast %319 : vector<1x128x32xbf16> to vector<128x32xbf16>
    %cst_85 = arith.constant dense<0.000000e+00> : vector<48x32xf32>
    %321 = tpu.matmul %318, %320, %cst_85 {dimension_numbers = #tpu.dot_dimension_numbers<[1], [0], [0], [1], [0, 0, 1, 1], [], []>} : vector<48x128xbf16>, vector<128x32xbf16>, vector<48x32xf32> -> vector<48x32xf32>
    %322 = arith.addf %281, %321 : vector<48x32xf32>
    %323 = vector.broadcast %189 : vector<1x32xf32> to vector<48x32xf32>
    %324 = arith.addf %322, %323 : vector<48x32xf32>
    %325 = vector.extract_strided_slice %324 {offsets = [0, 0], sizes = [1, 32], strides = [1, 1]} : vector<48x32xf32> to vector<1x32xf32>
    %326 = vector.extract_strided_slice %324 {offsets = [24, 0], sizes = [1, 32], strides = [1, 1]} : vector<48x32xf32> to vector<1x32xf32>
    %327 = tpu.concatenate %325, %326 in 0 : vector<1x32xf32>, vector<1x32xf32> -> vector<2x32xf32>
    %c2 = arith.constant 2 : index
    %c0_86 = arith.constant 0 : index
    %c0_87 = arith.constant 0 : index
    %328 = vector.load %arg8[%c2, %c0_86, %c0_87] : memref<3x8x128xf32, #tpu.memory_space<vmem>>, vector<1x8x128xf32>
    %329 = vector.shape_cast %328 : vector<1x8x128xf32> to vector<8x128xf32>
    %330 = vector.extract_strided_slice %329 {offsets = [0, 0], sizes = [1, 32], strides = [1, 1]} : vector<8x128xf32> to vector<1x32xf32>
    %331 = vector.extract_strided_slice %329 {offsets = [1, 0], sizes = [1, 32], strides = [1, 1]} : vector<8x128xf32> to vector<1x32xf32>
    %cst_88 = arith.constant dense<0.000000e+00> : vector<2xf32>
    %332 = vector.multi_reduction <add>, %327, %cst_88 [1] : vector<2x32xf32> to vector<2xf32>
    %333 = vector.shape_cast %332 : vector<2xf32> to vector<2x1xf32>
    %cst_89 = arith.constant 3.200000e+01 : f32
    %334 = vector.broadcast %cst_89 : f32 to vector<2x1xf32>
    %335 = arith.divf %333, %334 : vector<2x1xf32>
    %336 = vector.broadcast %335 : vector<2x1xf32> to vector<2x32xf32>
    %337 = arith.subf %327, %336 : vector<2x32xf32>
    %338 = arith.mulf %337, %337 : vector<2x32xf32>
    %cst_90 = arith.constant dense<0.000000e+00> : vector<2xf32>
    %339 = vector.multi_reduction <add>, %338, %cst_90 [1] : vector<2x32xf32> to vector<2xf32>
    %340 = vector.shape_cast %339 : vector<2xf32> to vector<2x1xf32>
    %cst_91 = arith.constant 3.200000e+01 : f32
    %341 = vector.broadcast %cst_91 : f32 to vector<2x1xf32>
    %342 = arith.divf %340, %341 : vector<2x1xf32>
    %343 = vector.broadcast %335 : vector<2x1xf32> to vector<2x32xf32>
    %344 = arith.subf %327, %343 : vector<2x32xf32>
    %cst_92 = arith.constant 9.99999997E-7 : f32
    %345 = vector.broadcast %cst_92 : f32 to vector<2x1xf32>
    %346 = arith.addf %342, %345 : vector<2x1xf32>
    %347 = math.rsqrt %346 : vector<2x1xf32>
    %348 = vector.broadcast %347 : vector<2x1xf32> to vector<2x32xf32>
    %349 = arith.mulf %344, %348 : vector<2x32xf32>
    %350 = vector.broadcast %330 : vector<1x32xf32> to vector<2x32xf32>
    %351 = arith.mulf %349, %350 : vector<2x32xf32>
    %352 = vector.broadcast %331 : vector<1x32xf32> to vector<2x32xf32>
    %353 = arith.addf %351, %352 : vector<2x32xf32>
    %354 = arith.truncf %353 : vector<2x32xf32> to vector<2x32xbf16>
    %c0_93 = arith.constant 0 : index
    %c0_94 = arith.constant 0 : index
    %355 = vector.load %arg7[%c0_93, %c0_94] : memref<32x128xbf16, #tpu.memory_space<vmem>>, vector<32x128xbf16>
    %cst_95 = arith.constant dense<0.000000e+00> : vector<2x128xf32>
    %356 = tpu.matmul %354, %355, %cst_95 {dimension_numbers = #tpu.dot_dimension_numbers<[1], [0], [0], [1], [0, 0, 1, 1], [], []>} : vector<2x32xbf16>, vector<32x128xbf16>, vector<2x128xf32> -> vector<2x128xf32>
    %357 = vector.extract_strided_slice %329 {offsets = [2, 0], sizes = [1, 128], strides = [1, 1]} : vector<8x128xf32> to vector<1x128xf32>
    %358 = vector.broadcast %357 : vector<1x128xf32> to vector<2x128xf32>
    %359 = arith.addf %356, %358 : vector<2x128xf32>
    %c0_96 = arith.constant 0 : index
    %c0_97 = arith.constant 0 : index
    %360 = vector.load %arg9[%c0_96, %c0_97] : memref<2x128xf32, #tpu.memory_space<vmem>>, vector<2x128xf32>
    tpu.vector_store %arg9[%c0_96, %c0_97], %359 {strides = array<i32>} : memref<2x128xf32, #tpu.memory_space<vmem>>, vector<2x128xf32>,
    return
  }
}

</mosaic_0001>

<llo_original>
// kernel: vit_forward.1
$region0: #{vit_forward.1}
  #allocation0 [shape = 'u32[]', space=smem, size = 0x4, offset = 0x4, fixed_abs, tag = 'smem constant byte address 0x4 - core index']
  #allocation1 [shape = 'u32[144,128]{1,0:T(1,128)}', space=vmem, size = 0x12000, scoped, tag = 'internal scratch']
  %s0 = inlined_call_operand.vmem [shape: bf16[2,24,64], index: 0, kind: input, shape index: {}]
  %s1 = inlined_call_operand.vmem [shape: bf16[64,32], index: 1, kind: input, shape index: {}]
  %s2 = inlined_call_operand.vmem [shape: f32[24,32], index: 2, kind: input, shape index: {}]
  %s3 = inlined_call_operand.vmem [shape: bf16[2,32,96], index: 3, kind: input, shape index: {}]
  %s4 = inlined_call_operand.vmem [shape: bf16[2,4,8,32], index: 4, kind: input, shape index: {}]
  %s5 = inlined_call_operand.vmem [shape: bf16[2,32,128], index: 5, kind: input, shape index: {}]
  %s6 = inlined_call_operand.vmem [shape: bf16[2,128,32], index: 6, kind: input, shape index: {}]
  %s7 = inlined_call_operand.vmem [shape: bf16[32,128], index: 7, kind: input, shape index: {}]
  %s8 = inlined_call_operand.vmem [shape: f32[3,8,128], index: 8, kind: input, shape index: {}]
  %s9 = inlined_call_operand.hbm [shape: f32[2,128], index: 9, kind: output, shape index: {}]
  %s10 = sld [smem:[#allocation0]]
  $region46: #{vit_forward.1} parent=0
    _
  %s12 = ssub.s32 1, %s10
  %s13 = scalar_select 0, %s12, %s10
  $region1: #{vit_forward.1} parent=0
    #allocation2 [shape = 'u8[1024]{0}', space=vmem, size = 0x400, scoped, tag = 'output window, operand 0, single buffered']
    #allocation3 [shape = 's32[1]{0}', space=sflag, size = 0x4, scoped, tag = 'scoped memory for vit_forward.1']
    %14 = vsyncpa [#allocation3], 0
    // Predicated region
    $region2: #{vit_forward.1} parent=1 // pred_check
      _
    $region3: #{vit_forward.1} parent=1 // pred_check_branch
      %16 = sbr.rel (0) target = $region5
    $region4: #{vit_forward.1} parent=1 // pred_region
      _
    $region5: #{vit_forward.1} parent=1 // pred_fallthru
      _
    // Predicated region
    $region6: #{vit_forward.1} parent=1 // pred_check
      _
    $region7: #{vit_forward.1} parent=1 // pred_check_branch
      %18 = sbr.rel (0) target = $region9
    $region8: #{vit_forward.1} parent=1 // pred_region
      _
    $region9: #{vit_forward.1} parent=1 // pred_fallthru
      _
    // Predicated region
    $region10: #{vit_forward.1} parent=1 // pred_check
      _
    $region11: #{vit_forward.1} parent=1 // pred_check_branch
      %20 = sbr.rel (0) target = $region13
    $region12: #{vit_forward.1} parent=1 // pred_region
      _
    $region13: #{vit_forward.1} parent=1 // pred_fallthru
      _
    // Predicated region
    $region14: #{vit_forward.1} parent=1 // pred_check
      _
    $region15: #{vit_forward.1} parent=1 // pred_check_branch
      %22 = sbr.rel (0) target = $region17
    $region16: #{vit_forward.1} parent=1 // pred_region
      _
    $region17: #{vit_forward.1} parent=1 // pred_fallthru
      _
    // Predicated region
    $region18: #{vit_forward.1} parent=1 // pred_check
      _
    $region19: #{vit_forward.1} parent=1 // pred_check_branch
      %24 = sbr.rel (0) target = $region21
    $region20: #{vit_forward.1} parent=1 // pred_region
      _
    $region21: #{vit_forward.1} parent=1 // pred_fallthru
      _
    // Predicated region
    $region22: #{vit_forward.1} parent=1 // pred_check
      _
    $region23: #{vit_forward.1} parent=1 // pred_check_branch
      %26 = sbr.rel (0) target = $region25
    $region24: #{vit_forward.1} parent=1 // pred_region
      _
    $region25: #{vit_forward.1} parent=1 // pred_fallthru
      _
    // Predicated region
    $region26: #{vit_forward.1} parent=1 // pred_check
      _
    $region27: #{vit_forward.1} parent=1 // pred_check_branch
      %28 = sbr.rel (0) target = $region29
    $region28: #{vit_forward.1} parent=1 // pred_region
      _
    $region29: #{vit_forward.1} parent=1 // pred_fallthru
      _
    // Predicated region
    $region30: #{vit_forward.1} parent=1 // pred_check
      _
    $region31: #{vit_forward.1} parent=1 // pred_check_branch
      %30 = sbr.rel (0) target = $region33
    $region32: #{vit_forward.1} parent=1 // pred_region
      _
    $region33: #{vit_forward.1} parent=1 // pred_fallthru
      _
    // Predicated region
    $region34: #{vit_forward.1} parent=1 // pred_check
      _
    $region35: #{vit_forward.1} parent=1 // pred_check_branch
      %32 = sbr.rel (0) target = $region37
    $region36: #{vit_forward.1} parent=1 // pred_region
      _
    $region37: #{vit_forward.1} parent=1 // pred_fallthru
      _
    %v34 = vld [vmem:[%s0] sm:$0xf]
    %v35 = vld [vmem:[%s0 + $0x4] sm:$0xf]
    %v36 = vld [vmem:[%s0 + $0x8] sm:$0xf]
    %v37 = vld [vmem:[%s0 + $0xc] sm:$0xf]
    %v38 = vld [vmem:[%s0 + $0x10] sm:$0xf]
    %v39 = vld [vmem:[%s0 + $0x14] sm:$0xf]
    %v40 = vld [vmem:[%s1] sm:$0xf]
    %v41 = vld [vmem:[%s1 + $0x4] sm:$0xf]
    %v42 = vld [vmem:[%s1 + $0x8] sm:$0xf]
    %v43 = vld [vmem:[%s1 + $0xc] sm:$0xf]
    %v44 = vld [vmem:[%s1 + $0x10] sm:$0xf]
    %v45 = vld [vmem:[%s1 + $0x14] sm:$0xf]
    %v46 = vld [vmem:[%s1 + $0x18] sm:$0xf]
    %v47 = vld [vmem:[%s1 + $0x1c] sm:$0xf]
    %v48 = vld [vmem:[%s2] sm:$0xff]
    %v49 = vld [vmem:[%s2 + $0x8] sm:$0xff]
    %v50 = vld [vmem:[%s2 + $0x10] sm:$0xff]
    %v57 = vunpack.c.l.b16 %v34
    %v58 = vunpack.c.l.b16 %v35
    %v59 = vunpack.c.l.b16 %v36
    %v60 = vunpack.c.l.b16 %v37
    %v61 = vunpack.c.l.b16 %v38
    %v62 = vunpack.c.l.b16 %v39
    %v63 = vpack.c.b16 %v58, %v57
    %v64 = vpack.c.b16 %v60, %v59
    %v65 = vpack.c.b16 %v62, %v61
    %v74 = vunpack.c.l.b16 %v40
    %v75 = vunpack.c.l.b16 %v41
    %v76 = vunpack.c.l.b16 %v42
    %v77 = vunpack.c.l.b16 %v43
    %v78 = vunpack.c.l.b16 %v44
    %v79 = vunpack.c.l.b16 %v45
    %v80 = vunpack.c.l.b16 %v46
    %v81 = vunpack.c.l.b16 %v47
    %v82 = vpack.c.b16 %v75, %v74
    %v83 = vpack.c.b16 %v77, %v76
    %v84 = vpack.c.b16 %v79, %v78
    %v85 = vpack.c.b16 %v81, %v80
    %vm90 = vcmask 523264
    %v92 = vsel %vm90, %v63, 0
    %v95 = vsel %vm90, %v64, 0
    %v98 = vsel %vm90, %v65, 0
    %100 = vmatprep.subr.bf16.mxu0 0
    %101 = vmatpush1.bf16.msra.mxu0 %v82
    %102 = vmatprep.subr.bf16.mxu0 0
    %103 = vmatpush1.bf16.msra.mxu0 %v83
    %104 = vmatprep.subr.bf16.mxu0 0
    %105 = vmatpush1.bf16.msra.mxu0 %v84
    %106 = vmatprep.subr.bf16.mxu0 0
    %107 = vmatpush1.bf16.msra.mxu0 %v85
    %108 = vmatprep.subr.bf16.mxu0 0
    %109 = vmatpush1.bf16.msra.mxu0 0
    %110 = vmatprep.subr.bf16.mxu0 0
    %111 = vmatpush1.bf16.msra.mxu0 0
    %112 = vmatprep.subr.bf16.mxu0 0
    %113 = vmatpush1.bf16.msra.mxu0 0
    %114 = vmatprep.subr.bf16.mxu0 0
    %115 = vmatpush1.bf16.msra.mxu0 0
    %116 = vmatprep.subr.bf16.mxu0 0
    %117 = vmatpush1.bf16.msra.mxu0 0
    %118 = vmatprep.subr.bf16.mxu0 0
    %119 = vmatpush1.bf16.msra.mxu0 0
    %120 = vmatprep.subr.bf16.mxu0 0
    %121 = vmatpush1.bf16.msra.mxu0 0
    %122 = vmatprep.subr.bf16.mxu0 0
    %123 = vmatpush1.bf16.msra.mxu0 0
    %124 = vmatprep.subr.bf16.mxu0 0
    %125 = vmatpush1.bf16.msra.mxu0 0
    %126 = vmatprep.subr.bf16.mxu0 0
    %127 = vmatpush1.bf16.msra.mxu0 0
    %128 = vmatprep.subr.bf16.mxu0 0
    %129 = vmatpush1.bf16.msra.mxu0 0
    %130 = vmatprep.subr.bf16.mxu0 0
    %131 = vmatpush1.bf16.msra.mxu0 0
    %132 = vmatprep.mubr.bf16.mxu0 0
    %133 = vmatmul.mubr.bf16.gmra.mrb[0].mxu0 %v92
    %v134 = vpop.f32.mrb[0].mxu0
    %v135 = vadd.f32 %v48, %v134
    %v136 = vpop.f32.mrb[0].mxu0
    %v137 = vpop.f32.mrb[0].mxu0
    %v138 = vadd.f32 %v49, %v137
    %v139 = vpop.f32.mrb[0].mxu0
    %140 = vmatprep.mubr.bf16.mxu0 0
    %141 = vmatmul.mubr.bf16.gmra.mrb[0].mxu0 %v95
    %v142 = vpop.f32.mrb[0].mxu0
    %v143 = vadd.f32 %v50, %v142
    %v144 = vpop.f32.mrb[0].mxu0
    %v145 = vpop.f32.mrb[0].mxu0
    %v146 = vadd.f32 %v48, %v145
    %v147 = vpop.f32.mrb[0].mxu0
    %148 = vmatprep.mubr.bf16.mxu0 0
    %149 = vmatmul.mubr.bf16.gmra.mrb[0].mxu0 %v98
    %v150 = vpop.f32.mrb[0].mxu0
    %v151 = vadd.f32 %v49, %v150
    %v152 = vpop.f32.mrb[0].mxu0
    %v153 = vpop.f32.mrb[0].mxu0
    %v154 = vadd.f32 %v50, %v153
    %v155 = vpop.f32.mrb[0].mxu0
    %156 = vdwg.mxu0
    %v157 = vlaneseq
    %v158 = vshrl.u32 %v157, 7
    %v159 = vadd.s32 %v158, 8
    %v160 = vadd.s32 %v158, 16
    %v161 = vadd.s32 %v158, 24
    %v162 = vadd.s32 %v158, 32
    %v163 = vadd.s32 %v158, 40
    %v164 = vlaneseq
    %v165 = vand.u32 %v164, 127
    %vm166 = vcmp.ge.s32.totalorder %v158, 0
    %vm167 = vcmp.ge.s32.totalorder %v159, 0
    %vm168 = vcmp.ge.s32.totalorder %v160, 0
    %vm169 = vcmp.ge.s32.totalorder %v161, 0
    %vm170 = vcmp.ge.s32.totalorder %v162, 0
    %vm171 = vcmp.ge.s32.totalorder %v163, 0
    %vm172 = vcmp.lt.s32.totalorder %v158, 24
    %vm173 = vcmp.lt.s32.totalorder %v159, 24
    %vm174 = vcmp.lt.s32.totalorder %v160, 24
    %vm175 = vcmp.lt.s32.totalorder %v161, 24
    %vm176 = vcmp.lt.s32.totalorder %v162, 24
    %vm177 = vcmp.lt.s32.totalorder %v163, 24
    %vm178 = vmand %vm166, %vm172
    %vm179 = vmand %vm167, %vm173
    %vm180 = vmand %vm168, %vm174
    %vm181 = vmand %vm169, %vm175
    %vm182 = vmand %vm170, %vm176
    %vm183 = vmand %vm171, %vm177
    %vm184 = vcmp.ge.s32.totalorder %v165, 0
    %vm185 = vcmp.lt.s32.totalorder %v165, 17
    %vm186 = vmand %vm184, %vm185
    %vm187 = vmand %vm178, %vm186
    %vm188 = vmand %vm179, %vm186
    %vm189 = vmand %vm180, %vm186
    %vm190 = vmand %vm181, %vm186
    %vm191 = vmand %vm182, %vm186
    %vm192 = vmand %vm183, %vm186
    %vm193 = vcmp.ge.s32.totalorder %v158, 24
    %vm194 = vcmp.ge.s32.totalorder %v159, 24
    %vm195 = vcmp.ge.s32.totalorder %v160, 24
    %vm196 = vcmp.ge.s32.totalorder %v161, 24
    %vm197 = vcmp.ge.s32.totalorder %v162, 24
    %vm198 = vcmp.ge.s32.totalorder %v163, 24
    %vm199 = vcmp.lt.s32.totalorder %v158, 48
    %vm200 = vcmp.lt.s32.totalorder %v159, 48
    %vm201 = vcmp.lt.s32.totalorder %v160, 48
    %vm202 = vcmp.lt.s32.totalorder %v161, 48
    %vm203 = vcmp.lt.s32.totalorder %v162, 48
    %vm204 = vcmp.lt.s32.totalorder %v163, 48
    %vm205 = vmand %vm193, %vm199
    %vm206 = vmand %vm194, %vm200
    %vm207 = vmand %vm195, %vm201
    %vm208 = vmand %vm196, %vm202
    %vm209 = vmand %vm197, %vm203
    %vm210 = vmand %vm198, %vm204
    %vm211 = vcmp.ge.s32.totalorder %v165, 24
    %vm212 = vcmp.lt.s32.totalorder %v165, 41
    %vm213 = vmand %vm211, %vm212
    %vm214 = vmand %vm205, %vm213
    %vm215 = vmand %vm206, %vm213
    %vm216 = vmand %vm207, %vm213
    %vm217 = vmand %vm208, %vm213
    %vm218 = vmand %vm209, %vm213
    %vm219 = vmand %vm210, %vm213
    %vm220 = vmor %vm187, %vm214
    %vm221 = vmor %vm188, %vm215
    %vm222 = vmor %vm189, %vm216
    %vm223 = vmor %vm190, %vm217
    %vm224 = vmor %vm191, %vm218
    %vm225 = vmor %vm192, %vm219
    %v226 = vsel %vm220, 0.0, -1e+30
    %v227 = vsel %vm221, 0.0, -1e+30
    %v228 = vsel %vm222, 0.0, -1e+30
    %v229 = vsel %vm223, 0.0, -1e+30
    %v230 = vsel %vm224, 0.0, -1e+30
    %v231 = vsel %vm225, 0.0, -1e+30
    %v232 = vld [vmem:[%s8] sm:$0xff]
    %vm233 = vcmask 261120
    %v234 = vsel %vm233, %v135, 0.0
    %235 = vadd.xlane.f32.xlu0 %v234
    %v236 = vpop.xlane.xlu0 %235
    %v237 = vsel %vm233, %v138, 0.0
    %238 = vadd.xlane.f32.xlu0 %v237
    %v239 = vpop.xlane.xlu0 %238
    %v240 = vsel %vm233, %v143, 0.0
    %241 = vadd.xlane.f32.xlu0 %v240
    %v242 = vpop.xlane.xlu0 %241
    %v243 = vsel %vm233, %v146, 0.0
    %244 = vadd.xlane.f32.xlu0 %v243
    %v245 = vpop.xlane.xlu0 %244
    %v246 = vsel %vm233, %v151, 0.0
    %247 = vadd.xlane.f32.xlu0 %v246
    %v248 = vpop.xlane.xlu0 %247
    %v249 = vsel %vm233, %v154, 0.0
    %250 = vadd.xlane.f32.xlu0 %v249
    %v251 = vpop.xlane.xlu0 %250
    %v252 = vrcp.pop 32.0
    %v253 = vmul.f32 %v236, %v252
    %v254 = vmul.f32 %v239, %v252
    %v255 = vmul.f32 %v242, %v252
    %v256 = vmul.f32 %v245, %v252
    %v257 = vmul.f32 %v248, %v252
    %v258 = vmul.f32 %v251, %v252
    %v259 = vsub.f32 %v135, %v253
    %v260 = vsub.f32 %v138, %v254
    %v261 = vsub.f32 %v143, %v255
    %v262 = vsub.f32 %v146, %v256
    %v263 = vsub.f32 %v151, %v257
    %v264 = vsub.f32 %v154, %v258
    %v265 = vmul.f32 %v259, %v259
    %v266 = vmul.f32 %v260, %v260
    %v267 = vmul.f32 %v261, %v261
    %v268 = vmul.f32 %v262, %v262
    %v269 = vmul.f32 %v263, %v263
    %v270 = vmul.f32 %v264, %v264
    %v271 = vsel %vm233, %v265, 0.0
    %272 = vadd.xlane.f32.xlu0 %v271
    %v273 = vpop.xlane.xlu0 %272
    %v274 = vsel %vm233, %v266, 0.0
    %275 = vadd.xlane.f32.xlu0 %v274
    %v276 = vpop.xlane.xlu0 %275
    %v277 = vsel %vm233, %v267, 0.0
    %278 = vadd.xlane.f32.xlu0 %v277
    %v279 = vpop.xlane.xlu0 %278
    %v280 = vsel %vm233, %v268, 0.0
    %281 = vadd.xlane.f32.xlu0 %v280
    %v282 = vpop.xlane.xlu0 %281
    %v283 = vsel %vm233, %v269, 0.0
    %284 = vadd.xlane.f32.xlu0 %v283
    %v285 = vpop.xlane.xlu0 %284
    %v286 = vsel %vm233, %v270, 0.0
    %287 = vadd.xlane.f32.xlu0 %v286
    %v288 = vpop.xlane.xlu0 %287
    %v289 = vmul.f32 %v273, %v252
    %v290 = vmul.f32 %v276, %v252
    %v291 = vmul.f32 %v279, %v252
    %v292 = vmul.f32 %v282, %v252
    %v293 = vmul.f32 %v285, %v252
    %v294 = vmul.f32 %v288, %v252
    %v295 = vadd.f32 %v289, 1e-06
    %v296 = vadd.f32 %v290, 1e-06
    %v297 = vadd.f32 %v291, 1e-06
    %v298 = vadd.f32 %v292, 1e-06
    %v299 = vadd.f32 %v293, 1e-06
    %v300 = vadd.f32 %v294, 1e-06
    %v301 = vrsqrt.pop %v295
    %v302 = vrsqrt.pop %v296
    %v303 = vrsqrt.pop %v297
    %v304 = vrsqrt.pop %v298
    %v305 = vrsqrt.pop %v299
    %v306 = vrsqrt.pop %v300
    %v307 = vmul.f32 %v259, %v301
    %v308 = vmul.f32 %v260, %v302
    %v309 = vmul.f32 %v261, %v303
    %v310 = vmul.f32 %v262, %v304
    %v311 = vmul.f32 %v263, %v305
    %v312 = vmul.f32 %v264, %v306
    %v313 = vlaneseq
    %v314 = vshrl.u32 %v313, 7
    %v315 = vsub.s32 0, %v314
    %v316 = vrot.slane %v232, %v315
    %v317 = vmul.f32 %v307, %v316
    %v318 = vmul.f32 %v308, %v316
    %v319 = vmul.f32 %v309, %v316
    %v320 = vmul.f32 %v310, %v316
    %v321 = vmul.f32 %v311, %v316
    %v322 = vmul.f32 %v312, %v316
    %v323 = vlaneseq
    %v324 = vshrl.u32 %v323, 7
    %v325 = vsub.s32 1, %v324
    %v326 = vrot.slane %v232, %v325
    %v327 = vadd.f32 %v317, %v326
    %v328 = vadd.f32 %v318, %v326
    %v329 = vadd.f32 %v319, %v326
    %v330 = vadd.f32 %v320, %v326
    %v331 = vadd.f32 %v321, %v326
    %v332 = vadd.f32 %v322, %v326
    %v333 = vpack.c.bf16 %v328, %v327
    %v334 = vpack.c.bf16 %v330, %v329
    %v335 = vpack.c.bf16 %v332, %v331
    %v336 = vld [vmem:[%s3] sm:$0xf]
    %v337 = vld [vmem:[%s3 + $0x4] sm:$0xf]
    %v338 = vld [vmem:[%s3 + $0x8] sm:$0xf]
    %v339 = vld [vmem:[%s3 + $0xc] sm:$0xf]
    %v340 = vlaneseq
    %v341 = vshrl.u32 %v340, 7
    %v342 = vsub.s32 2, %v341
    %v343 = vrot.slane %v232, %v342
    %v348 = vunpack.c.l.b16 %v336
    %v349 = vunpack.c.l.b16 %v337
    %v350 = vunpack.c.l.b16 %v338
    %v351 = vunpack.c.l.b16 %v339
    %v352 = vpack.c.b16 %v349, %v348
    %v353 = vpack.c.b16 %v351, %v350
    %v357 = vsel %vm233, %v333, 0
    %v360 = vsel %vm233, %v334, 0
    %v363 = vsel %vm233, %v335, 0
    %365 = vmatprep.subr.bf16.mxu0 0
    %366 = vmatpush1.bf16.msra.mxu0 %v352
    %367 = vmatprep.subr.bf16.mxu0 0
    %368 = vmatpush1.bf16.msra.mxu0 %v353
    %369 = vmatprep.subr.bf16.mxu0 0
    %370 = vmatpush1.bf16.msra.mxu0 0
    %371 = vmatprep.subr.bf16.mxu0 0
    %372 = vmatpush1.bf16.msra.mxu0 0
    %373 = vmatprep.subr.bf16.mxu0 0
    %374 = vmatpush1.bf16.msra.mxu0 0
    %375 = vmatprep.subr.bf16.mxu0 0
    %376 = vmatpush1.bf16.msra.mxu0 0
    %377 = vmatprep.subr.bf16.mxu0 0
    %378 = vmatpush1.bf16.msra.mxu0 0
    %379 = vmatprep.subr.bf16.mxu0 0
    %380 = vmatpush1.bf16.msra.mxu0 0
    %381 = vmatprep.subr.bf16.mxu0 0
    %382 = vmatpush1.bf16.msra.mxu0 0
    %383 = vmatprep.subr.bf16.mxu0 0
    %384 = vmatpush1.bf16.msra.mxu0 0
    %385 = vmatprep.subr.bf16.mxu0 0
    %386 = vmatpush1.bf16.msra.mxu0 0
    %387 = vmatprep.subr.bf16.mxu0 0
    %388 = vmatpush1.bf16.msra.mxu0 0
    %389 = vmatprep.subr.bf16.mxu0 0
    %390 = vmatpush1.bf16.msra.mxu0 0
    %391 = vmatprep.subr.bf16.mxu0 0
    %392 = vmatpush1.bf16.msra.mxu0 0
    %393 = vmatprep.subr.bf16.mxu0 0
    %394 = vmatpush1.bf16.msra.mxu0 0
    %395 = vmatprep.subr.bf16.mxu0 0
    %396 = vmatpush1.bf16.msra.mxu0 0
    %397 = vmatprep.mubr.bf16.mxu0 0
    %398 = vmatmul.mubr.bf16.gmra.mrb[0].mxu0 %v357
    %v399 = vpop.f32.mrb[0].mxu0
    %v400 = vadd.f32 %v343, %v399
    %v401 = vpop.f32.mrb[0].mxu0
    %v402 = vpop.f32.mrb[0].mxu0
    %v403 = vadd.f32 %v343, %v402
    %v404 = vpop.f32.mrb[0].mxu0
    %405 = vmatprep.mubr.bf16.mxu0 0
    %406 = vmatmul.mubr.bf16.gmra.mrb[0].mxu0 %v360
    %v407 = vpop.f32.mrb[0].mxu0
    %v408 = vadd.f32 %v343, %v407
    %v409 = vpop.f32.mrb[0].mxu0
    %v410 = vpop.f32.mrb[0].mxu0
    %v411 = vadd.f32 %v343, %v410
    %v412 = vpop.f32.mrb[0].mxu0
    %413 = vmatprep.mubr.bf16.mxu0 0
    %414 = vmatmul.mubr.bf16.gmra.mrb[0].mxu0 %v363
    %v415 = vpop.f32.mrb[0].mxu0
    %v416 = vadd.f32 %v343, %v415
    %v417 = vpop.f32.mrb[0].mxu0
    %v418 = vpop.f32.mrb[0].mxu0
    %v419 = vadd.f32 %v343, %v418
    %v420 = vpop.f32.mrb[0].mxu0
    %421 = vdwg.mxu0
    %v422 = vpack.c.bf16 %v403, %v400
    %v423 = vpack.c.bf16 %v411, %v408
    %v424 = vpack.c.bf16 %v419, %v416
    %428 = vrot.lane.b32.xlu0 %v422, 120
    %v429 = vpop.permute.xlu0 %428
    %430 = vrot.lane.b32.xlu0 %v423, 120
    %v431 = vpop.permute.xlu0 %430
    %432 = vrot.lane.b32.xlu0 %v424, 120
    %v433 = vpop.permute.xlu0 %432
    %434 = vrot.lane.b32.xlu0 %v422, 112
    %v435 = vpop.permute.xlu0 %434
    %436 = vrot.lane.b32.xlu0 %v423, 112
    %v437 = vpop.permute.xlu0 %436
    %438 = vrot.lane.b32.xlu0 %v424, 112
    %v439 = vpop.permute.xlu0 %438
    %440 = vrot.lane.b32.xlu0 %v422, 104
    %v441 = vpop.permute.xlu0 %440
    %442 = vrot.lane.b32.xlu0 %v423, 104
    %v443 = vpop.permute.xlu0 %442
    %444 = vrot.lane.b32.xlu0 %v424, 104
    %v445 = vpop.permute.xlu0 %444
    %446 = vrot.lane.b32.xlu0 %v422, 96
    %v447 = vpop.permute.xlu0 %446
    %448 = vrot.lane.b32.xlu0 %v423, 96
    %v449 = vpop.permute.xlu0 %448
    %450 = vrot.lane.b32.xlu0 %v424, 96
    %v451 = vpop.permute.xlu0 %450
    %vm452 = vcmask 64512
    %v454 = vsel %vm452, %v422, 0
    %v457 = vsel %vm452, %v423, 0
    %v460 = vsel %vm452, %v424, 0
    %v463 = vsel %vm452, %v447, 0
    %v466 = vsel %vm452, %v449, 0
    %v469 = vsel %vm452, %v451, 0
    %471 = vmatprep.subr.bf16.mxu0 0
    %472 = vmatpush1.bf16.xpose.msra.mxu0 %v463
    %473 = vmatprep.subr.bf16.mxu0 0
    %474 = vmatpush1.bf16.xpose.msra.mxu0 %v466
    %475 = vmatprep.subr.bf16.mxu0 0
    %476 = vmatpush1.bf16.xpose.msra.mxu0 %v469
    %477 = vmatprep.subr.bf16.mxu0 0
    %478 = vmatpush1.bf16.xpose.msra.mxu0 0
    %479 = vmatprep.subr.bf16.mxu0 0
    %480 = vmatpush1.bf16.xpose.msra.mxu0 0
    %481 = vmatprep.subr.bf16.mxu0 0
    %482 = vmatpush1.bf16.xpose.msra.mxu0 0
    %483 = vmatprep.subr.bf16.mxu0 0
    %484 = vmatpush1.bf16.xpose.msra.mxu0 0
    %485 = vmatprep.subr.bf16.mxu0 0
    %486 = vmatpush1.bf16.xpose.msra.mxu0 0
    %487 = vmatprep.subr.bf16.mxu0 0
    %488 = vmatpush1.bf16.xpose.msra.mxu0 0
    %489 = vmatprep.subr.bf16.mxu0 0
    %490 = vmatpush1.bf16.xpose.msra.mxu0 0
    %491 = vmatprep.subr.bf16.mxu0 0
    %492 = vmatpush1.bf16.xpose.msra.mxu0 0
    %493 = vmatprep.subr.bf16.mxu0 0
    %494 = vmatpush1.bf16.xpose.msra.mxu0 0
    %495 = vmatprep.subr.bf16.mxu0 0
    %496 = vmatpush1.bf16.xpose.msra.mxu0 0
    %497 = vmatprep.subr.bf16.mxu0 0
    %498 = vmatpush1.bf16.xpose.msra.mxu0 0
    %499 = vmatprep.subr.bf16.mxu0 0
    %500 = vmatpush1.bf16.xpose.msra.mxu0 0
    %501 = vmatprep.subr.bf16.mxu0 0
    %502 = vmatpush1.bf16.xpose.msra.mxu0 0
    %503 = vmatprep.mubr.bf16.mxu0 0
    %504 = vmatmul.mubr.bf16.gmra.mrb[0].mxu0 %v454
    %v505 = vpop.f32.mrb[0].mxu0
    %v506 = vadd.f32 0.0, %v505
    %v507 = vpop.f32.mrb[0].mxu0
    %v508 = vpop.f32.mrb[0].mxu0
    %v509 = vadd.f32 0.0, %v508
    %v510 = vpop.f32.mrb[0].mxu0
    %511 = vmatprep.mubr.bf16.mxu0 0
    %512 = vmatmul.mubr.bf16.gmra.mrb[0].mxu0 %v457
    %v513 = vpop.f32.mrb[0].mxu0
    %v514 = vadd.f32 0.0, %v513
    %v515 = vpop.f32.mrb[0].mxu0
    %v516 = vpop.f32.mrb[0].mxu0
    %v517 = vadd.f32 0.0, %v516
    %v518 = vpop.f32.mrb[0].mxu0
    %519 = vmatprep.mubr.bf16.mxu0 0
    %520 = vmatmul.mubr.bf16.gmra.mrb[0].mxu0 %v460
    %v521 = vpop.f32.mrb[0].mxu0
    %v522 = vadd.f32 0.0, %v521
    %v523 = vpop.f32.mrb[0].mxu0
    %v524 = vpop.f32.mrb[0].mxu0
    %v525 = vadd.f32 0.0, %v524
    %v526 = vpop.f32.mrb[0].mxu0
    %527 = vdwg.mxu0
    %528 = vrot.lane.b32.xlu0 %v429, 96
    %v529 = vpop.permute.xlu0 %528
    %530 = vrot.lane.b32.xlu0 %v431, 96
    %v531 = vpop.permute.xlu0 %530
    %532 = vrot.lane.b32.xlu0 %v433, 96
    %v533 = vpop.permute.xlu0 %532
    %v535 = vsel %vm452, %v429, 0
    %v538 = vsel %vm452, %v431, 0
    %v541 = vsel %vm452, %v433, 0
    %v544 = vsel %vm452, %v529, 0
    %v547 = vsel %vm452, %v531, 0
    %v550 = vsel %vm452, %v533, 0
    %552 = vmatprep.subr.bf16.mxu0 0
    %553 = vmatpush1.bf16.xpose.msra.mxu0 %v544
    %554 = vmatprep.subr.bf16.mxu0 0
    %555 = vmatpush1.bf16.xpose.msra.mxu0 %v547
    %556 = vmatprep.subr.bf16.mxu0 0
    %557 = vmatpush1.bf16.xpose.msra.mxu0 %v550
    %558 = vmatprep.subr.bf16.mxu0 0
    %559 = vmatpush1.bf16.xpose.msra.mxu0 0
    %560 = vmatprep.subr.bf16.mxu0 0
    %561 = vmatpush1.bf16.xpose.msra.mxu0 0
    %562 = vmatprep.subr.bf16.mxu0 0
    %563 = vmatpush1.bf16.xpose.msra.mxu0 0
    %564 = vmatprep.subr.bf16.mxu0 0
    %565 = vmatpush1.bf16.xpose.msra.mxu0 0
    %566 = vmatprep.subr.bf16.mxu0 0
    %567 = vmatpush1.bf16.xpose.msra.mxu0 0
    %568 = vmatprep.subr.bf16.mxu0 0
    %569 = vmatpush1.bf16.xpose.msra.mxu0 0
    %570 = vmatprep.subr.bf16.mxu0 0
    %571 = vmatpush1.bf16.xpose.msra.mxu0 0
    %572 = vmatprep.subr.bf16.mxu0 0
    %573 = vmatpush1.bf16.xpose.msra.mxu0 0
    %574 = vmatprep.subr.bf16.mxu0 0
    %575 = vmatpush1.bf16.xpose.msra.mxu0 0
    %576 = vmatprep.subr.bf16.mxu0 0
    %577 = vmatpush1.bf16.xpose.msra.mxu0 0
    %578 = vmatprep.subr.bf16.mxu0 0
    %579 = vmatpush1.bf16.xpose.msra.mxu0 0
    %580 = vmatprep.subr.bf16.mxu0 0
    %581 = vmatpush1.bf16.xpose.msra.mxu0 0
    %582 = vmatprep.subr.bf16.mxu0 0
    %583 = vmatpush1.bf16.xpose.msra.mxu0 0
    %584 = vmatprep.mubr.bf16.mxu0 0
    %585 = vmatmul.mubr.bf16.gmra.mrb[0].mxu0 %v535
    %v586 = vpop.f32.mrb[0].mxu0
    %v587 = vadd.f32 0.0, %v586
    %v588 = vpop.f32.mrb[0].mxu0
    %v589 = vpop.f32.mrb[0].mxu0
    %v590 = vadd.f32 0.0, %v589
    %v591 = vpop.f32.mrb[0].mxu0
    %592 = vmatprep.mubr.bf16.mxu0 0
    %593 = vmatmul.mubr.bf16.gmra.mrb[0].mxu0 %v538
    %v594 = vpop.f32.mrb[0].mxu0
    %v595 = vadd.f32 0.0, %v594
    %v596 = vpop.f32.mrb[0].mxu0
    %v597 = vpop.f32.mrb[0].mxu0
    %v598 = vadd.f32 0.0, %v597
    %v599 = vpop.f32.mrb[0].mxu0
    %600 = vmatprep.mubr.bf16.mxu0 0
    %601 = vmatmul.mubr.bf16.gmra.mrb[0].mxu0 %v541
    %v602 = vpop.f32.mrb[0].mxu0
    %v603 = vadd.f32 0.0, %v602
    %v604 = vpop.f32.mrb[0].mxu0
    %v605 = vpop.f32.mrb[0].mxu0
    %v606 = vadd.f32 0.0, %v605
    %v607 = vpop.f32.mrb[0].mxu0
    %608 = vdwg.mxu0
    %609 = vrot.lane.b32.xlu0 %v435, 96
    %v610 = vpop.permute.xlu0 %609
    %611 = vrot.lane.b32.xlu0 %v437, 96
    %v612 = vpop.permute.xlu0 %611
    %613 = vrot.lane.b32.xlu0 %v439, 96
    %v614 = vpop.permute.xlu0 %613
    %v616 = vsel %vm452, %v435, 0
    %v619 = vsel %vm452, %v437, 0
    %v622 = vsel %vm452, %v439, 0
    %v625 = vsel %vm452, %v610, 0
    %v628 = vsel %vm452, %v612, 0
    %v631 = vsel %vm452, %v614, 0
    %633 = vmatprep.subr.bf16.mxu0 0
    %634 = vmatpush1.bf16.xpose.msra.mxu0 %v625
    %635 = vmatprep.subr.bf16.mxu0 0
    %636 = vmatpush1.bf16.xpose.msra.mxu0 %v628
    %637 = vmatprep.subr.bf16.mxu0 0
    %638 = vmatpush1.bf16.xpose.msra.mxu0 %v631
    %639 = vmatprep.subr.bf16.mxu0 0
    %640 = vmatpush1.bf16.xpose.msra.mxu0 0
    %641 = vmatprep.subr.bf16.mxu0 0
    %642 = vmatpush1.bf16.xpose.msra.mxu0 0
    %643 = vmatprep.subr.bf16.mxu0 0
    %644 = vmatpush1.bf16.xpose.msra.mxu0 0
    %645 = vmatprep.subr.bf16.mxu0 0
    %646 = vmatpush1.bf16.xpose.msra.mxu0 0
    %647 = vmatprep.subr.bf16.mxu0 0
    %648 = vmatpush1.bf16.xpose.msra.mxu0 0
    %649 = vmatprep.subr.bf16.mxu0 0
    %650 = vmatpush1.bf16.xpose.msra.mxu0 0
    %651 = vmatprep.subr.bf16.mxu0 0
    %652 = vmatpush1.bf16.xpose.msra.mxu0 0
    %653 = vmatprep.subr.bf16.mxu0 0
    %654 = vmatpush1.bf16.xpose.msra.mxu0 0
    %655 = vmatprep.subr.bf16.mxu0 0
    %656 = vmatpush1.bf16.xpose.msra.mxu0 0
    %657 = vmatprep.subr.bf16.mxu0 0
    %658 = vmatpush1.bf16.xpose.msra.mxu0 0
    %659 = vmatprep.subr.bf16.mxu0 0
    %660 = vmatpush1.bf16.xpose.msra.mxu0 0
    %661 = vmatprep.subr.bf16.mxu0 0
    %662 = vmatpush1.bf16.xpose.msra.mxu0 0
    %663 = vmatprep.subr.bf16.mxu0 0
    %664 = vmatpush1.bf16.xpose.msra.mxu0 0
    %665 = vmatprep.mubr.bf16.mxu0 0
    %666 = vmatmul.mubr.bf16.gmra.mrb[0].mxu0 %v616
    %v667 = vpop.f32.mrb[0].mxu0
    %v668 = vadd.f32 0.0, %v667
    %v669 = vpop.f32.mrb[0].mxu0
    %v670 = vpop.f32.mrb[0].mxu0
    %v671 = vadd.f32 0.0, %v670
    %v672 = vpop.f32.mrb[0].mxu0
    %673 = vmatprep.mubr.bf16.mxu0 0
    %674 = vmatmul.mubr.bf16.gmra.mrb[0].mxu0 %v619
    %v675 = vpop.f32.mrb[0].mxu0
    %v676 = vadd.f32 0.0, %v675
    %v677 = vpop.f32.mrb[0].mxu0
    %v678 = vpop.f32.mrb[0].mxu0
    %v679 = vadd.f32 0.0, %v678
    %v680 = vpop.f32.mrb[0].mxu0
    %681 = vmatprep.mubr.bf16.mxu0 0
    %682 = vmatmul.mubr.bf16.gmra.mrb[0].mxu0 %v622
    %v683 = vpop.f32.mrb[0].mxu0
    %v684 = vadd.f32 0.0, %v683
    %v685 = vpop.f32.mrb[0].mxu0
    %v686 = vpop.f32.mrb[0].mxu0
    %v687 = vadd.f32 0.0, %v686
    %v688 = vpop.f32.mrb[0].mxu0
    %689 = vdwg.mxu0
    %690 = vrot.lane.b32.xlu0 %v441, 96
    %v691 = vpop.permute.xlu0 %690
    %692 = vrot.lane.b32.xlu0 %v443, 96
    %v693 = vpop.permute.xlu0 %692
    %694 = vrot.lane.b32.xlu0 %v445, 96
    %v695 = vpop.permute.xlu0 %694
    %v697 = vsel %vm452, %v441, 0
    %v700 = vsel %vm452, %v443, 0
    %v703 = vsel %vm452, %v445, 0
    %v706 = vsel %vm452, %v691, 0
    %v709 = vsel %vm452, %v693, 0
    %v712 = vsel %vm452, %v695, 0
    %714 = vmatprep.subr.bf16.mxu0 0
    %715 = vmatpush1.bf16.xpose.msra.mxu0 %v706
    %716 = vmatprep.subr.bf16.mxu0 0
    %717 = vmatpush1.bf16.xpose.msra.mxu0 %v709
    %718 = vmatprep.subr.bf16.mxu0 0
    %719 = vmatpush1.bf16.xpose.msra.mxu0 %v712
    %720 = vmatprep.subr.bf16.mxu0 0
    %721 = vmatpush1.bf16.xpose.msra.mxu0 0
    %722 = vmatprep.subr.bf16.mxu0 0
    %723 = vmatpush1.bf16.xpose.msra.mxu0 0
    %724 = vmatprep.subr.bf16.mxu0 0
    %725 = vmatpush1.bf16.xpose.msra.mxu0 0
    %726 = vmatprep.subr.bf16.mxu0 0
    %727 = vmatpush1.bf16.xpose.msra.mxu0 0
    %728 = vmatprep.subr.bf16.mxu0 0
    %729 = vmatpush1.bf16.xpose.msra.mxu0 0
    %730 = vmatprep.subr.bf16.mxu0 0
    %731 = vmatpush1.bf16.xpose.msra.mxu0 0
    %732 = vmatprep.subr.bf16.mxu0 0
    %733 = vmatpush1.bf16.xpose.msra.mxu0 0
    %734 = vmatprep.subr.bf16.mxu0 0
    %735 = vmatpush1.bf16.xpose.msra.mxu0 0
    %736 = vmatprep.subr.bf16.mxu0 0
    %737 = vmatpush1.bf16.xpose.msra.mxu0 0
    %738 = vmatprep.subr.bf16.mxu0 0
    %739 = vmatpush1.bf16.xpose.msra.mxu0 0
    %740 = vmatprep.subr.bf16.mxu0 0
    %741 = vmatpush1.bf16.xpose.msra.mxu0 0
    %742 = vmatprep.subr.bf16.mxu0 0
    %743 = vmatpush1.bf16.xpose.msra.mxu0 0
    %744 = vmatprep.subr.bf16.mxu0 0
    %745 = vmatpush1.bf16.xpose.msra.mxu0 0
    %746 = vmatprep.mubr.bf16.mxu0 0
    %747 = vmatmul.mubr.bf16.gmra.mrb[0].mxu0 %v697
    %v748 = vpop.f32.mrb[0].mxu0
    %v749 = vadd.f32 0.0, %v748
    %v750 = vpop.f32.mrb[0].mxu0
    %v751 = vpop.f32.mrb[0].mxu0
    %v752 = vadd.f32 0.0, %v751
    %v753 = vpop.f32.mrb[0].mxu0
    %754 = vmatprep.mubr.bf16.mxu0 0
    %755 = vmatmul.mubr.bf16.gmra.mrb[0].mxu0 %v700
    %v756 = vpop.f32.mrb[0].mxu0
    %v757 = vadd.f32 0.0, %v756
    %v758 = vpop.f32.mrb[0].mxu0
    %v759 = vpop.f32.mrb[0].mxu0
    %v760 = vadd.f32 0.0, %v759
    %v761 = vpop.f32.mrb[0].mxu0
    %762 = vmatprep.mubr.bf16.mxu0 0
    %763 = vmatmul.mubr.bf16.gmra.mrb[0].mxu0 %v703
    %v764 = vpop.f32.mrb[0].mxu0
    %v765 = vadd.f32 0.0, %v764
    %v766 = vpop.f32.mrb[0].mxu0
    %v767 = vpop.f32.mrb[0].mxu0
    %v768 = vadd.f32 0.0, %v767
    %v769 = vpop.f32.mrb[0].mxu0
    %770 = vdwg.mxu0
    %v771 = vmul.f32 %v506, 0.35355338
    %v772 = vmul.f32 %v509, 0.35355338
    %v773 = vmul.f32 %v514, 0.35355338
    %v774 = vmul.f32 %v517, 0.35355338
    %v775 = vmul.f32 %v522, 0.35355338
    %v776 = vmul.f32 %v525, 0.35355338
    %v777 = vmul.f32 %v587, 0.35355338
    %v778 = vmul.f32 %v590, 0.35355338
    %v779 = vmul.f32 %v595, 0.35355338
    %v780 = vmul.f32 %v598, 0.35355338
    %v781 = vmul.f32 %v603, 0.35355338
    %v782 = vmul.f32 %v606, 0.35355338
    %v783 = vmul.f32 %v668, 0.35355338
    %v784 = vmul.f32 %v671, 0.35355338
    %v785 = vmul.f32 %v676, 0.35355338
    %v786 = vmul.f32 %v679, 0.35355338
    %v787 = vmul.f32 %v684, 0.35355338
    %v788 = vmul.f32 %v687, 0.35355338
    %v789 = vmul.f32 %v749, 0.35355338
    %v790 = vmul.f32 %v752, 0.35355338
    %v791 = vmul.f32 %v757, 0.35355338
    %v792 = vmul.f32 %v760, 0.35355338
    %v793 = vmul.f32 %v765, 0.35355338
    %v794 = vmul.f32 %v768, 0.35355338
    %v795 = vadd.f32 %v771, %v226
    %v796 = vadd.f32 %v772, %v227
    %v797 = vadd.f32 %v773, %v228
    %v798 = vadd.f32 %v774, %v229
    %v799 = vadd.f32 %v775, %v230
    %v800 = vadd.f32 %v776, %v231
    %v801 = vadd.f32 %v777, %v226
    %v802 = vadd.f32 %v778, %v227
    %v803 = vadd.f32 %v779, %v228
    %v804 = vadd.f32 %v780, %v229
    %v805 = vadd.f32 %v781, %v230
    %v806 = vadd.f32 %v782, %v231
    %v807 = vadd.f32 %v783, %v226
    %v808 = vadd.f32 %v784, %v227
    %v809 = vadd.f32 %v785, %v228
    %v810 = vadd.f32 %v786, %v229
    %v811 = vadd.f32 %v787, %v230
    %v812 = vadd.f32 %v788, %v231
    %v813 = vadd.f32 %v789, %v226
    %v814 = vadd.f32 %v790, %v227
    %v815 = vadd.f32 %v791, %v228
    %v816 = vadd.f32 %v792, %v229
    %v817 = vadd.f32 %v793, %v230
    %v818 = vadd.f32 %v794, %v231
    %vm819 = vcmask 392192
    %v820 = vsel %vm819, %v795, -inf
    %821 = vmax.xlane.f32.xlu0 %v820
    %v822 = vpop.xlane.xlu0 %821
    %v823 = vsel %vm819, %v796, -inf
    %824 = vmax.xlane.f32.xlu0 %v823
    %v825 = vpop.xlane.xlu0 %824
    %v826 = vsel %vm819, %v797, -inf
    %827 = vmax.xlane.f32.xlu0 %v826
    %v828 = vpop.xlane.xlu0 %827
    %v829 = vsel %vm819, %v798, -inf
    %830 = vmax.xlane.f32.xlu0 %v829
    %v831 = vpop.xlane.xlu0 %830
    %v832 = vsel %vm819, %v799, -inf
    %833 = vmax.xlane.f32.xlu0 %v832
    %v834 = vpop.xlane.xlu0 %833
    %v835 = vsel %vm819, %v800, -inf
    %836 = vmax.xlane.f32.xlu0 %v835
    %v837 = vpop.xlane.xlu0 %836
    %v838 = vsel %vm819, %v801, -inf
    %839 = vmax.xlane.f32.xlu0 %v838
    %v840 = vpop.xlane.xlu0 %839
    %v841 = vsel %vm819, %v802, -inf
    %842 = vmax.xlane.f32.xlu0 %v841
    %v843 = vpop.xlane.xlu0 %842
    %v844 = vsel %vm819, %v803, -inf
    %845 = vmax.xlane.f32.xlu0 %v844
    %v846 = vpop.xlane.xlu0 %845
    %v847 = vsel %vm819, %v804, -inf
    %848 = vmax.xlane.f32.xlu0 %v847
    %v849 = vpop.xlane.xlu0 %848
    %v850 = vsel %vm819, %v805, -inf
    %851 = vmax.xlane.f32.xlu0 %v850
    %v852 = vpop.xlane.xlu0 %851
    %v853 = vsel %vm819, %v806, -inf
    %854 = vmax.xlane.f32.xlu0 %v853
    %v855 = vpop.xlane.xlu0 %854
    %v856 = vsel %vm819, %v807, -inf
    %857 = vmax.xlane.f32.xlu0 %v856
    %v858 = vpop.xlane.xlu0 %857
    %v859 = vsel %vm819, %v808, -inf
    %860 = vmax.xlane.f32.xlu0 %v859
    %v861 = vpop.xlane.xlu0 %860
    %v862 = vsel %vm819, %v809, -inf
    %863 = vmax.xlane.f32.xlu0 %v862
    %v864 = vpop.xlane.xlu0 %863
    %v865 = vsel %vm819, %v810, -inf
    %866 = vmax.xlane.f32.xlu0 %v865
    %v867 = vpop.xlane.xlu0 %866
    %v868 = vsel %vm819, %v811, -inf
    %869 = vmax.xlane.f32.xlu0 %v868
    %v870 = vpop.xlane.xlu0 %869
    %v871 = vsel %vm819, %v812, -inf
    %872 = vmax.xlane.f32.xlu0 %v871
    %v873 = vpop.xlane.xlu0 %872
    %v874 = vsel %vm819, %v813, -inf
    %875 = vmax.xlane.f32.xlu0 %v874
    %v876 = vpop.xlane.xlu0 %875
    %v877 = vsel %vm819, %v814, -inf
    %878 = vmax.xlane.f32.xlu0 %v877
    %v879 = vpop.xlane.xlu0 %878
    %v880 = vsel %vm819, %v815, -inf
    %881 = vmax.xlane.f32.xlu0 %v880
    %v882 = vpop.xlane.xlu0 %881
    %v883 = vsel %vm819, %v816, -inf
    %884 = vmax.xlane.f32.xlu0 %v883
    %v885 = vpop.xlane.xlu0 %884
    %v886 = vsel %vm819, %v817, -inf
    %887 = vmax.xlane.f32.xlu0 %v886
    %v888 = vpop.xlane.xlu0 %887
    %v889 = vsel %vm819, %v818, -inf
    %890 = vmax.xlane.f32.xlu0 %v889
    %v891 = vpop.xlane.xlu0 %890
    %v892 = vsub.f32 %v795, %v822
    %v893 = vsub.f32 %v796, %v825
    %v894 = vsub.f32 %v797, %v828
    %v895 = vsub.f32 %v798, %v831
    %v896 = vsub.f32 %v799, %v834
    %v897 = vsub.f32 %v800, %v837
    %v898 = vsub.f32 %v801, %v840
    %v899 = vsub.f32 %v802, %v843
    %v900 = vsub.f32 %v803, %v846
    %v901 = vsub.f32 %v804, %v849
    %v902 = vsub.f32 %v805, %v852
    %v903 = vsub.f32 %v806, %v855
    %v904 = vsub.f32 %v807, %v858
    %v905 = vsub.f32 %v808, %v861
    %v906 = vsub.f32 %v809, %v864
    %v907 = vsub.f32 %v810, %v867
    %v908 = vsub.f32 %v811, %v870
    %v909 = vsub.f32 %v812, %v873
    %v910 = vsub.f32 %v813, %v876
    %v911 = vsub.f32 %v814, %v879
    %v912 = vsub.f32 %v815, %v882
    %v913 = vsub.f32 %v816, %v885
    %v914 = vsub.f32 %v817, %v888
    %v915 = vsub.f32 %v818, %v891
    %v916 = vmul.f32 %v892, 1.442695
    %v917 = vpow.pop %v916
    %v918 = vmul.f32 %v893, 1.442695
    %v919 = vpow.pop %v918
    %v920 = vmul.f32 %v894, 1.442695
    %v921 = vpow.pop %v920
    %v922 = vmul.f32 %v895, 1.442695
    %v923 = vpow.pop %v922
    %v924 = vmul.f32 %v896, 1.442695
    %v925 = vpow.pop %v924
    %v926 = vmul.f32 %v897, 1.442695
    %v927 = vpow.pop %v926
    %v928 = vmul.f32 %v898, 1.442695
    %v929 = vpow.pop %v928
    %v930 = vmul.f32 %v899, 1.442695
    %v931 = vpow.pop %v930
    %v932 = vmul.f32 %v900, 1.442695
    %v933 = vpow.pop %v932
    %v934 = vmul.f32 %v901, 1.442695
    %v935 = vpow.pop %v934
    %v936 = vmul.f32 %v902, 1.442695
    %v937 = vpow.pop %v936
    %v938 = vmul.f32 %v903, 1.442695
    %v939 = vpow.pop %v938
    %v940 = vmul.f32 %v904, 1.442695
    %v941 = vpow.pop %v940
    %v942 = vmul.f32 %v905, 1.442695
    %v943 = vpow.pop %v942
    %v944 = vmul.f32 %v906, 1.442695
    %v945 = vpow.pop %v944
    %v946 = vmul.f32 %v907, 1.442695
    %v947 = vpow.pop %v946
    %v948 = vmul.f32 %v908, 1.442695
    %v949 = vpow.pop %v948
    %v950 = vmul.f32 %v909, 1.442695
    %v951 = vpow.pop %v950
    %v952 = vmul.f32 %v910, 1.442695
    %v953 = vpow.pop %v952
    %v954 = vmul.f32 %v911, 1.442695
    %v955 = vpow.pop %v954
    %v956 = vmul.f32 %v912, 1.442695
    %v957 = vpow.pop %v956
    %v958 = vmul.f32 %v913, 1.442695
    %v959 = vpow.pop %v958
    %v960 = vmul.f32 %v914, 1.442695
    %v961 = vpow.pop %v960
    %v962 = vmul.f32 %v915, 1.442695
    %v963 = vpow.pop %v962
    %v964 = vsel %vm819, %v917, 0.0
    %965 = vadd.xlane.f32.xlu0 %v964
    %v966 = vpop.xlane.xlu0 %965
    %v967 = vsel %vm819, %v919, 0.0
    %968 = vadd.xlane.f32.xlu0 %v967
    %v969 = vpop.xlane.xlu0 %968
    %v970 = vsel %vm819, %v921, 0.0
    %971 = vadd.xlane.f32.xlu0 %v970
    %v972 = vpop.xlane.xlu0 %971
    %v973 = vsel %vm819, %v923, 0.0
    %974 = vadd.xlane.f32.xlu0 %v973
    %v975 = vpop.xlane.xlu0 %974
    %v976 = vsel %vm819, %v925, 0.0
    %977 = vadd.xlane.f32.xlu0 %v976
    %v978 = vpop.xlane.xlu0 %977
    %v979 = vsel %vm819, %v927, 0.0
    %980 = vadd.xlane.f32.xlu0 %v979
    %v981 = vpop.xlane.xlu0 %980
    %v982 = vsel %vm819, %v929, 0.0
    %983 = vadd.xlane.f32.xlu0 %v982
    %v984 = vpop.xlane.xlu0 %983
    %v985 = vsel %vm819, %v931, 0.0
    %986 = vadd.xlane.f32.xlu0 %v985
    %v987 = vpop.xlane.xlu0 %986
    %v988 = vsel %vm819, %v933, 0.0
    %989 = vadd.xlane.f32.xlu0 %v988
    %v990 = vpop.xlane.xlu0 %989
    %v991 = vsel %vm819, %v935, 0.0
    %992 = vadd.xlane.f32.xlu0 %v991
    %v993 = vpop.xlane.xlu0 %992
    %v994 = vsel %vm819, %v937, 0.0
    %995 = vadd.xlane.f32.xlu0 %v994
    %v996 = vpop.xlane.xlu0 %995
    %v997 = vsel %vm819, %v939, 0.0
    %998 = vadd.xlane.f32.xlu0 %v997
    %v999 = vpop.xlane.xlu0 %998
    %v1000 = vsel %vm819, %v941, 0.0
    %1001 = vadd.xlane.f32.xlu0 %v1000
    %v1002 = vpop.xlane.xlu0 %1001
    %v1003 = vsel %vm819, %v943, 0.0
    %1004 = vadd.xlane.f32.xlu0 %v1003
    %v1005 = vpop.xlane.xlu0 %1004
    %v1006 = vsel %vm819, %v945, 0.0
    %1007 = vadd.xlane.f32.xlu0 %v1006
    %v1008 = vpop.xlane.xlu0 %1007
    %v1009 = vsel %vm819, %v947, 0.0
    %1010 = vadd.xlane.f32.xlu0 %v1009
    %v1011 = vpop.xlane.xlu0 %1010
    %v1012 = vsel %vm819, %v949, 0.0
    %1013 = vadd.xlane.f32.xlu0 %v1012
    %v1014 = vpop.xlane.xlu0 %1013
    %v1015 = vsel %vm819, %v951, 0.0
    %1016 = vadd.xlane.f32.xlu0 %v1015
    %v1017 = vpop.xlane.xlu0 %1016
    %v1018 = vsel %vm819, %v953, 0.0
    %1019 = vadd.xlane.f32.xlu0 %v1018
    %v1020 = vpop.xlane.xlu0 %1019
    %v1021 = vsel %vm819, %v955, 0.0
    %1022 = vadd.xlane.f32.xlu0 %v1021
    %v1023 = vpop.xlane.xlu0 %1022
    %v1024 = vsel %vm819, %v957, 0.0
    %1025 = vadd.xlane.f32.xlu0 %v1024
    %v1026 = vpop.xlane.xlu0 %1025
    %v1027 = vsel %vm819, %v959, 0.0
    %1028 = vadd.xlane.f32.xlu0 %v1027
    %v1029 = vpop.xlane.xlu0 %1028
    %v1030 = vsel %vm819, %v961, 0.0
    %1031 = vadd.xlane.f32.xlu0 %v1030
    %v1032 = vpop.xlane.xlu0 %1031
    %v1033 = vsel %vm819, %v963, 0.0
    %1034 = vadd.xlane.f32.xlu0 %v1033
    %v1035 = vpop.xlane.xlu0 %1034
    %v1036 = vrcp.pop %v966
    %v1037 = vrcp.pop %v969
    %v1038 = vrcp.pop %v972
    %v1039 = vrcp.pop %v975
    %v1040 = vrcp.pop %v978
    %v1041 = vrcp.pop %v981
    %v1042 = vrcp.pop %v984
    %v1043 = vrcp.pop %v987
    %v1044 = vrcp.pop %v990
    %v1045 = vrcp.pop %v993
    %v1046 = vrcp.pop %v996
    %v1047 = vrcp.pop %v999
    %v1048 = vrcp.pop %v1002
    %v1049 = vrcp.pop %v1005
    %v1050 = vrcp.pop %v1008
    %v1051 = vrcp.pop %v1011
    %v1052 = vrcp.pop %v1014
    %v1053 = vrcp.pop %v1017
    %v1054 = vrcp.pop %v1020
    %v1055 = vrcp.pop %v1023
    %v1056 = vrcp.pop %v1026
    %v1057 = vrcp.pop %v1029
    %v1058 = vrcp.pop %v1032
    %v1059 = vrcp.pop %v1035
    %v1060 = vmul.f32 %v917, %v1036
    %v1061 = vmul.f32 %v919, %v1037
    %v1062 = vmul.f32 %v921, %v1038
    %v1063 = vmul.f32 %v923, %v1039
    %v1064 = vmul.f32 %v925, %v1040
    %v1065 = vmul.f32 %v927, %v1041
    %v1066 = vmul.f32 %v929, %v1042
    %v1067 = vmul.f32 %v931, %v1043
    %v1068 = vmul.f32 %v933, %v1044
    %v1069 = vmul.f32 %v935, %v1045
    %v1070 = vmul.f32 %v937, %v1046
    %v1071 = vmul.f32 %v939, %v1047
    %v1072 = vmul.f32 %v941, %v1048
    %v1073 = vmul.f32 %v943, %v1049
    %v1074 = vmul.f32 %v945, %v1050
    %v1075 = vmul.f32 %v947, %v1051
    %v1076 = vmul.f32 %v949, %v1052
    %v1077 = vmul.f32 %v951, %v1053
    %v1078 = vmul.f32 %v953, %v1054
    %v1079 = vmul.f32 %v955, %v1055
    %v1080 = vmul.f32 %v957, %v1056
    %v1081 = vmul.f32 %v959, %v1057
    %v1082 = vmul.f32 %v961, %v1058
    %v1083 = vmul.f32 %v963, %v1059
    %v1084 = vpack.c.bf16 %v1061, %v1060
    %v1085 = vpack.c.bf16 %v1063, %v1062
    %v1086 = vpack.c.bf16 %v1065, %v1064
    %v1087 = vpack.c.bf16 %v1067, %v1066
    %v1088 = vpack.c.bf16 %v1069, %v1068
    %v1089 = vpack.c.bf16 %v1071, %v1070
    %v1090 = vpack.c.bf16 %v1073, %v1072
    %v1091 = vpack.c.bf16 %v1075, %v1074
    %v1092 = vpack.c.bf16 %v1077, %v1076
    %v1093 = vpack.c.bf16 %v1079, %v1078
    %v1094 = vpack.c.bf16 %v1081, %v1080
    %v1095 = vpack.c.bf16 %v1083, %v1082
    %1096 = vrot.lane.b32.xlu0 %v422, 64
    %v1097 = vpop.permute.xlu0 %1096
    %1098 = vrot.lane.b32.xlu0 %v423, 64
    %v1099 = vpop.permute.xlu0 %1098
    %1100 = vrot.lane.b32.xlu0 %v424, 64
    %v1101 = vpop.permute.xlu0 %1100
    %v1106 = vsel %vm819, %v1084, 0
    %v1109 = vsel %vm819, %v1085, 0
    %v1112 = vsel %vm819, %v1086, 0
    %1114 = vmatprep.subr.bf16.mxu0 0
    %1115 = vmatpush1.bf16.msra.mxu0 %v1097
    %1116 = vmatprep.subr.bf16.mxu0 0
    %1117 = vmatpush1.bf16.msra.mxu0 %v1099
    %1118 = vmatprep.subr.bf16.mxu0 0
    %1119 = vmatpush1.bf16.msra.mxu0 %v1101
    %1120 = vmatprep.subr.bf16.mxu0 0
    %1121 = vmatpush1.bf16.msra.mxu0 0
    %1122 = vmatprep.subr.bf16.mxu0 0
    %1123 = vmatpush1.bf16.msra.mxu0 0
    %1124 = vmatprep.subr.bf16.mxu0 0
    %1125 = vmatpush1.bf16.msra.mxu0 0
    %1126 = vmatprep.subr.bf16.mxu0 0
    %1127 = vmatpush1.bf16.msra.mxu0 0
    %1128 = vmatprep.subr.bf16.mxu0 0
    %1129 = vmatpush1.bf16.msra.mxu0 0
    %1130 = vmatprep.subr.bf16.mxu0 0
    %1131 = vmatpush1.bf16.msra.mxu0 0
    %1132 = vmatprep.subr.bf16.mxu0 0
    %1133 = vmatpush1.bf16.msra.mxu0 0
    %1134 = vmatprep.subr.bf16.mxu0 0
    %1135 = vmatpush1.bf16.msra.mxu0 0
    %1136 = vmatprep.subr.bf16.mxu0 0
    %1137 = vmatpush1.bf16.msra.mxu0 0
    %1138 = vmatprep.subr.bf16.mxu0 0
    %1139 = vmatpush1.bf16.msra.mxu0 0
    %1140 = vmatprep.subr.bf16.mxu0 0
    %1141 = vmatpush1.bf16.msra.mxu0 0
    %1142 = vmatprep.subr.bf16.mxu0 0
    %1143 = vmatpush1.bf16.msra.mxu0 0
    %1144 = vmatprep.subr.bf16.mxu0 0
    %1145 = vmatpush1.bf16.msra.mxu0 0
    %1146 = vmatprep.mubr.bf16.mxu0 0
    %1147 = vmatmul.mubr.bf16.gmra.mrb[0].mxu0 %v1106
    %v1148 = vpop.f32.mrb[0].mxu0
    %v1149 = vadd.f32 0.0, %v1148
    %v1150 = vpop.f32.mrb[0].mxu0
    %v1151 = vpop.f32.mrb[0].mxu0
    %v1152 = vadd.f32 0.0, %v1151
    %v1153 = vpop.f32.mrb[0].mxu0
    %1154 = vmatprep.mubr.bf16.mxu0 0
    %1155 = vmatmul.mubr.bf16.gmra.mrb[0].mxu0 %v1109
    %v1156 = vpop.f32.mrb[0].mxu0
    %v1157 = vadd.f32 0.0, %v1156
    %v1158 = vpop.f32.mrb[0].mxu0
    %v1159 = vpop.f32.mrb[0].mxu0
    %v1160 = vadd.f32 0.0, %v1159
    %v1161 = vpop.f32.mrb[0].mxu0
    %1162 = vmatprep.mubr.bf16.mxu0 0
    %1163 = vmatmul.mubr.bf16.gmra.mrb[0].mxu0 %v1112
    %v1164 = vpop.f32.mrb[0].mxu0
    %v1165 = vadd.f32 0.0, %v1164
    %v1166 = vpop.f32.mrb[0].mxu0
    %v1167 = vpop.f32.mrb[0].mxu0
    %v1168 = vadd.f32 0.0, %v1167
    %v1169 = vpop.f32.mrb[0].mxu0
    %1170 = vdwg.mxu0
    %1171 = vrot.lane.b32.xlu0 %v429, 64
    %v1172 = vpop.permute.xlu0 %1171
    %1173 = vrot.lane.b32.xlu0 %v431, 64
    %v1174 = vpop.permute.xlu0 %1173
    %1175 = vrot.lane.b32.xlu0 %v433, 64
    %v1176 = vpop.permute.xlu0 %1175
    %v1181 = vsel %vm819, %v1087, 0
    %v1184 = vsel %vm819, %v1088, 0
    %v1187 = vsel %vm819, %v1089, 0
    %1189 = vmatprep.subr.bf16.mxu0 0
    %1190 = vmatpush1.bf16.msra.mxu0 %v1172
    %1191 = vmatprep.subr.bf16.mxu0 0
    %1192 = vmatpush1.bf16.msra.mxu0 %v1174
    %1193 = vmatprep.subr.bf16.mxu0 0
    %1194 = vmatpush1.bf16.msra.mxu0 %v1176
    %1195 = vmatprep.subr.bf16.mxu0 0
    %1196 = vmatpush1.bf16.msra.mxu0 0
    %1197 = vmatprep.subr.bf16.mxu0 0
    %1198 = vmatpush1.bf16.msra.mxu0 0
    %1199 = vmatprep.subr.bf16.mxu0 0
    %1200 = vmatpush1.bf16.msra.mxu0 0
    %1201 = vmatprep.subr.bf16.mxu0 0
    %1202 = vmatpush1.bf16.msra.mxu0 0
    %1203 = vmatprep.subr.bf16.mxu0 0
    %1204 = vmatpush1.bf16.msra.mxu0 0
    %1205 = vmatprep.subr.bf16.mxu0 0
    %1206 = vmatpush1.bf16.msra.mxu0 0
    %1207 = vmatprep.subr.bf16.mxu0 0
    %1208 = vmatpush1.bf16.msra.mxu0 0
    %1209 = vmatprep.subr.bf16.mxu0 0
    %1210 = vmatpush1.bf16.msra.mxu0 0
    %1211 = vmatprep.subr.bf16.mxu0 0
    %1212 = vmatpush1.bf16.msra.mxu0 0
    %1213 = vmatprep.subr.bf16.mxu0 0
    %1214 = vmatpush1.bf16.msra.mxu0 0
    %1215 = vmatprep.subr.bf16.mxu0 0
    %1216 = vmatpush1.bf16.msra.mxu0 0
    %1217 = vmatprep.subr.bf16.mxu0 0
    %1218 = vmatpush1.bf16.msra.mxu0 0
    %1219 = vmatprep.subr.bf16.mxu0 0
    %1220 = vmatpush1.bf16.msra.mxu0 0
    %1221 = vmatprep.mubr.bf16.mxu0 0
    %1222 = vmatmul.mubr.bf16.gmra.mrb[0].mxu0 %v1181
    %v1223 = vpop.f32.mrb[0].mxu0
    %v1224 = vadd.f32 0.0, %v1223
    %v1225 = vpop.f32.mrb[0].mxu0
    %v1226 = vpop.f32.mrb[0].mxu0
    %v1227 = vadd.f32 0.0, %v1226
    %v1228 = vpop.f32.mrb[0].mxu0
    %1229 = vmatprep.mubr.bf16.mxu0 0
    %1230 = vmatmul.mubr.bf16.gmra.mrb[0].mxu0 %v1184
    %v1231 = vpop.f32.mrb[0].mxu0
    %v1232 = vadd.f32 0.0, %v1231
    %v1233 = vpop.f32.mrb[0].mxu0
    %v1234 = vpop.f32.mrb[0].mxu0
    %v1235 = vadd.f32 0.0, %v1234
    %v1236 = vpop.f32.mrb[0].mxu0
    %1237 = vmatprep.mubr.bf16.mxu0 0
    %1238 = vmatmul.mubr.bf16.gmra.mrb[0].mxu0 %v1187
    %v1239 = vpop.f32.mrb[0].mxu0
    %v1240 = vadd.f32 0.0, %v1239
    %v1241 = vpop.f32.mrb[0].mxu0
    %v1242 = vpop.f32.mrb[0].mxu0
    %v1243 = vadd.f32 0.0, %v1242
    %v1244 = vpop.f32.mrb[0].mxu0
    %1245 = vdwg.mxu0
    %1246 = vrot.lane.b32.xlu0 %v435, 64
    %v1247 = vpop.permute.xlu0 %1246
    %1248 = vrot.lane.b32.xlu0 %v437, 64
    %v1249 = vpop.permute.xlu0 %1248
    %1250 = vrot.lane.b32.xlu0 %v439, 64
    %v1251 = vpop.permute.xlu0 %1250
    %v1256 = vsel %vm819, %v1090, 0
    %v1259 = vsel %vm819, %v1091, 0
    %v1262 = vsel %vm819, %v1092, 0
    %1264 = vmatprep.subr.bf16.mxu0 0
    %1265 = vmatpush1.bf16.msra.mxu0 %v1247
    %1266 = vmatprep.subr.bf16.mxu0 0
    %1267 = vmatpush1.bf16.msra.mxu0 %v1249
    %1268 = vmatprep.subr.bf16.mxu0 0
    %1269 = vmatpush1.bf16.msra.mxu0 %v1251
    %1270 = vmatprep.subr.bf16.mxu0 0
    %1271 = vmatpush1.bf16.msra.mxu0 0
    %1272 = vmatprep.subr.bf16.mxu0 0
    %1273 = vmatpush1.bf16.msra.mxu0 0
    %1274 = vmatprep.subr.bf16.mxu0 0
    %1275 = vmatpush1.bf16.msra.mxu0 0
    %1276 = vmatprep.subr.bf16.mxu0 0
    %1277 = vmatpush1.bf16.msra.mxu0 0
    %1278 = vmatprep.subr.bf16.mxu0 0
    %1279 = vmatpush1.bf16.msra.mxu0 0
    %1280 = vmatprep.subr.bf16.mxu0 0
    %1281 = vmatpush1.bf16.msra.mxu0 0
    %1282 = vmatprep.subr.bf16.mxu0 0
    %1283 = vmatpush1.bf16.msra.mxu0 0
    %1284 = vmatprep.subr.bf16.mxu0 0
    %1285 = vmatpush1.bf16.msra.mxu0 0
    %1286 = vmatprep.subr.bf16.mxu0 0
    %1287 = vmatpush1.bf16.msra.mxu0 0
    %1288 = vmatprep.subr.bf16.mxu0 0
    %1289 = vmatpush1.bf16.msra.mxu0 0
    %1290 = vmatprep.subr.bf16.mxu0 0
    %1291 = vmatpush1.bf16.msra.mxu0 0
    %1292 = vmatprep.subr.bf16.mxu0 0
    %1293 = vmatpush1.bf16.msra.mxu0 0
    %1294 = vmatprep.subr.bf16.mxu0 0
    %1295 = vmatpush1.bf16.msra.mxu0 0
    %1296 = vmatprep.mubr.bf16.mxu0 0
    %1297 = vmatmul.mubr.bf16.gmra.mrb[0].mxu0 %v1256
    %v1298 = vpop.f32.mrb[0].mxu0
    %v1299 = vadd.f32 0.0, %v1298
    %v1300 = vpop.f32.mrb[0].mxu0
    %v1301 = vpop.f32.mrb[0].mxu0
    %v1302 = vadd.f32 0.0, %v1301
    %v1303 = vpop.f32.mrb[0].mxu0
    %1304 = vmatprep.mubr.bf16.mxu0 0
    %1305 = vmatmul.mubr.bf16.gmra.mrb[0].mxu0 %v1259
    %v1306 = vpop.f32.mrb[0].mxu0
    %v1307 = vadd.f32 0.0, %v1306
    %v1308 = vpop.f32.mrb[0].mxu0
    %v1309 = vpop.f32.mrb[0].mxu0
    %v1310 = vadd.f32 0.0, %v1309
    %v1311 = vpop.f32.mrb[0].mxu0
    %1312 = vmatprep.mubr.bf16.mxu0 0
    %1313 = vmatmul.mubr.bf16.gmra.mrb[0].mxu0 %v1262
    %v1314 = vpop.f32.mrb[0].mxu0
    %v1315 = vadd.f32 0.0, %v1314
    %v1316 = vpop.f32.mrb[0].mxu0
    %v1317 = vpop.f32.mrb[0].mxu0
    %v1318 = vadd.f32 0.0, %v1317
    %v1319 = vpop.f32.mrb[0].mxu0
    %1320 = vdwg.mxu0
    %1321 = vrot.lane.b32.xlu0 %v441, 64
    %v1322 = vpop.permute.xlu0 %1321
    %1323 = vrot.lane.b32.xlu0 %v443, 64
    %v1324 = vpop.permute.xlu0 %1323
    %1325 = vrot.lane.b32.xlu0 %v445, 64
    %v1326 = vpop.permute.xlu0 %1325
    %v1331 = vsel %vm819, %v1093, 0
    %v1334 = vsel %vm819, %v1094, 0
    %v1337 = vsel %vm819, %v1095, 0
    %1339 = vmatprep.subr.bf16.mxu0 0
    %1340 = vmatpush1.bf16.msra.mxu0 %v1322
    %1341 = vmatprep.subr.bf16.mxu0 0
    %1342 = vmatpush1.bf16.msra.mxu0 %v1324
    %1343 = vmatprep.subr.bf16.mxu0 0
    %1344 = vmatpush1.bf16.msra.mxu0 %v1326
    %1345 = vmatprep.subr.bf16.mxu0 0
    %1346 = vmatpush1.bf16.msra.mxu0 0
    %1347 = vmatprep.subr.bf16.mxu0 0
    %1348 = vmatpush1.bf16.msra.mxu0 0
    %1349 = vmatprep.subr.bf16.mxu0 0
    %1350 = vmatpush1.bf16.msra.mxu0 0
    %1351 = vmatprep.subr.bf16.mxu0 0
    %1352 = vmatpush1.bf16.msra.mxu0 0
    %1353 = vmatprep.subr.bf16.mxu0 0
    %1354 = vmatpush1.bf16.msra.mxu0 0
    %1355 = vmatprep.subr.bf16.mxu0 0
    %1356 = vmatpush1.bf16.msra.mxu0 0
    %1357 = vmatprep.subr.bf16.mxu0 0
    %1358 = vmatpush1.bf16.msra.mxu0 0
    %1359 = vmatprep.subr.bf16.mxu0 0
    %1360 = vmatpush1.bf16.msra.mxu0 0
    %1361 = vmatprep.subr.bf16.mxu0 0
    %1362 = vmatpush1.bf16.msra.mxu0 0
    %1363 = vmatprep.subr.bf16.mxu0 0
    %1364 = vmatpush1.bf16.msra.mxu0 0
    %1365 = vmatprep.subr.bf16.mxu0 0
    %1366 = vmatpush1.bf16.msra.mxu0 0
    %1367 = vmatprep.subr.bf16.mxu0 0
    %1368 = vmatpush1.bf16.msra.mxu0 0
    %1369 = vmatprep.subr.bf16.mxu0 0
    %1370 = vmatpush1.bf16.msra.mxu0 0
    %1371 = vmatprep.mubr.bf16.mxu0 0
    %1372 = vmatmul.mubr.bf16.gmra.mrb[0].mxu0 %v1331
    %v1373 = vpop.f32.mrb[0].mxu0
    %v1374 = vadd.f32 0.0, %v1373
    %v1375 = vpop.f32.mrb[0].mxu0
    %v1376 = vpop.f32.mrb[0].mxu0
    %v1377 = vadd.f32 0.0, %v1376
    %v1378 = vpop.f32.mrb[0].mxu0
    %1379 = vmatprep.mubr.bf16.mxu0 0
    %1380 = vmatmul.mubr.bf16.gmra.mrb[0].mxu0 %v1334
    %v1381 = vpop.f32.mrb[0].mxu0
    %v1382 = vadd.f32 0.0, %v1381
    %v1383 = vpop.f32.mrb[0].mxu0
    %v1384 = vpop.f32.mrb[0].mxu0
    %v1385 = vadd.f32 0.0, %v1384
    %v1386 = vpop.f32.mrb[0].mxu0
    %1387 = vmatprep.mubr.bf16.mxu0 0
    %1388 = vmatmul.mubr.bf16.gmra.mrb[0].mxu0 %v1337
    %v1389 = vpop.f32.mrb[0].mxu0
    %v1390 = vadd.f32 0.0, %v1389
    %v1391 = vpop.f32.mrb[0].mxu0
    %v1392 = vpop.f32.mrb[0].mxu0
    %v1393 = vadd.f32 0.0, %v1392
    %v1394 = vpop.f32.mrb[0].mxu0
    %1395 = vdwg.mxu0
    %v1396 = vpack.c.bf16 %v1152, %v1149
    %v1397 = vpack.c.bf16 %v1160, %v1157
    %v1398 = vpack.c.bf16 %v1168, %v1165
    %v1399 = vpack.c.bf16 %v1227, %v1224
    %v1400 = vpack.c.bf16 %v1235, %v1232
    %v1401 = vpack.c.bf16 %v1243, %v1240
    %v1402 = vpack.c.bf16 %v1302, %v1299
    %v1403 = vpack.c.bf16 %v1310, %v1307
    %v1404 = vpack.c.bf16 %v1318, %v1315
    %v1405 = vpack.c.bf16 %v1377, %v1374
    %v1406 = vpack.c.bf16 %v1385, %v1382
    %v1407 = vpack.c.bf16 %v1393, %v1390
    %v1408 = vld [vmem:[%s4] sm:$0xf]
    %v1409 = vld [vmem:[%s4 + $0x4] sm:$0xf]
    %v1410 = vld [vmem:[%s4 + $0x8] sm:$0xf]
    %v1411 = vld [vmem:[%s4 + $0xc] sm:$0xf]
    %v1413 = vsel %vm452, %v1396, 0
    %v1416 = vsel %vm452, %v1397, 0
    %v1419 = vsel %vm452, %v1398, 0
    %vm1421 = vcmask 1043456
    %v1423 = vsel %vm1421, %v1408, 0
    %1425 = vmatprep.subr.bf16.mxu0 0
    %1426 = vmatpush1.bf16.msra.mxu0 %v1423
    %1427 = vmatprep.subr.bf16.mxu0 0
    %1428 = vmatpush1.bf16.msra.mxu0 0
    %1429 = vmatprep.subr.bf16.mxu0 0
    %1430 = vmatpush1.bf16.msra.mxu0 0
    %1431 = vmatprep.subr.bf16.mxu0 0
    %1432 = vmatpush1.bf16.msra.mxu0 0
    %1433 = vmatprep.subr.bf16.mxu0 0
    %1434 = vmatpush1.bf16.msra.mxu0 0
    %1435 = vmatprep.subr.bf16.mxu0 0
    %1436 = vmatpush1.bf16.msra.mxu0 0
    %1437 = vmatprep.subr.bf16.mxu0 0
    %1438 = vmatpush1.bf16.msra.mxu0 0
    %1439 = vmatprep.subr.bf16.mxu0 0
    %1440 = vmatpush1.bf16.msra.mxu0 0
    %1441 = vmatprep.subr.bf16.mxu0 0
    %1442 = vmatpush1.bf16.msra.mxu0 0
    %1443 = vmatprep.subr.bf16.mxu0 0
    %1444 = vmatpush1.bf16.msra.mxu0 0
    %1445 = vmatprep.subr.bf16.mxu0 0
    %1446 = vmatpush1.bf16.msra.mxu0 0
    %1447 = vmatprep.subr.bf16.mxu0 0
    %1448 = vmatpush1.bf16.msra.mxu0 0
    %1449 = vmatprep.subr.bf16.mxu0 0
    %1450 = vmatpush1.bf16.msra.mxu0 0
    %1451 = vmatprep.subr.bf16.mxu0 0
    %1452 = vmatpush1.bf16.msra.mxu0 0
    %1453 = vmatprep.subr.bf16.mxu0 0
    %1454 = vmatpush1.bf16.msra.mxu0 0
    %1455 = vmatprep.subr.bf16.mxu0 0
    %1456 = vmatpush1.bf16.msra.mxu0 0
    %1457 = vmatprep.mubr.bf16.mxu0 0
    %1458 = vmatmul.mubr.bf16.gmra.mrb[0].mxu0 %v1413
    %v1459 = vpop.f32.mrb[0].mxu0
    %v1460 = vadd.f32 0.0, %v1459
    %v1461 = vpop.f32.mrb[0].mxu0
    %v1462 = vpop.f32.mrb[0].mxu0
    %v1463 = vadd.f32 0.0, %v1462
    %v1464 = vpop.f32.mrb[0].mxu0
    %1465 = vmatprep.mubr.bf16.mxu0 0
    %1466 = vmatmul.mubr.bf16.gmra.mrb[0].mxu0 %v1416
    %v1467 = vpop.f32.mrb[0].mxu0
    %v1468 = vadd.f32 0.0, %v1467
    %v1469 = vpop.f32.mrb[0].mxu0
    %v1470 = vpop.f32.mrb[0].mxu0
    %v1471 = vadd.f32 0.0, %v1470
    %v1472 = vpop.f32.mrb[0].mxu0
    %1473 = vmatprep.mubr.bf16.mxu0 0
    %1474 = vmatmul.mubr.bf16.gmra.mrb[0].mxu0 %v1419
    %v1475 = vpop.f32.mrb[0].mxu0
    %v1476 = vadd.f32 0.0, %v1475
    %v1477 = vpop.f32.mrb[0].mxu0
    %v1478 = vpop.f32.mrb[0].mxu0
    %v1479 = vadd.f32 0.0, %v1478
    %v1480 = vpop.f32.mrb[0].mxu0
    %1481 = vdwg.mxu0
    %v1483 = vsel %vm452, %v1399, 0
    %v1486 = vsel %vm452, %v1400, 0
    %v1489 = vsel %vm452, %v1401, 0
    %v1492 = vsel %vm1421, %v1409, 0
    %1494 = vmatprep.subr.bf16.mxu0 0
    %1495 = vmatpush1.bf16.msra.mxu0 %v1492
    %1496 = vmatprep.subr.bf16.mxu0 0
    %1497 = vmatpush1.bf16.msra.mxu0 0
    %1498 = vmatprep.subr.bf16.mxu0 0
    %1499 = vmatpush1.bf16.msra.mxu0 0
    %1500 = vmatprep.subr.bf16.mxu0 0
    %1501 = vmatpush1.bf16.msra.mxu0 0
    %1502 = vmatprep.subr.bf16.mxu0 0
    %1503 = vmatpush1.bf16.msra.mxu0 0
    %1504 = vmatprep.subr.bf16.mxu0 0
    %1505 = vmatpush1.bf16.msra.mxu0 0
    %1506 = vmatprep.subr.bf16.mxu0 0
    %1507 = vmatpush1.bf16.msra.mxu0 0
    %1508 = vmatprep.subr.bf16.mxu0 0
    %1509 = vmatpush1.bf16.msra.mxu0 0
    %1510 = vmatprep.subr.bf16.mxu0 0
    %1511 = vmatpush1.bf16.msra.mxu0 0
    %1512 = vmatprep.subr.bf16.mxu0 0
    %1513 = vmatpush1.bf16.msra.mxu0 0
    %1514 = vmatprep.subr.bf16.mxu0 0
    %1515 = vmatpush1.bf16.msra.mxu0 0
    %1516 = vmatprep.subr.bf16.mxu0 0
    %1517 = vmatpush1.bf16.msra.mxu0 0
    %1518 = vmatprep.subr.bf16.mxu0 0
    %1519 = vmatpush1.bf16.msra.mxu0 0
    %1520 = vmatprep.subr.bf16.mxu0 0
    %1521 = vmatpush1.bf16.msra.mxu0 0
    %1522 = vmatprep.subr.bf16.mxu0 0
    %1523 = vmatpush1.bf16.msra.mxu0 0
    %1524 = vmatprep.subr.bf16.mxu0 0
    %1525 = vmatpush1.bf16.msra.mxu0 0
    %1526 = vmatprep.mubr.bf16.mxu0 0
    %1527 = vmatmul.mubr.bf16.gmra.mrb[0].mxu0 %v1483
    %v1528 = vpop.f32.mrb[0].mxu0
    %v1529 = vadd.f32 0.0, %v1528
    %v1530 = vpop.f32.mrb[0].mxu0
    %v1531 = vpop.f32.mrb[0].mxu0
    %v1532 = vadd.f32 0.0, %v1531
    %v1533 = vpop.f32.mrb[0].mxu0
    %1534 = vmatprep.mubr.bf16.mxu0 0
    %1535 = vmatmul.mubr.bf16.gmra.mrb[0].mxu0 %v1486
    %v1536 = vpop.f32.mrb[0].mxu0
    %v1537 = vadd.f32 0.0, %v1536
    %v1538 = vpop.f32.mrb[0].mxu0
    %v1539 = vpop.f32.mrb[0].mxu0
    %v1540 = vadd.f32 0.0, %v1539
    %v1541 = vpop.f32.mrb[0].mxu0
    %1542 = vmatprep.mubr.bf16.mxu0 0
    %1543 = vmatmul.mubr.bf16.gmra.mrb[0].mxu0 %v1489
    %v1544 = vpop.f32.mrb[0].mxu0
    %v1545 = vadd.f32 0.0, %v1544
    %v1546 = vpop.f32.mrb[0].mxu0
    %v1547 = vpop.f32.mrb[0].mxu0
    %v1548 = vadd.f32 0.0, %v1547
    %v1549 = vpop.f32.mrb[0].mxu0
    %1550 = vdwg.mxu0
    %v1552 = vsel %vm452, %v1402, 0
    %v1555 = vsel %vm452, %v1403, 0
    %v1558 = vsel %vm452, %v1404, 0
    %v1561 = vsel %vm1421, %v1410, 0
    %1563 = vmatprep.subr.bf16.mxu0 0
    %1564 = vmatpush1.bf16.msra.mxu0 %v1561
    %1565 = vmatprep.subr.bf16.mxu0 0
    %1566 = vmatpush1.bf16.msra.mxu0 0
    %1567 = vmatprep.subr.bf16.mxu0 0
    %1568 = vmatpush1.bf16.msra.mxu0 0
    %1569 = vmatprep.subr.bf16.mxu0 0
    %1570 = vmatpush1.bf16.msra.mxu0 0
    %1571 = vmatprep.subr.bf16.mxu0 0
    %1572 = vmatpush1.bf16.msra.mxu0 0
    %1573 = vmatprep.subr.bf16.mxu0 0
    %1574 = vmatpush1.bf16.msra.mxu0 0
    %1575 = vmatprep.subr.bf16.mxu0 0
    %1576 = vmatpush1.bf16.msra.mxu0 0
    %1577 = vmatprep.subr.bf16.mxu0 0
    %1578 = vmatpush1.bf16.msra.mxu0 0
    %1579 = vmatprep.subr.bf16.mxu0 0
    %1580 = vmatpush1.bf16.msra.mxu0 0
    %1581 = vmatprep.subr.bf16.mxu0 0
    %1582 = vmatpush1.bf16.msra.mxu0 0
    %1583 = vmatprep.subr.bf16.mxu0 0
    %1584 = vmatpush1.bf16.msra.mxu0 0
    %1585 = vmatprep.subr.bf16.mxu0 0
    %1586 = vmatpush1.bf16.msra.mxu0 0
    %1587 = vmatprep.subr.bf16.mxu0 0
    %1588 = vmatpush1.bf16.msra.mxu0 0
    %1589 = vmatprep.subr.bf16.mxu0 0
    %1590 = vmatpush1.bf16.msra.mxu0 0
    %1591 = vmatprep.subr.bf16.mxu0 0
    %1592 = vmatpush1.bf16.msra.mxu0 0
    %1593 = vmatprep.subr.bf16.mxu0 0
    %1594 = vmatpush1.bf16.msra.mxu0 0
    %1595 = vmatprep.mubr.bf16.mxu0 0
    %1596 = vmatmul.mubr.bf16.gmra.mrb[0].mxu0 %v1552
    %v1597 = vpop.f32.mrb[0].mxu0
    %v1598 = vadd.f32 0.0, %v1597
    %v1599 = vpop.f32.mrb[0].mxu0
    %v1600 = vpop.f32.mrb[0].mxu0
    %v1601 = vadd.f32 0.0, %v1600
    %v1602 = vpop.f32.mrb[0].mxu0
    %1603 = vmatprep.mubr.bf16.mxu0 0
    %1604 = vmatmul.mubr.bf16.gmra.mrb[0].mxu0 %v1555
    %v1605 = vpop.f32.mrb[0].mxu0
    %v1606 = vadd.f32 0.0, %v1605
    %v1607 = vpop.f32.mrb[0].mxu0
    %v1608 = vpop.f32.mrb[0].mxu0
    %v1609 = vadd.f32 0.0, %v1608
    %v1610 = vpop.f32.mrb[0].mxu0
    %1611 = vmatprep.mubr.bf16.mxu0 0
    %1612 = vmatmul.mubr.bf16.gmra.mrb[0].mxu0 %v1558
    %v1613 = vpop.f32.mrb[0].mxu0
    %v1614 = vadd.f32 0.0, %v1613
    %v1615 = vpop.f32.mrb[0].mxu0
    %v1616 = vpop.f32.mrb[0].mxu0
    %v1617 = vadd.f32 0.0, %v1616
    %v1618 = vpop.f32.mrb[0].mxu0
    %1619 = vdwg.mxu0
    %v1621 = vsel %vm452, %v1405, 0
    %v1624 = vsel %vm452, %v1406, 0
    %v1627 = vsel %vm452, %v1407, 0
    %v1630 = vsel %vm1421, %v1411, 0
    %1632 = vmatprep.subr.bf16.mxu0 0
    %1633 = vmatpush1.bf16.msra.mxu0 %v1630
    %1634 = vmatprep.subr.bf16.mxu0 0
    %1635 = vmatpush1.bf16.msra.mxu0 0
    %1636 = vmatprep.subr.bf16.mxu0 0
    %1637 = vmatpush1.bf16.msra.mxu0 0
    %1638 = vmatprep.subr.bf16.mxu0 0
    %1639 = vmatpush1.bf16.msra.mxu0 0
    %1640 = vmatprep.subr.bf16.mxu0 0
    %1641 = vmatpush1.bf16.msra.mxu0 0
    %1642 = vmatprep.subr.bf16.mxu0 0
    %1643 = vmatpush1.bf16.msra.mxu0 0
    %1644 = vmatprep.subr.bf16.mxu0 0
    %1645 = vmatpush1.bf16.msra.mxu0 0
    %1646 = vmatprep.subr.bf16.mxu0 0
    %1647 = vmatpush1.bf16.msra.mxu0 0
    %1648 = vmatprep.subr.bf16.mxu0 0
    %1649 = vmatpush1.bf16.msra.mxu0 0
    %1650 = vmatprep.subr.bf16.mxu0 0
    %1651 = vmatpush1.bf16.msra.mxu0 0
    %1652 = vmatprep.subr.bf16.mxu0 0
    %1653 = vmatpush1.bf16.msra.mxu0 0
    %1654 = vmatprep.subr.bf16.mxu0 0
    %1655 = vmatpush1.bf16.msra.mxu0 0
    %1656 = vmatprep.subr.bf16.mxu0 0
    %1657 = vmatpush1.bf16.msra.mxu0 0
    %1658 = vmatprep.subr.bf16.mxu0 0
    %1659 = vmatpush1.bf16.msra.mxu0 0
    %1660 = vmatprep.subr.bf16.mxu0 0
    %1661 = vmatpush1.bf16.msra.mxu0 0
    %1662 = vmatprep.subr.bf16.mxu0 0
    %1663 = vmatpush1.bf16.msra.mxu0 0
    %1664 = vmatprep.mubr.bf16.mxu0 0
    %1665 = vmatmul.mubr.bf16.gmra.mrb[0].mxu0 %v1621
    %v1666 = vpop.f32.mrb[0].mxu0
    %v1667 = vadd.f32 0.0, %v1666
    %v1668 = vpop.f32.mrb[0].mxu0
    %v1669 = vpop.f32.mrb[0].mxu0
    %v1670 = vadd.f32 0.0, %v1669
    %v1671 = vpop.f32.mrb[0].mxu0
    %1672 = vmatprep.mubr.bf16.mxu0 0
    %1673 = vmatmul.mubr.bf16.gmra.mrb[0].mxu0 %v1624
    %v1674 = vpop.f32.mrb[0].mxu0
    %v1675 = vadd.f32 0.0, %v1674
    %v1676 = vpop.f32.mrb[0].mxu0
    %v1677 = vpop.f32.mrb[0].mxu0
    %v1678 = vadd.f32 0.0, %v1677
    %v1679 = vpop.f32.mrb[0].mxu0
    %1680 = vmatprep.mubr.bf16.mxu0 0
    %1681 = vmatmul.mubr.bf16.gmra.mrb[0].mxu0 %v1627
    %v1682 = vpop.f32.mrb[0].mxu0
    %v1683 = vadd.f32 0.0, %v1682
    %v1684 = vpop.f32.mrb[0].mxu0
    %v1685 = vpop.f32.mrb[0].mxu0
    %v1686 = vadd.f32 0.0, %v1685
    %v1687 = vpop.f32.mrb[0].mxu0
    %1688 = vdwg.mxu0
    %v1689 = vadd.f32 %v1460, %v1529
    %v1690 = vadd.f32 %v1463, %v1532
    %v1691 = vadd.f32 %v1468, %v1537
    %v1692 = vadd.f32 %v1471, %v1540
    %v1693 = vadd.f32 %v1476, %v1545
    %v1694 = vadd.f32 %v1479, %v1548
    %v1695 = vadd.f32 %v1689, %v1598
    %v1696 = vadd.f32 %v1690, %v1601
    %v1697 = vadd.f32 %v1691, %v1606
    %v1698 = vadd.f32 %v1692, %v1609
    %v1699 = vadd.f32 %v1693, %v1614
    %v1700 = vadd.f32 %v1694, %v1617
    %v1701 = vadd.f32 %v1695, %v1667
    %v1702 = vadd.f32 %v1696, %v1670
    %v1703 = vadd.f32 %v1697, %v1675
    %v1704 = vadd.f32 %v1698, %v1678
    %v1705 = vadd.f32 %v1699, %v1683
    %v1706 = vadd.f32 %v1700, %v1686
    %v1707 = vadd.f32 %v135, %v1701
    %v1708 = vadd.f32 %v138, %v1702
    %v1709 = vadd.f32 %v143, %v1703
    %v1710 = vadd.f32 %v146, %v1704
    %v1711 = vadd.f32 %v151, %v1705
    %v1712 = vadd.f32 %v154, %v1706
    %v1713 = vlaneseq
    %v1714 = vshrl.u32 %v1713, 7
    %v1715 = vsub.s32 3, %v1714
    %v1716 = vrot.slane %v232, %v1715
    %v1717 = vadd.f32 %v1707, %v1716
    %v1718 = vadd.f32 %v1708, %v1716
    %v1719 = vadd.f32 %v1709, %v1716
    %v1720 = vadd.f32 %v1710, %v1716
    %v1721 = vadd.f32 %v1711, %v1716
    %v1722 = vadd.f32 %v1712, %v1716
    %v1723 = vsel %vm233, %v1717, 0.0
    %1724 = vadd.xlane.f32.xlu0 %v1723
    %v1725 = vpop.xlane.xlu0 %1724
    %v1726 = vsel %vm233, %v1718, 0.0
    %1727 = vadd.xlane.f32.xlu0 %v1726
    %v1728 = vpop.xlane.xlu0 %1727
    %v1729 = vsel %vm233, %v1719, 0.0
    %1730 = vadd.xlane.f32.xlu0 %v1729
    %v1731 = vpop.xlane.xlu0 %1730
    %v1732 = vsel %vm233, %v1720, 0.0
    %1733 = vadd.xlane.f32.xlu0 %v1732
    %v1734 = vpop.xlane.xlu0 %1733
    %v1735 = vsel %vm233, %v1721, 0.0
    %1736 = vadd.xlane.f32.xlu0 %v1735
    %v1737 = vpop.xlane.xlu0 %1736
    %v1738 = vsel %vm233, %v1722, 0.0
    %1739 = vadd.xlane.f32.xlu0 %v1738
    %v1740 = vpop.xlane.xlu0 %1739
    %v1741 = vmul.f32 %v1725, %v252
    %v1742 = vmul.f32 %v1728, %v252
    %v1743 = vmul.f32 %v1731, %v252
    %v1744 = vmul.f32 %v1734, %v252
    %v1745 = vmul.f32 %v1737, %v252
    %v1746 = vmul.f32 %v1740, %v252
    %v1747 = vsub.f32 %v1717, %v1741
    %v1748 = vsub.f32 %v1718, %v1742
    %v1749 = vsub.f32 %v1719, %v1743
    %v1750 = vsub.f32 %v1720, %v1744
    %v1751 = vsub.f32 %v1721, %v1745
    %v1752 = vsub.f32 %v1722, %v1746
    %v1753 = vmul.f32 %v1747, %v1747
    %v1754 = vmul.f32 %v1748, %v1748
    %v1755 = vmul.f32 %v1749, %v1749
    %v1756 = vmul.f32 %v1750, %v1750
    %v1757 = vmul.f32 %v1751, %v1751
    %v1758 = vmul.f32 %v1752, %v1752
    %v1759 = vsel %vm233, %v1753, 0.0
    %1760 = vadd.xlane.f32.xlu0 %v1759
    %v1761 = vpop.xlane.xlu0 %1760
    %v1762 = vsel %vm233, %v1754, 0.0
    %1763 = vadd.xlane.f32.xlu0 %v1762
    %v1764 = vpop.xlane.xlu0 %1763
    %v1765 = vsel %vm233, %v1755, 0.0
    %1766 = vadd.xlane.f32.xlu0 %v1765
    %v1767 = vpop.xlane.xlu0 %1766
    %v1768 = vsel %vm233, %v1756, 0.0
    %1769 = vadd.xlane.f32.xlu0 %v1768
    %v1770 = vpop.xlane.xlu0 %1769
    %v1771 = vsel %vm233, %v1757, 0.0
    %1772 = vadd.xlane.f32.xlu0 %v1771
    %v1773 = vpop.xlane.xlu0 %1772
    %v1774 = vsel %vm233, %v1758, 0.0
    %1775 = vadd.xlane.f32.xlu0 %v1774
    %v1776 = vpop.xlane.xlu0 %1775
    %v1777 = vmul.f32 %v1761, %v252
    %v1778 = vmul.f32 %v1764, %v252
    %v1779 = vmul.f32 %v1767, %v252
    %v1780 = vmul.f32 %v1770, %v252
    %v1781 = vmul.f32 %v1773, %v252
    %v1782 = vmul.f32 %v1776, %v252
    %v1783 = vadd.f32 %v1777, 1e-06
    %v1784 = vadd.f32 %v1778, 1e-06
    %v1785 = vadd.f32 %v1779, 1e-06
    %v1786 = vadd.f32 %v1780, 1e-06
    %v1787 = vadd.f32 %v1781, 1e-06
    %v1788 = vadd.f32 %v1782, 1e-06
    %v1789 = vrsqrt.pop %v1783
    %v1790 = vrsqrt.pop %v1784
    %v1791 = vrsqrt.pop %v1785
    %v1792 = vrsqrt.pop %v1786
    %v1793 = vrsqrt.pop %v1787
    %v1794 = vrsqrt.pop %v1788
    %v1795 = vmul.f32 %v1747, %v1789
    %v1796 = vmul.f32 %v1748, %v1790
    %v1797 = vmul.f32 %v1749, %v1791
    %v1798 = vmul.f32 %v1750, %v1792
    %v1799 = vmul.f32 %v1751, %v1793
    %v1800 = vmul.f32 %v1752, %v1794
    %v1801 = vlaneseq
    %v1802 = vshrl.u32 %v1801, 7
    %v1803 = vsub.s32 4, %v1802
    %v1804 = vrot.slane %v232, %v1803
    %v1805 = vmul.f32 %v1795, %v1804
    %v1806 = vmul.f32 %v1796, %v1804
    %v1807 = vmul.f32 %v1797, %v1804
    %v1808 = vmul.f32 %v1798, %v1804
    %v1809 = vmul.f32 %v1799, %v1804
    %v1810 = vmul.f32 %v1800, %v1804
    %v1811 = vlaneseq
    %v1812 = vshrl.u32 %v1811, 7
    %v1813 = vsub.s32 5, %v1812
    %v1814 = vrot.slane %v232, %v1813
    %v1815 = vadd.f32 %v1805, %v1814
    %v1816 = vadd.f32 %v1806, %v1814
    %v1817 = vadd.f32 %v1807, %v1814
    %v1818 = vadd.f32 %v1808, %v1814
    %v1819 = vadd.f32 %v1809, %v1814
    %v1820 = vadd.f32 %v1810, %v1814
    %v1821 = vpack.c.bf16 %v1816, %v1815
    %v1822 = vpack.c.bf16 %v1818, %v1817
    %v1823 = vpack.c.bf16 %v1820, %v1819
    %v1824 = vld [vmem:[%s5] sm:$0xf]
    %v1825 = vld [vmem:[%s5 + $0x4] sm:$0xf]
    %v1826 = vld [vmem:[%s5 + $0x8] sm:$0xf]
    %v1827 = vld [vmem:[%s5 + $0xc] sm:$0xf]
    %v1828 = vlaneseq
    %v1829 = vshrl.u32 %v1828, 7
    %v1830 = vsub.s32 6, %v1829
    %v1831 = vrot.slane %v232, %v1830
    %v1836 = vunpack.c.l.b16 %v1824
    %v1837 = vunpack.c.l.b16 %v1825
    %v1838 = vunpack.c.l.b16 %v1826
    %v1839 = vunpack.c.l.b16 %v1827
    %v1840 = vpack.c.b16 %v1837, %v1836
    %v1841 = vpack.c.b16 %v1839, %v1838
    %v1845 = vsel %vm233, %v1821, 0
    %v1848 = vsel %vm233, %v1822, 0
    %v1851 = vsel %vm233, %v1823, 0
    %1853 = vmatprep.subr.bf16.mxu0 0
    %1854 = vmatpush1.bf16.msra.mxu0 %v1840
    %1855 = vmatprep.subr.bf16.mxu0 0
    %1856 = vmatpush1.bf16.msra.mxu0 %v1841
    %1857 = vmatprep.subr.bf16.mxu0 0
    %1858 = vmatpush1.bf16.msra.mxu0 0
    %1859 = vmatprep.subr.bf16.mxu0 0
    %1860 = vmatpush1.bf16.msra.mxu0 0
    %1861 = vmatprep.subr.bf16.mxu0 0
    %1862 = vmatpush1.bf16.msra.mxu0 0
    %1863 = vmatprep.subr.bf16.mxu0 0
    %1864 = vmatpush1.bf16.msra.mxu0 0
    %1865 = vmatprep.subr.bf16.mxu0 0
    %1866 = vmatpush1.bf16.msra.mxu0 0
    %1867 = vmatprep.subr.bf16.mxu0 0
    %1868 = vmatpush1.bf16.msra.mxu0 0
    %1869 = vmatprep.subr.bf16.mxu0 0
    %1870 = vmatpush1.bf16.msra.mxu0 0
    %1871 = vmatprep.subr.bf16.mxu0 0
    %1872 = vmatpush1.bf16.msra.mxu0 0
    %1873 = vmatprep.subr.bf16.mxu0 0
    %1874 = vmatpush1.bf16.msra.mxu0 0
    %1875 = vmatprep.subr.bf16.mxu0 0
    %1876 = vmatpush1.bf16.msra.mxu0 0
    %1877 = vmatprep.subr.bf16.mxu0 0
    %1878 = vmatpush1.bf16.msra.mxu0 0
    %1879 = vmatprep.subr.bf16.mxu0 0
    %1880 = vmatpush1.bf16.msra.mxu0 0
    %1881 = vmatprep.subr.bf16.mxu0 0
    %1882 = vmatpush1.bf16.msra.mxu0 0
    %1883 = vmatprep.subr.bf16.mxu0 0
    %1884 = vmatpush1.bf16.msra.mxu0 0
    %1885 = vmatprep.mubr.bf16.mxu0 0
    %1886 = vmatmul.mubr.bf16.gmra.mrb[0].mxu0 %v1845
    %v1887 = vpop.f32.mrb[0].mxu0
    %v1888 = vadd.f32 %v1831, %v1887
    %v1889 = vpop.f32.mrb[0].mxu0
    %v1890 = vpop.f32.mrb[0].mxu0
    %v1891 = vadd.f32 %v1831, %v1890
    %v1892 = vpop.f32.mrb[0].mxu0
    %1893 = vmatprep.mubr.bf16.mxu0 0
    %1894 = vmatmul.mubr.bf16.gmra.mrb[0].mxu0 %v1848
    %v1895 = vpop.f32.mrb[0].mxu0
    %v1896 = vadd.f32 %v1831, %v1895
    %v1897 = vpop.f32.mrb[0].mxu0
    %v1898 = vpop.f32.mrb[0].mxu0
    %v1899 = vadd.f32 %v1831, %v1898
    %v1900 = vpop.f32.mrb[0].mxu0
    %1901 = vmatprep.mubr.bf16.mxu0 0
    %1902 = vmatmul.mubr.bf16.gmra.mrb[0].mxu0 %v1851
    %v1903 = vpop.f32.mrb[0].mxu0
    %v1904 = vadd.f32 %v1831, %v1903
    %v1905 = vpop.f32.mrb[0].mxu0
    %v1906 = vpop.f32.mrb[0].mxu0
    %v1907 = vadd.f32 %v1831, %v1906
    %v1908 = vpop.f32.mrb[0].mxu0
    %1909 = vdwg.mxu0
    %v1910 = vmul.f32 %v1888, 0.5
    %v1911 = vmul.f32 %v1891, 0.5
    %v1912 = vmul.f32 %v1896, 0.5
    %v1913 = vmul.f32 %v1899, 0.5
    %v1914 = vmul.f32 %v1904, 0.5
    %v1915 = vmul.f32 %v1907, 0.5
    %v1916 = vmul.f32 %v1888, 0.70710677
    %v1917 = vmul.f32 %v1891, 0.70710677
    %v1918 = vmul.f32 %v1896, 0.70710677
    %v1919 = vmul.f32 %v1899, 0.70710677
    %v1920 = vmul.f32 %v1904, 0.70710677
    %v1921 = vmul.f32 %v1907, 0.70710677
    %v1922 = verf.f32.pop %v1916
    %v1923 = verf.f32.pop %v1917
    %v1924 = verf.f32.pop %v1918
    %v1925 = verf.f32.pop %v1919
    %v1926 = verf.f32.pop %v1920
    %v1927 = verf.f32.pop %v1921
    %v1928 = vadd.f32 %v1922, 1.0
    %v1929 = vadd.f32 %v1923, 1.0
    %v1930 = vadd.f32 %v1924, 1.0
    %v1931 = vadd.f32 %v1925, 1.0
    %v1932 = vadd.f32 %v1926, 1.0
    %v1933 = vadd.f32 %v1927, 1.0
    %v1934 = vmul.f32 %v1910, %v1928
    %v1935 = vmul.f32 %v1911, %v1929
    %v1936 = vmul.f32 %v1912, %v1930
    %v1937 = vmul.f32 %v1913, %v1931
    %v1938 = vmul.f32 %v1914, %v1932
    %v1939 = vmul.f32 %v1915, %v1933
    %v1940 = vpack.c.bf16 %v1935, %v1934
    %v1941 = vpack.c.bf16 %v1937, %v1936
    %v1942 = vpack.c.bf16 %v1939, %v1938
    %v1943 = vld [vmem:[%s6] sm:$0xf]
    %v1944 = vld [vmem:[%s6 + $0x4] sm:$0xf]
    %v1945 = vld [vmem:[%s6 + $0x8] sm:$0xf]
    %v1946 = vld [vmem:[%s6 + $0xc] sm:$0xf]
    %v1947 = vld [vmem:[%s6 + $0x10] sm:$0xf]
    %v1948 = vld [vmem:[%s6 + $0x14] sm:$0xf]
    %v1949 = vld [vmem:[%s6 + $0x18] sm:$0xf]
    %v1950 = vld [vmem:[%s6 + $0x1c] sm:$0xf]
    %v1951 = vld [vmem:[%s6 + $0x20] sm:$0xf]
    %v1952 = vld [vmem:[%s6 + $0x24] sm:$0xf]
    %v1953 = vld [vmem:[%s6 + $0x28] sm:$0xf]
    %v1954 = vld [vmem:[%s6 + $0x2c] sm:$0xf]
    %v1955 = vld [vmem:[%s6 + $0x30] sm:$0xf]
    %v1956 = vld [vmem:[%s6 + $0x34] sm:$0xf]
    %v1957 = vld [vmem:[%s6 + $0x38] sm:$0xf]
    %v1958 = vld [vmem:[%s6 + $0x3c] sm:$0xf]
    %v1975 = vunpack.c.l.b16 %v1943
    %v1976 = vunpack.c.l.b16 %v1944
    %v1977 = vunpack.c.l.b16 %v1945
    %v1978 = vunpack.c.l.b16 %v1946
    %v1979 = vunpack.c.l.b16 %v1947
    %v1980 = vunpack.c.l.b16 %v1948
    %v1981 = vunpack.c.l.b16 %v1949
    %v1982 = vunpack.c.l.b16 %v1950
    %v1983 = vunpack.c.l.b16 %v1951
    %v1984 = vunpack.c.l.b16 %v1952
    %v1985 = vunpack.c.l.b16 %v1953
    %v1986 = vunpack.c.l.b16 %v1954
    %v1987 = vunpack.c.l.b16 %v1955
    %v1988 = vunpack.c.l.b16 %v1956
    %v1989 = vunpack.c.l.b16 %v1957
    %v1990 = vunpack.c.l.b16 %v1958
    %v1991 = vpack.c.b16 %v1976, %v1975
    %v1992 = vpack.c.b16 %v1978, %v1977
    %v1993 = vpack.c.b16 %v1980, %v1979
    %v1994 = vpack.c.b16 %v1982, %v1981
    %v1995 = vpack.c.b16 %v1984, %v1983
    %v1996 = vpack.c.b16 %v1986, %v1985
    %v1997 = vpack.c.b16 %v1988, %v1987
    %v1998 = vpack.c.b16 %v1990, %v1989
    %2007 = vmatprep.subr.bf16.mxu0 0
    %2008 = vmatpush1.bf16.msra.mxu0 %v1991
    %2009 = vmatprep.subr.bf16.mxu0 0
    %2010 = vmatpush1.bf16.msra.mxu0 %v1992
    %2011 = vmatprep.subr.bf16.mxu0 0
    %2012 = vmatpush1.bf16.msra.mxu0 %v1993
    %2013 = vmatprep.subr.bf16.mxu0 0
    %2014 = vmatpush1.bf16.msra.mxu0 %v1994
    %2015 = vmatprep.subr.bf16.mxu0 0
    %2016 = vmatpush1.bf16.msra.mxu0 %v1995
    %2017 = vmatprep.subr.bf16.mxu0 0
    %2018 = vmatpush1.bf16.msra.mxu0 %v1996
    %2019 = vmatprep.subr.bf16.mxu0 0
    %2020 = vmatpush1.bf16.msra.mxu0 %v1997
    %2021 = vmatprep.subr.bf16.mxu0 0
    %2022 = vmatpush1.bf16.msra.mxu0 %v1998
    %2023 = vmatprep.subr.bf16.mxu0 0
    %2024 = vmatpush1.bf16.msra.mxu0 0
    %2025 = vmatprep.subr.bf16.mxu0 0
    %2026 = vmatpush1.bf16.msra.mxu0 0
    %2027 = vmatprep.subr.bf16.mxu0 0
    %2028 = vmatpush1.bf16.msra.mxu0 0
    %2029 = vmatprep.subr.bf16.mxu0 0
    %2030 = vmatpush1.bf16.msra.mxu0 0
    %2031 = vmatprep.subr.bf16.mxu0 0
    %2032 = vmatpush1.bf16.msra.mxu0 0
    %2033 = vmatprep.subr.bf16.mxu0 0
    %2034 = vmatpush1.bf16.msra.mxu0 0
    %2035 = vmatprep.subr.bf16.mxu0 0
    %2036 = vmatpush1.bf16.msra.mxu0 0
    %2037 = vmatprep.subr.bf16.mxu0 0
    %2038 = vmatpush1.bf16.msra.mxu0 0
    %2039 = vmatprep.mubr.bf16.mxu0 0
    %2040 = vmatmul.mubr.bf16.gmra.mrb[0].mxu0 %v1940
    %v2041 = vpop.f32.mrb[0].mxu0
    %v2042 = vadd.f32 0.0, %v2041
    %v2043 = vpop.f32.mrb[0].mxu0
    %v2044 = vpop.f32.mrb[0].mxu0
    %v2045 = vadd.f32 0.0, %v2044
    %v2046 = vpop.f32.mrb[0].mxu0
    %2047 = vmatprep.mubr.bf16.mxu0 0
    %2048 = vmatmul.mubr.bf16.gmra.mrb[0].mxu0 %v1941
    %v2049 = vpop.f32.mrb[0].mxu0
    %v2050 = vadd.f32 0.0, %v2049
    %v2051 = vpop.f32.mrb[0].mxu0
    %v2052 = vpop.f32.mrb[0].mxu0
    %v2053 = vadd.f32 0.0, %v2052
    %v2054 = vpop.f32.mrb[0].mxu0
    %2055 = vmatprep.mubr.bf16.mxu0 0
    %2056 = vmatmul.mubr.bf16.gmra.mrb[0].mxu0 %v1942
    %v2057 = vpop.f32.mrb[0].mxu0
    %v2058 = vadd.f32 0.0, %v2057
    %v2059 = vpop.f32.mrb[0].mxu0
    %v2060 = vpop.f32.mrb[0].mxu0
    %v2061 = vadd.f32 0.0, %v2060
    %v2062 = vpop.f32.mrb[0].mxu0
    %2063 = vdwg.mxu0
    %v2064 = vadd.f32 %v1717, %v2042
    %v2065 = vadd.f32 %v1718, %v2045
    %v2066 = vadd.f32 %v1719, %v2050
    %v2067 = vadd.f32 %v1720, %v2053
    %v2068 = vadd.f32 %v1721, %v2058
    %v2069 = vadd.f32 %v1722, %v2061
    %v2070 = vlaneseq
    %v2071 = vshrl.u32 %v2070, 7
    %v2072 = vsub.s32 7, %v2071
    %v2073 = vrot.slane %v232, %v2072
    %v2074 = vadd.f32 %v2064, %v2073
    %v2075 = vadd.f32 %v2065, %v2073
    %v2076 = vadd.f32 %v2066, %v2073
    %v2077 = vadd.f32 %v2067, %v2073
    %v2078 = vadd.f32 %v2068, %v2073
    %v2079 = vadd.f32 %v2069, %v2073
    %s2080 = scalar_lea.vmem %s8, 8
    %v2081 = vld [vmem:[%s2080] sm:$0xff]
    %v2082 = vsel %vm233, %v2074, 0.0
    %2083 = vadd.xlane.f32.xlu0 %v2082
    %v2084 = vpop.xlane.xlu0 %2083
    %v2085 = vsel %vm233, %v2075, 0.0
    %2086 = vadd.xlane.f32.xlu0 %v2085
    %v2087 = vpop.xlane.xlu0 %2086
    %v2088 = vsel %vm233, %v2076, 0.0
    %2089 = vadd.xlane.f32.xlu0 %v2088
    %v2090 = vpop.xlane.xlu0 %2089
    %v2091 = vsel %vm233, %v2077, 0.0
    %2092 = vadd.xlane.f32.xlu0 %v2091
    %v2093 = vpop.xlane.xlu0 %2092
    %v2094 = vsel %vm233, %v2078, 0.0
    %2095 = vadd.xlane.f32.xlu0 %v2094
    %v2096 = vpop.xlane.xlu0 %2095
    %v2097 = vsel %vm233, %v2079, 0.0
    %2098 = vadd.xlane.f32.xlu0 %v2097
    %v2099 = vpop.xlane.xlu0 %2098
    %v2100 = vmul.f32 %v2084, %v252
    %v2101 = vmul.f32 %v2087, %v252
    %v2102 = vmul.f32 %v2090, %v252
    %v2103 = vmul.f32 %v2093, %v252
    %v2104 = vmul.f32 %v2096, %v252
    %v2105 = vmul.f32 %v2099, %v252
    %v2106 = vsub.f32 %v2074, %v2100
    %v2107 = vsub.f32 %v2075, %v2101
    %v2108 = vsub.f32 %v2076, %v2102
    %v2109 = vsub.f32 %v2077, %v2103
    %v2110 = vsub.f32 %v2078, %v2104
    %v2111 = vsub.f32 %v2079, %v2105
    %v2112 = vmul.f32 %v2106, %v2106
    %v2113 = vmul.f32 %v2107, %v2107
    %v2114 = vmul.f32 %v2108, %v2108
    %v2115 = vmul.f32 %v2109, %v2109
    %v2116 = vmul.f32 %v2110, %v2110
    %v2117 = vmul.f32 %v2111, %v2111
    %v2118 = vsel %vm233, %v2112, 0.0
    %2119 = vadd.xlane.f32.xlu0 %v2118
    %v2120 = vpop.xlane.xlu0 %2119
    %v2121 = vsel %vm233, %v2113, 0.0
    %2122 = vadd.xlane.f32.xlu0 %v2121
    %v2123 = vpop.xlane.xlu0 %2122
    %v2124 = vsel %vm233, %v2114, 0.0
    %2125 = vadd.xlane.f32.xlu0 %v2124
    %v2126 = vpop.xlane.xlu0 %2125
    %v2127 = vsel %vm233, %v2115, 0.0
    %2128 = vadd.xlane.f32.xlu0 %v2127
    %v2129 = vpop.xlane.xlu0 %2128
    %v2130 = vsel %vm233, %v2116, 0.0
    %2131 = vadd.xlane.f32.xlu0 %v2130
    %v2132 = vpop.xlane.xlu0 %2131
    %v2133 = vsel %vm233, %v2117, 0.0
    %2134 = vadd.xlane.f32.xlu0 %v2133
    %v2135 = vpop.xlane.xlu0 %2134
    %v2136 = vmul.f32 %v2120, %v252
    %v2137 = vmul.f32 %v2123, %v252
    %v2138 = vmul.f32 %v2126, %v252
    %v2139 = vmul.f32 %v2129, %v252
    %v2140 = vmul.f32 %v2132, %v252
    %v2141 = vmul.f32 %v2135, %v252
    %v2142 = vadd.f32 %v2136, 1e-06
    %v2143 = vadd.f32 %v2137, 1e-06
    %v2144 = vadd.f32 %v2138, 1e-06
    %v2145 = vadd.f32 %v2139, 1e-06
    %v2146 = vadd.f32 %v2140, 1e-06
    %v2147 = vadd.f32 %v2141, 1e-06
    %v2148 = vrsqrt.pop %v2142
    %v2149 = vrsqrt.pop %v2143
    %v2150 = vrsqrt.pop %v2144
    %v2151 = vrsqrt.pop %v2145
    %v2152 = vrsqrt.pop %v2146
    %v2153 = vrsqrt.pop %v2147
    %v2154 = vmul.f32 %v2106, %v2148
    %v2155 = vmul.f32 %v2107, %v2149
    %v2156 = vmul.f32 %v2108, %v2150
    %v2157 = vmul.f32 %v2109, %v2151
    %v2158 = vmul.f32 %v2110, %v2152
    %v2159 = vmul.f32 %v2111, %v2153
    %v2160 = vlaneseq
    %v2161 = vshrl.u32 %v2160, 7
    %v2162 = vsub.s32 0, %v2161
    %v2163 = vrot.slane %v2081, %v2162
    %v2164 = vmul.f32 %v2154, %v2163
    %v2165 = vmul.f32 %v2155, %v2163
    %v2166 = vmul.f32 %v2156, %v2163
    %v2167 = vmul.f32 %v2157, %v2163
    %v2168 = vmul.f32 %v2158, %v2163
    %v2169 = vmul.f32 %v2159, %v2163
    %v2170 = vlaneseq
    %v2171 = vshrl.u32 %v2170, 7
    %v2172 = vsub.s32 1, %v2171
    %v2173 = vrot.slane %v2081, %v2172
    %v2174 = vadd.f32 %v2164, %v2173
    %v2175 = vadd.f32 %v2165, %v2173
    %v2176 = vadd.f32 %v2166, %v2173
    %v2177 = vadd.f32 %v2167, %v2173
    %v2178 = vadd.f32 %v2168, %v2173
    %v2179 = vadd.f32 %v2169, %v2173
    %v2180 = vpack.c.bf16 %v2175, %v2174
    %v2181 = vpack.c.bf16 %v2177, %v2176
    %v2182 = vpack.c.bf16 %v2179, %v2178
    %s2183 = scalar_lea.vmem %s3, 16
    %v2184 = vld [vmem:[%s2183] sm:$0xf]
    %v2185 = vld [vmem:[%s2183 + $0x4] sm:$0xf]
    %v2186 = vld [vmem:[%s2183 + $0x8] sm:$0xf]
    %v2187 = vld [vmem:[%s2183 + $0xc] sm:$0xf]
    %v2188 = vlaneseq
    %v2189 = vshrl.u32 %v2188, 7
    %v2190 = vsub.s32 2, %v2189
    %v2191 = vrot.slane %v2081, %v2190
    %v2196 = vunpack.c.l.b16 %v2184
    %v2197 = vunpack.c.l.b16 %v2185
    %v2198 = vunpack.c.l.b16 %v2186
    %v2199 = vunpack.c.l.b16 %v2187
    %v2200 = vpack.c.b16 %v2197, %v2196
    %v2201 = vpack.c.b16 %v2199, %v2198
    %v2205 = vsel %vm233, %v2180, 0
    %v2208 = vsel %vm233, %v2181, 0
    %v2211 = vsel %vm233, %v2182, 0
    %2213 = vmatprep.subr.bf16.mxu0 0
    %2214 = vmatpush1.bf16.msra.mxu0 %v2200
    %2215 = vmatprep.subr.bf16.mxu0 0
    %2216 = vmatpush1.bf16.msra.mxu0 %v2201
    %2217 = vmatprep.subr.bf16.mxu0 0
    %2218 = vmatpush1.bf16.msra.mxu0 0
    %2219 = vmatprep.subr.bf16.mxu0 0
    %2220 = vmatpush1.bf16.msra.mxu0 0
    %2221 = vmatprep.subr.bf16.mxu0 0
    %2222 = vmatpush1.bf16.msra.mxu0 0
    %2223 = vmatprep.subr.bf16.mxu0 0
    %2224 = vmatpush1.bf16.msra.mxu0 0
    %2225 = vmatprep.subr.bf16.mxu0 0
    %2226 = vmatpush1.bf16.msra.mxu0 0
    %2227 = vmatprep.subr.bf16.mxu0 0
    %2228 = vmatpush1.bf16.msra.mxu0 0
    %2229 = vmatprep.subr.bf16.mxu0 0
    %2230 = vmatpush1.bf16.msra.mxu0 0
    %2231 = vmatprep.subr.bf16.mxu0 0
    %2232 = vmatpush1.bf16.msra.mxu0 0
    %2233 = vmatprep.subr.bf16.mxu0 0
    %2234 = vmatpush1.bf16.msra.mxu0 0
    %2235 = vmatprep.subr.bf16.mxu0 0
    %2236 = vmatpush1.bf16.msra.mxu0 0
    %2237 = vmatprep.subr.bf16.mxu0 0
    %2238 = vmatpush1.bf16.msra.mxu0 0
    %2239 = vmatprep.subr.bf16.mxu0 0
    %2240 = vmatpush1.bf16.msra.mxu0 0
    %2241 = vmatprep.subr.bf16.mxu0 0
    %2242 = vmatpush1.bf16.msra.mxu0 0
    %2243 = vmatprep.subr.bf16.mxu0 0
    %2244 = vmatpush1.bf16.msra.mxu0 0
    %2245 = vmatprep.mubr.bf16.mxu0 0
    %2246 = vmatmul.mubr.bf16.gmra.mrb[0].mxu0 %v2205
    %v2247 = vpop.f32.mrb[0].mxu0
    %v2248 = vadd.f32 %v2191, %v2247
    %v2249 = vpop.f32.mrb[0].mxu0
    %v2250 = vpop.f32.mrb[0].mxu0
    %v2251 = vadd.f32 %v2191, %v2250
    %v2252 = vpop.f32.mrb[0].mxu0
    %2253 = vmatprep.mubr.bf16.mxu0 0
    %2254 = vmatmul.mubr.bf16.gmra.mrb[0].mxu0 %v2208
    %v2255 = vpop.f32.mrb[0].mxu0
    %v2256 = vadd.f32 %v2191, %v2255
    %v2257 = vpop.f32.mrb[0].mxu0
    %v2258 = vpop.f32.mrb[0].mxu0
    %v2259 = vadd.f32 %v2191, %v2258
    %v2260 = vpop.f32.mrb[0].mxu0
    %2261 = vmatprep.mubr.bf16.mxu0 0
    %2262 = vmatmul.mubr.bf16.gmra.mrb[0].mxu0 %v2211
    %v2263 = vpop.f32.mrb[0].mxu0
    %v2264 = vadd.f32 %v2191, %v2263
    %v2265 = vpop.f32.mrb[0].mxu0
    %v2266 = vpop.f32.mrb[0].mxu0
    %v2267 = vadd.f32 %v2191, %v2266
    %v2268 = vpop.f32.mrb[0].mxu0
    %2269 = vdwg.mxu0
    %v2270 = vpack.c.bf16 %v2251, %v2248
    %v2271 = vpack.c.bf16 %v2259, %v2256
    %v2272 = vpack.c.bf16 %v2267, %v2264
    %2276 = vrot.lane.b32.xlu0 %v2270, 120
    %v2277 = vpop.permute.xlu0 %2276
    %2278 = vrot.lane.b32.xlu0 %v2271, 120
    %v2279 = vpop.permute.xlu0 %2278
    %2280 = vrot.lane.b32.xlu0 %v2272, 120
    %v2281 = vpop.permute.xlu0 %2280
    %2282 = vrot.lane.b32.xlu0 %v2270, 112
    %v2283 = vpop.permute.xlu0 %2282
    %2284 = vrot.lane.b32.xlu0 %v2271, 112
    %v2285 = vpop.permute.xlu0 %2284
    %2286 = vrot.lane.b32.xlu0 %v2272, 112
    %v2287 = vpop.permute.xlu0 %2286
    %2288 = vrot.lane.b32.xlu0 %v2270, 104
    %v2289 = vpop.permute.xlu0 %2288
    %2290 = vrot.lane.b32.xlu0 %v2271, 104
    %v2291 = vpop.permute.xlu0 %2290
    %2292 = vrot.lane.b32.xlu0 %v2272, 104
    %v2293 = vpop.permute.xlu0 %2292
    %2294 = vrot.lane.b32.xlu0 %v2270, 96
    %v2295 = vpop.permute.xlu0 %2294
    %2296 = vrot.lane.b32.xlu0 %v2271, 96
    %v2297 = vpop.permute.xlu0 %2296
    %2298 = vrot.lane.b32.xlu0 %v2272, 96
    %v2299 = vpop.permute.xlu0 %2298
    %v2301 = vsel %vm452, %v2270, 0
    %v2304 = vsel %vm452, %v2271, 0
    %v2307 = vsel %vm452, %v2272, 0
    %v2310 = vsel %vm452, %v2295, 0
    %v2313 = vsel %vm452, %v2297, 0
    %v2316 = vsel %vm452, %v2299, 0
    %2318 = vmatprep.subr.bf16.mxu0 0
    %2319 = vmatpush1.bf16.xpose.msra.mxu0 %v2310
    %2320 = vmatprep.subr.bf16.mxu0 0
    %2321 = vmatpush1.bf16.xpose.msra.mxu0 %v2313
    %2322 = vmatprep.subr.bf16.mxu0 0
    %2323 = vmatpush1.bf16.xpose.msra.mxu0 %v2316
    %2324 = vmatprep.subr.bf16.mxu0 0
    %2325 = vmatpush1.bf16.xpose.msra.mxu0 0
    %2326 = vmatprep.subr.bf16.mxu0 0
    %2327 = vmatpush1.bf16.xpose.msra.mxu0 0
    %2328 = vmatprep.subr.bf16.mxu0 0
    %2329 = vmatpush1.bf16.xpose.msra.mxu0 0
    %2330 = vmatprep.subr.bf16.mxu0 0
    %2331 = vmatpush1.bf16.xpose.msra.mxu0 0
    %2332 = vmatprep.subr.bf16.mxu0 0
    %2333 = vmatpush1.bf16.xpose.msra.mxu0 0
    %2334 = vmatprep.subr.bf16.mxu0 0
    %2335 = vmatpush1.bf16.xpose.msra.mxu0 0
    %2336 = vmatprep.subr.bf16.mxu0 0
    %2337 = vmatpush1.bf16.xpose.msra.mxu0 0
    %2338 = vmatprep.subr.bf16.mxu0 0
    %2339 = vmatpush1.bf16.xpose.msra.mxu0 0
    %2340 = vmatprep.subr.bf16.mxu0 0
    %2341 = vmatpush1.bf16.xpose.msra.mxu0 0
    %2342 = vmatprep.subr.bf16.mxu0 0
    %2343 = vmatpush1.bf16.xpose.msra.mxu0 0
    %2344 = vmatprep.subr.bf16.mxu0 0
    %2345 = vmatpush1.bf16.xpose.msra.mxu0 0
    %2346 = vmatprep.subr.bf16.mxu0 0
    %2347 = vmatpush1.bf16.xpose.msra.mxu0 0
    %2348 = vmatprep.subr.bf16.mxu0 0
    %2349 = vmatpush1.bf16.xpose.msra.mxu0 0
    %2350 = vmatprep.mubr.bf16.mxu0 0
    %2351 = vmatmul.mubr.bf16.gmra.mrb[0].mxu0 %v2301
    %v2352 = vpop.f32.mrb[0].mxu0
    %v2353 = vadd.f32 0.0, %v2352
    %v2354 = vpop.f32.mrb[0].mxu0
    %v2355 = vpop.f32.mrb[0].mxu0
    %v2356 = vadd.f32 0.0, %v2355
    %v2357 = vpop.f32.mrb[0].mxu0
    %2358 = vmatprep.mubr.bf16.mxu0 0
    %2359 = vmatmul.mubr.bf16.gmra.mrb[0].mxu0 %v2304
    %v2360 = vpop.f32.mrb[0].mxu0
    %v2361 = vadd.f32 0.0, %v2360
    %v2362 = vpop.f32.mrb[0].mxu0
    %v2363 = vpop.f32.mrb[0].mxu0
    %v2364 = vadd.f32 0.0, %v2363
    %v2365 = vpop.f32.mrb[0].mxu0
    %2366 = vmatprep.mubr.bf16.mxu0 0
    %2367 = vmatmul.mubr.bf16.gmra.mrb[0].mxu0 %v2307
    %v2368 = vpop.f32.mrb[0].mxu0
    %v2369 = vadd.f32 0.0, %v2368
    %v2370 = vpop.f32.mrb[0].mxu0
    %v2371 = vpop.f32.mrb[0].mxu0
    %v2372 = vadd.f32 0.0, %v2371
    %v2373 = vpop.f32.mrb[0].mxu0
    %2374 = vdwg.mxu0
    %2375 = vrot.lane.b32.xlu0 %v2277, 96
    %v2376 = vpop.permute.xlu0 %2375
    %2377 = vrot.lane.b32.xlu0 %v2279, 96
    %v2378 = vpop.permute.xlu0 %2377
    %2379 = vrot.lane.b32.xlu0 %v2281, 96
    %v2380 = vpop.permute.xlu0 %2379
    %v2382 = vsel %vm452, %v2277, 0
    %v2385 = vsel %vm452, %v2279, 0
    %v2388 = vsel %vm452, %v2281, 0
    %v2391 = vsel %vm452, %v2376, 0
    %v2394 = vsel %vm452, %v2378, 0
    %v2397 = vsel %vm452, %v2380, 0
    %2399 = vmatprep.subr.bf16.mxu0 0
    %2400 = vmatpush1.bf16.xpose.msra.mxu0 %v2391
    %2401 = vmatprep.subr.bf16.mxu0 0
    %2402 = vmatpush1.bf16.xpose.msra.mxu0 %v2394
    %2403 = vmatprep.subr.bf16.mxu0 0
    %2404 = vmatpush1.bf16.xpose.msra.mxu0 %v2397
    %2405 = vmatprep.subr.bf16.mxu0 0
    %2406 = vmatpush1.bf16.xpose.msra.mxu0 0
    %2407 = vmatprep.subr.bf16.mxu0 0
    %2408 = vmatpush1.bf16.xpose.msra.mxu0 0
    %2409 = vmatprep.subr.bf16.mxu0 0
    %2410 = vmatpush1.bf16.xpose.msra.mxu0 0
    %2411 = vmatprep.subr.bf16.mxu0 0
    %2412 = vmatpush1.bf16.xpose.msra.mxu0 0
    %2413 = vmatprep.subr.bf16.mxu0 0
    %2414 = vmatpush1.bf16.xpose.msra.mxu0 0
    %2415 = vmatprep.subr.bf16.mxu0 0
    %2416 = vmatpush1.bf16.xpose.msra.mxu0 0
    %2417 = vmatprep.subr.bf16.mxu0 0
    %2418 = vmatpush1.bf16.xpose.msra.mxu0 0
    %2419 = vmatprep.subr.bf16.mxu0 0
    %2420 = vmatpush1.bf16.xpose.msra.mxu0 0
    %2421 = vmatprep.subr.bf16.mxu0 0
    %2422 = vmatpush1.bf16.xpose.msra.mxu0 0
    %2423 = vmatprep.subr.bf16.mxu0 0
    %2424 = vmatpush1.bf16.xpose.msra.mxu0 0
    %2425 = vmatprep.subr.bf16.mxu0 0
    %2426 = vmatpush1.bf16.xpose.msra.mxu0 0
    %2427 = vmatprep.subr.bf16.mxu0 0
    %2428 = vmatpush1.bf16.xpose.msra.mxu0 0
    %2429 = vmatprep.subr.bf16.mxu0 0
    %2430 = vmatpush1.bf16.xpose.msra.mxu0 0
    %2431 = vmatprep.mubr.bf16.mxu0 0
    %2432 = vmatmul.mubr.bf16.gmra.mrb[0].mxu0 %v2382
    %v2433 = vpop.f32.mrb[0].mxu0
    %v2434 = vadd.f32 0.0, %v2433
    %v2435 = vpop.f32.mrb[0].mxu0
    %v2436 = vpop.f32.mrb[0].mxu0
    %v2437 = vadd.f32 0.0, %v2436
    %v2438 = vpop.f32.mrb[0].mxu0
    %2439 = vmatprep.mubr.bf16.mxu0 0
    %2440 = vmatmul.mubr.bf16.gmra.mrb[0].mxu0 %v2385
    %v2441 = vpop.f32.mrb[0].mxu0
    %v2442 = vadd.f32 0.0, %v2441
    %v2443 = vpop.f32.mrb[0].mxu0
    %v2444 = vpop.f32.mrb[0].mxu0
    %v2445 = vadd.f32 0.0, %v2444
    %v2446 = vpop.f32.mrb[0].mxu0
    %2447 = vmatprep.mubr.bf16.mxu0 0
    %2448 = vmatmul.mubr.bf16.gmra.mrb[0].mxu0 %v2388
    %v2449 = vpop.f32.mrb[0].mxu0
    %v2450 = vadd.f32 0.0, %v2449
    %v2451 = vpop.f32.mrb[0].mxu0
    %v2452 = vpop.f32.mrb[0].mxu0
    %v2453 = vadd.f32 0.0, %v2452
    %v2454 = vpop.f32.mrb[0].mxu0
    %2455 = vdwg.mxu0
    %2456 = vrot.lane.b32.xlu0 %v2283, 96
    %v2457 = vpop.permute.xlu0 %2456
    %2458 = vrot.lane.b32.xlu0 %v2285, 96
    %v2459 = vpop.permute.xlu0 %2458
    %2460 = vrot.lane.b32.xlu0 %v2287, 96
    %v2461 = vpop.permute.xlu0 %2460
    %v2463 = vsel %vm452, %v2283, 0
    %v2466 = vsel %vm452, %v2285, 0
    %v2469 = vsel %vm452, %v2287, 0
    %v2472 = vsel %vm452, %v2457, 0
    %v2475 = vsel %vm452, %v2459, 0
    %v2478 = vsel %vm452, %v2461, 0
    %2480 = vmatprep.subr.bf16.mxu0 0
    %2481 = vmatpush1.bf16.xpose.msra.mxu0 %v2472
    %2482 = vmatprep.subr.bf16.mxu0 0
    %2483 = vmatpush1.bf16.xpose.msra.mxu0 %v2475
    %2484 = vmatprep.subr.bf16.mxu0 0
    %2485 = vmatpush1.bf16.xpose.msra.mxu0 %v2478
    %2486 = vmatprep.subr.bf16.mxu0 0
    %2487 = vmatpush1.bf16.xpose.msra.mxu0 0
    %2488 = vmatprep.subr.bf16.mxu0 0
    %2489 = vmatpush1.bf16.xpose.msra.mxu0 0
    %2490 = vmatprep.subr.bf16.mxu0 0
    %2491 = vmatpush1.bf16.xpose.msra.mxu0 0
    %2492 = vmatprep.subr.bf16.mxu0 0
    %2493 = vmatpush1.bf16.xpose.msra.mxu0 0
    %2494 = vmatprep.subr.bf16.mxu0 0
    %2495 = vmatpush1.bf16.xpose.msra.mxu0 0
    %2496 = vmatprep.subr.bf16.mxu0 0
    %2497 = vmatpush1.bf16.xpose.msra.mxu0 0
    %2498 = vmatprep.subr.bf16.mxu0 0
    %2499 = vmatpush1.bf16.xpose.msra.mxu0 0
    %2500 = vmatprep.subr.bf16.mxu0 0
    %2501 = vmatpush1.bf16.xpose.msra.mxu0 0
    %2502 = vmatprep.subr.bf16.mxu0 0
    %2503 = vmatpush1.bf16.xpose.msra.mxu0 0
    %2504 = vmatprep.subr.bf16.mxu0 0
    %2505 = vmatpush1.bf16.xpose.msra.mxu0 0
    %2506 = vmatprep.subr.bf16.mxu0 0
    %2507 = vmatpush1.bf16.xpose.msra.mxu0 0
    %2508 = vmatprep.subr.bf16.mxu0 0
    %2509 = vmatpush1.bf16.xpose.msra.mxu0 0
    %2510 = vmatprep.subr.bf16.mxu0 0
    %2511 = vmatpush1.bf16.xpose.msra.mxu0 0
    %2512 = vmatprep.mubr.bf16.mxu0 0
    %2513 = vmatmul.mubr.bf16.gmra.mrb[0].mxu0 %v2463
    %v2514 = vpop.f32.mrb[0].mxu0
    %v2515 = vadd.f32 0.0, %v2514
    %v2516 = vpop.f32.mrb[0].mxu0
    %v2517 = vpop.f32.mrb[0].mxu0
    %v2518 = vadd.f32 0.0, %v2517
    %v2519 = vpop.f32.mrb[0].mxu0
    %2520 = vmatprep.mubr.bf16.mxu0 0
    %2521 = vmatmul.mubr.bf16.gmra.mrb[0].mxu0 %v2466
    %v2522 = vpop.f32.mrb[0].mxu0
    %v2523 = vadd.f32 0.0, %v2522
    %v2524 = vpop.f32.mrb[0].mxu0
    %v2525 = vpop.f32.mrb[0].mxu0
    %v2526 = vadd.f32 0.0, %v2525
    %v2527 = vpop.f32.mrb[0].mxu0
    %2528 = vmatprep.mubr.bf16.mxu0 0
    %2529 = vmatmul.mubr.bf16.gmra.mrb[0].mxu0 %v2469
    %v2530 = vpop.f32.mrb[0].mxu0
    %v2531 = vadd.f32 0.0, %v2530
    %v2532 = vpop.f32.mrb[0].mxu0
    %v2533 = vpop.f32.mrb[0].mxu0
    %v2534 = vadd.f32 0.0, %v2533
    %v2535 = vpop.f32.mrb[0].mxu0
    %2536 = vdwg.mxu0
    %2537 = vrot.lane.b32.xlu0 %v2289, 96
    %v2538 = vpop.permute.xlu0 %2537
    %2539 = vrot.lane.b32.xlu0 %v2291, 96
    %v2540 = vpop.permute.xlu0 %2539
    %2541 = vrot.lane.b32.xlu0 %v2293, 96
    %v2542 = vpop.permute.xlu0 %2541
    %v2544 = vsel %vm452, %v2289, 0
    %v2547 = vsel %vm452, %v2291, 0
    %v2550 = vsel %vm452, %v2293, 0
    %v2553 = vsel %vm452, %v2538, 0
    %v2556 = vsel %vm452, %v2540, 0
    %v2559 = vsel %vm452, %v2542, 0
    %2561 = vmatprep.subr.bf16.mxu0 0
    %2562 = vmatpush1.bf16.xpose.msra.mxu0 %v2553
    %2563 = vmatprep.subr.bf16.mxu0 0
    %2564 = vmatpush1.bf16.xpose.msra.mxu0 %v2556
    %2565 = vmatprep.subr.bf16.mxu0 0
    %2566 = vmatpush1.bf16.xpose.msra.mxu0 %v2559
    %2567 = vmatprep.subr.bf16.mxu0 0
    %2568 = vmatpush1.bf16.xpose.msra.mxu0 0
    %2569 = vmatprep.subr.bf16.mxu0 0
    %2570 = vmatpush1.bf16.xpose.msra.mxu0 0
    %2571 = vmatprep.subr.bf16.mxu0 0
    %2572 = vmatpush1.bf16.xpose.msra.mxu0 0
    %2573 = vmatprep.subr.bf16.mxu0 0
    %2574 = vmatpush1.bf16.xpose.msra.mxu0 0
    %2575 = vmatprep.subr.bf16.mxu0 0
    %2576 = vmatpush1.bf16.xpose.msra.mxu0 0
    %2577 = vmatprep.subr.bf16.mxu0 0
    %2578 = vmatpush1.bf16.xpose.msra.mxu0 0
    %2579 = vmatprep.subr.bf16.mxu0 0
    %2580 = vmatpush1.bf16.xpose.msra.mxu0 0
    %2581 = vmatprep.subr.bf16.mxu0 0
    %2582 = vmatpush1.bf16.xpose.msra.mxu0 0
    %2583 = vmatprep.subr.bf16.mxu0 0
    %2584 = vmatpush1.bf16.xpose.msra.mxu0 0
    %2585 = vmatprep.subr.bf16.mxu0 0
    %2586 = vmatpush1.bf16.xpose.msra.mxu0 0
    %2587 = vmatprep.subr.bf16.mxu0 0
    %2588 = vmatpush1.bf16.xpose.msra.mxu0 0
    %2589 = vmatprep.subr.bf16.mxu0 0
    %2590 = vmatpush1.bf16.xpose.msra.mxu0 0
    %2591 = vmatprep.subr.bf16.mxu0 0
    %2592 = vmatpush1.bf16.xpose.msra.mxu0 0
    %2593 = vmatprep.mubr.bf16.mxu0 0
    %2594 = vmatmul.mubr.bf16.gmra.mrb[0].mxu0 %v2544
    %v2595 = vpop.f32.mrb[0].mxu0
    %v2596 = vadd.f32 0.0, %v2595
    %v2597 = vpop.f32.mrb[0].mxu0
    %v2598 = vpop.f32.mrb[0].mxu0
    %v2599 = vadd.f32 0.0, %v2598
    %v2600 = vpop.f32.mrb[0].mxu0
    %2601 = vmatprep.mubr.bf16.mxu0 0
    %2602 = vmatmul.mubr.bf16.gmra.mrb[0].mxu0 %v2547
    %v2603 = vpop.f32.mrb[0].mxu0
    %v2604 = vadd.f32 0.0, %v2603
    %v2605 = vpop.f32.mrb[0].mxu0
    %v2606 = vpop.f32.mrb[0].mxu0
    %v2607 = vadd.f32 0.0, %v2606
    %v2608 = vpop.f32.mrb[0].mxu0
    %2609 = vmatprep.mubr.bf16.mxu0 0
    %2610 = vmatmul.mubr.bf16.gmra.mrb[0].mxu0 %v2550
    %v2611 = vpop.f32.mrb[0].mxu0
    %v2612 = vadd.f32 0.0, %v2611
    %v2613 = vpop.f32.mrb[0].mxu0
    %v2614 = vpop.f32.mrb[0].mxu0
    %v2615 = vadd.f32 0.0, %v2614
    %v2616 = vpop.f32.mrb[0].mxu0
    %2617 = vdwg.mxu0
    %v2618 = vmul.f32 %v2353, 0.35355338
    %v2619 = vmul.f32 %v2356, 0.35355338
    %v2620 = vmul.f32 %v2361, 0.35355338
    %v2621 = vmul.f32 %v2364, 0.35355338
    %v2622 = vmul.f32 %v2369, 0.35355338
    %v2623 = vmul.f32 %v2372, 0.35355338
    %v2624 = vmul.f32 %v2434, 0.35355338
    %v2625 = vmul.f32 %v2437, 0.35355338
    %v2626 = vmul.f32 %v2442, 0.35355338
    %v2627 = vmul.f32 %v2445, 0.35355338
    %v2628 = vmul.f32 %v2450, 0.35355338
    %v2629 = vmul.f32 %v2453, 0.35355338
    %v2630 = vmul.f32 %v2515, 0.35355338
    %v2631 = vmul.f32 %v2518, 0.35355338
    %v2632 = vmul.f32 %v2523, 0.35355338
    %v2633 = vmul.f32 %v2526, 0.35355338
    %v2634 = vmul.f32 %v2531, 0.35355338
    %v2635 = vmul.f32 %v2534, 0.35355338
    %v2636 = vmul.f32 %v2596, 0.35355338
    %v2637 = vmul.f32 %v2599, 0.35355338
    %v2638 = vmul.f32 %v2604, 0.35355338
    %v2639 = vmul.f32 %v2607, 0.35355338
    %v2640 = vmul.f32 %v2612, 0.35355338
    %v2641 = vmul.f32 %v2615, 0.35355338
    %v2642 = vadd.f32 %v2618, %v226
    %v2643 = vadd.f32 %v2619, %v227
    %v2644 = vadd.f32 %v2620, %v228
    %v2645 = vadd.f32 %v2621, %v229
    %v2646 = vadd.f32 %v2622, %v230
    %v2647 = vadd.f32 %v2623, %v231
    %v2648 = vadd.f32 %v2624, %v226
    %v2649 = vadd.f32 %v2625, %v227
    %v2650 = vadd.f32 %v2626, %v228
    %v2651 = vadd.f32 %v2627, %v229
    %v2652 = vadd.f32 %v2628, %v230
    %v2653 = vadd.f32 %v2629, %v231
    %v2654 = vadd.f32 %v2630, %v226
    %v2655 = vadd.f32 %v2631, %v227
    %v2656 = vadd.f32 %v2632, %v228
    %v2657 = vadd.f32 %v2633, %v229
    %v2658 = vadd.f32 %v2634, %v230
    %v2659 = vadd.f32 %v2635, %v231
    %v2660 = vadd.f32 %v2636, %v226
    %v2661 = vadd.f32 %v2637, %v227
    %v2662 = vadd.f32 %v2638, %v228
    %v2663 = vadd.f32 %v2639, %v229
    %v2664 = vadd.f32 %v2640, %v230
    %v2665 = vadd.f32 %v2641, %v231
    %v2666 = vsel %vm819, %v2642, -inf
    %2667 = vmax.xlane.f32.xlu0 %v2666
    %v2668 = vpop.xlane.xlu0 %2667
    %v2669 = vsel %vm819, %v2643, -inf
    %2670 = vmax.xlane.f32.xlu0 %v2669
    %v2671 = vpop.xlane.xlu0 %2670
    %v2672 = vsel %vm819, %v2644, -inf
    %2673 = vmax.xlane.f32.xlu0 %v2672
    %v2674 = vpop.xlane.xlu0 %2673
    %v2675 = vsel %vm819, %v2645, -inf
    %2676 = vmax.xlane.f32.xlu0 %v2675
    %v2677 = vpop.xlane.xlu0 %2676
    %v2678 = vsel %vm819, %v2646, -inf
    %2679 = vmax.xlane.f32.xlu0 %v2678
    %v2680 = vpop.xlane.xlu0 %2679
    %v2681 = vsel %vm819, %v2647, -inf
    %2682 = vmax.xlane.f32.xlu0 %v2681
    %v2683 = vpop.xlane.xlu0 %2682
    %v2684 = vsel %vm819, %v2648, -inf
    %2685 = vmax.xlane.f32.xlu0 %v2684
    %v2686 = vpop.xlane.xlu0 %2685
    %v2687 = vsel %vm819, %v2649, -inf
    %2688 = vmax.xlane.f32.xlu0 %v2687
    %v2689 = vpop.xlane.xlu0 %2688
    %v2690 = vsel %vm819, %v2650, -inf
    %2691 = vmax.xlane.f32.xlu0 %v2690
    %v2692 = vpop.xlane.xlu0 %2691
    %v2693 = vsel %vm819, %v2651, -inf
    %2694 = vmax.xlane.f32.xlu0 %v2693
    %v2695 = vpop.xlane.xlu0 %2694
    %v2696 = vsel %vm819, %v2652, -inf
    %2697 = vmax.xlane.f32.xlu0 %v2696
    %v2698 = vpop.xlane.xlu0 %2697
    %v2699 = vsel %vm819, %v2653, -inf
    %2700 = vmax.xlane.f32.xlu0 %v2699
    %v2701 = vpop.xlane.xlu0 %2700
    %v2702 = vsel %vm819, %v2654, -inf
    %2703 = vmax.xlane.f32.xlu0 %v2702
    %v2704 = vpop.xlane.xlu0 %2703
    %v2705 = vsel %vm819, %v2655, -inf
    %2706 = vmax.xlane.f32.xlu0 %v2705
    %v2707 = vpop.xlane.xlu0 %2706
    %v2708 = vsel %vm819, %v2656, -inf
    %2709 = vmax.xlane.f32.xlu0 %v2708
    %v2710 = vpop.xlane.xlu0 %2709
    %v2711 = vsel %vm819, %v2657, -inf
    %2712 = vmax.xlane.f32.xlu0 %v2711
    %v2713 = vpop.xlane.xlu0 %2712
    %v2714 = vsel %vm819, %v2658, -inf
    %2715 = vmax.xlane.f32.xlu0 %v2714
    %v2716 = vpop.xlane.xlu0 %2715
    %v2717 = vsel %vm819, %v2659, -inf
    %2718 = vmax.xlane.f32.xlu0 %v2717
    %v2719 = vpop.xlane.xlu0 %2718
    %v2720 = vsel %vm819, %v2660, -inf
    %2721 = vmax.xlane.f32.xlu0 %v2720
    %v2722 = vpop.xlane.xlu0 %2721
    %v2723 = vsel %vm819, %v2661, -inf
    %2724 = vmax.xlane.f32.xlu0 %v2723
    %v2725 = vpop.xlane.xlu0 %2724
    %v2726 = vsel %vm819, %v2662, -inf
    %2727 = vmax.xlane.f32.xlu0 %v2726
    %v2728 = vpop.xlane.xlu0 %2727
    %v2729 = vsel %vm819, %v2663, -inf
    %2730 = vmax.xlane.f32.xlu0 %v2729
    %v2731 = vpop.xlane.xlu0 %2730
    %v2732 = vsel %vm819, %v2664, -inf
    %2733 = vmax.xlane.f32.xlu0 %v2732
    %v2734 = vpop.xlane.xlu0 %2733
    %v2735 = vsel %vm819, %v2665, -inf
    %2736 = vmax.xlane.f32.xlu0 %v2735
    %v2737 = vpop.xlane.xlu0 %2736
    %v2738 = vsub.f32 %v2642, %v2668
    %v2739 = vsub.f32 %v2643, %v2671
    %v2740 = vsub.f32 %v2644, %v2674
    %v2741 = vsub.f32 %v2645, %v2677
    %v2742 = vsub.f32 %v2646, %v2680
    %v2743 = vsub.f32 %v2647, %v2683
    %v2744 = vsub.f32 %v2648, %v2686
    %v2745 = vsub.f32 %v2649, %v2689
    %v2746 = vsub.f32 %v2650, %v2692
    %v2747 = vsub.f32 %v2651, %v2695
    %v2748 = vsub.f32 %v2652, %v2698
    %v2749 = vsub.f32 %v2653, %v2701
    %v2750 = vsub.f32 %v2654, %v2704
    %v2751 = vsub.f32 %v2655, %v2707
    %v2752 = vsub.f32 %v2656, %v2710
    %v2753 = vsub.f32 %v2657, %v2713
    %v2754 = vsub.f32 %v2658, %v2716
    %v2755 = vsub.f32 %v2659, %v2719
    %v2756 = vsub.f32 %v2660, %v2722
    %v2757 = vsub.f32 %v2661, %v2725
    %v2758 = vsub.f32 %v2662, %v2728
    %v2759 = vsub.f32 %v2663, %v2731
    %v2760 = vsub.f32 %v2664, %v2734
    %v2761 = vsub.f32 %v2665, %v2737
    %v2762 = vmul.f32 %v2738, 1.442695
    %v2763 = vpow.pop %v2762
    %v2764 = vmul.f32 %v2739, 1.442695
    %v2765 = vpow.pop %v2764
    %v2766 = vmul.f32 %v2740, 1.442695
    %v2767 = vpow.pop %v2766
    %v2768 = vmul.f32 %v2741, 1.442695
    %v2769 = vpow.pop %v2768
    %v2770 = vmul.f32 %v2742, 1.442695
    %v2771 = vpow.pop %v2770
    %v2772 = vmul.f32 %v2743, 1.442695
    %v2773 = vpow.pop %v2772
    %v2774 = vmul.f32 %v2744, 1.442695
    %v2775 = vpow.pop %v2774
    %v2776 = vmul.f32 %v2745, 1.442695
    %v2777 = vpow.pop %v2776
    %v2778 = vmul.f32 %v2746, 1.442695
    %v2779 = vpow.pop %v2778
    %v2780 = vmul.f32 %v2747, 1.442695
    %v2781 = vpow.pop %v2780
    %v2782 = vmul.f32 %v2748, 1.442695
    %v2783 = vpow.pop %v2782
    %v2784 = vmul.f32 %v2749, 1.442695
    %v2785 = vpow.pop %v2784
    %v2786 = vmul.f32 %v2750, 1.442695
    %v2787 = vpow.pop %v2786
    %v2788 = vmul.f32 %v2751, 1.442695
    %v2789 = vpow.pop %v2788
    %v2790 = vmul.f32 %v2752, 1.442695
    %v2791 = vpow.pop %v2790
    %v2792 = vmul.f32 %v2753, 1.442695
    %v2793 = vpow.pop %v2792
    %v2794 = vmul.f32 %v2754, 1.442695
    %v2795 = vpow.pop %v2794
    %v2796 = vmul.f32 %v2755, 1.442695
    %v2797 = vpow.pop %v2796
    %v2798 = vmul.f32 %v2756, 1.442695
    %v2799 = vpow.pop %v2798
    %v2800 = vmul.f32 %v2757, 1.442695
    %v2801 = vpow.pop %v2800
    %v2802 = vmul.f32 %v2758, 1.442695
    %v2803 = vpow.pop %v2802
    %v2804 = vmul.f32 %v2759, 1.442695
    %v2805 = vpow.pop %v2804
    %v2806 = vmul.f32 %v2760, 1.442695
    %v2807 = vpow.pop %v2806
    %v2808 = vmul.f32 %v2761, 1.442695
    %v2809 = vpow.pop %v2808
    %v2810 = vsel %vm819, %v2763, 0.0
    %2811 = vadd.xlane.f32.xlu0 %v2810
    %v2812 = vpop.xlane.xlu0 %2811
    %v2813 = vsel %vm819, %v2765, 0.0
    %2814 = vadd.xlane.f32.xlu0 %v2813
    %v2815 = vpop.xlane.xlu0 %2814
    %v2816 = vsel %vm819, %v2767, 0.0
    %2817 = vadd.xlane.f32.xlu0 %v2816
    %v2818 = vpop.xlane.xlu0 %2817
    %v2819 = vsel %vm819, %v2769, 0.0
    %2820 = vadd.xlane.f32.xlu0 %v2819
    %v2821 = vpop.xlane.xlu0 %2820
    %v2822 = vsel %vm819, %v2771, 0.0
    %2823 = vadd.xlane.f32.xlu0 %v2822
    %v2824 = vpop.xlane.xlu0 %2823
    %v2825 = vsel %vm819, %v2773, 0.0
    %2826 = vadd.xlane.f32.xlu0 %v2825
    %v2827 = vpop.xlane.xlu0 %2826
    %v2828 = vsel %vm819, %v2775, 0.0
    %2829 = vadd.xlane.f32.xlu0 %v2828
    %v2830 = vpop.xlane.xlu0 %2829
    %v2831 = vsel %vm819, %v2777, 0.0
    %2832 = vadd.xlane.f32.xlu0 %v2831
    %v2833 = vpop.xlane.xlu0 %2832
    %v2834 = vsel %vm819, %v2779, 0.0
    %2835 = vadd.xlane.f32.xlu0 %v2834
    %v2836 = vpop.xlane.xlu0 %2835
    %v2837 = vsel %vm819, %v2781, 0.0
    %2838 = vadd.xlane.f32.xlu0 %v2837
    %v2839 = vpop.xlane.xlu0 %2838
    %v2840 = vsel %vm819, %v2783, 0.0
    %2841 = vadd.xlane.f32.xlu0 %v2840
    %v2842 = vpop.xlane.xlu0 %2841
    %v2843 = vsel %vm819, %v2785, 0.0
    %2844 = vadd.xlane.f32.xlu0 %v2843
    %v2845 = vpop.xlane.xlu0 %2844
    %v2846 = vsel %vm819, %v2787, 0.0
    %2847 = vadd.xlane.f32.xlu0 %v2846
    %v2848 = vpop.xlane.xlu0 %2847
    %v2849 = vsel %vm819, %v2789, 0.0
    %2850 = vadd.xlane.f32.xlu0 %v2849
    %v2851 = vpop.xlane.xlu0 %2850
    %v2852 = vsel %vm819, %v2791, 0.0
    %2853 = vadd.xlane.f32.xlu0 %v2852
    %v2854 = vpop.xlane.xlu0 %2853
    %v2855 = vsel %vm819, %v2793, 0.0
    %2856 = vadd.xlane.f32.xlu0 %v2855
    %v2857 = vpop.xlane.xlu0 %2856
    %v2858 = vsel %vm819, %v2795, 0.0
    %2859 = vadd.xlane.f32.xlu0 %v2858
    %v2860 = vpop.xlane.xlu0 %2859
    %v2861 = vsel %vm819, %v2797, 0.0
    %2862 = vadd.xlane.f32.xlu0 %v2861
    %v2863 = vpop.xlane.xlu0 %2862
    %v2864 = vsel %vm819, %v2799, 0.0
    %2865 = vadd.xlane.f32.xlu0 %v2864
    %v2866 = vpop.xlane.xlu0 %2865
    %v2867 = vsel %vm819, %v2801, 0.0
    %2868 = vadd.xlane.f32.xlu0 %v2867
    %v2869 = vpop.xlane.xlu0 %2868
    %v2870 = vsel %vm819, %v2803, 0.0
    %2871 = vadd.xlane.f32.xlu0 %v2870
    %v2872 = vpop.xlane.xlu0 %2871
    %v2873 = vsel %vm819, %v2805, 0.0
    %2874 = vadd.xlane.f32.xlu0 %v2873
    %v2875 = vpop.xlane.xlu0 %2874
    %v2876 = vsel %vm819, %v2807, 0.0
    %2877 = vadd.xlane.f32.xlu0 %v2876
    %v2878 = vpop.xlane.xlu0 %2877
    %v2879 = vsel %vm819, %v2809, 0.0
    %2880 = vadd.xlane.f32.xlu0 %v2879
    %v2881 = vpop.xlane.xlu0 %2880
    %v2882 = vrcp.pop %v2812
    %v2883 = vrcp.pop %v2815
    %v2884 = vrcp.pop %v2818
    %v2885 = vrcp.pop %v2821
    %v2886 = vrcp.pop %v2824
    %v2887 = vrcp.pop %v2827
    %v2888 = vrcp.pop %v2830
    %v2889 = vrcp.pop %v2833
    %v2890 = vrcp.pop %v2836
    %v2891 = vrcp.pop %v2839
    %v2892 = vrcp.pop %v2842
    %v2893 = vrcp.pop %v2845
    %v2894 = vrcp.pop %v2848
    %v2895 = vrcp.pop %v2851
    %v2896 = vrcp.pop %v2854
    %v2897 = vrcp.pop %v2857
    %v2898 = vrcp.pop %v2860
    %v2899 = vrcp.pop %v2863
    %v2900 = vrcp.pop %v2866
    %v2901 = vrcp.pop %v2869
    %v2902 = vrcp.pop %v2872
    %v2903 = vrcp.pop %v2875
    %v2904 = vrcp.pop %v2878
    %v2905 = vrcp.pop %v2881
    %v2906 = vmul.f32 %v2763, %v2882
    %v2907 = vmul.f32 %v2765, %v2883
    %v2908 = vmul.f32 %v2767, %v2884
    %v2909 = vmul.f32 %v2769, %v2885
    %v2910 = vmul.f32 %v2771, %v2886
    %v2911 = vmul.f32 %v2773, %v2887
    %v2912 = vmul.f32 %v2775, %v2888
    %v2913 = vmul.f32 %v2777, %v2889
    %v2914 = vmul.f32 %v2779, %v2890
    %v2915 = vmul.f32 %v2781, %v2891
    %v2916 = vmul.f32 %v2783, %v2892
    %v2917 = vmul.f32 %v2785, %v2893
    %v2918 = vmul.f32 %v2787, %v2894
    %v2919 = vmul.f32 %v2789, %v2895
    %v2920 = vmul.f32 %v2791, %v2896
    %v2921 = vmul.f32 %v2793, %v2897
    %v2922 = vmul.f32 %v2795, %v2898
    %v2923 = vmul.f32 %v2797, %v2899
    %v2924 = vmul.f32 %v2799, %v2900
    %v2925 = vmul.f32 %v2801, %v2901
    %v2926 = vmul.f32 %v2803, %v2902
    %v2927 = vmul.f32 %v2805, %v2903
    %v2928 = vmul.f32 %v2807, %v2904
    %v2929 = vmul.f32 %v2809, %v2905
    %v2930 = vpack.c.bf16 %v2907, %v2906
    %v2931 = vpack.c.bf16 %v2909, %v2908
    %v2932 = vpack.c.bf16 %v2911, %v2910
    %v2933 = vpack.c.bf16 %v2913, %v2912
    %v2934 = vpack.c.bf16 %v2915, %v2914
    %v2935 = vpack.c.bf16 %v2917, %v2916
    %v2936 = vpack.c.bf16 %v2919, %v2918
    %v2937 = vpack.c.bf16 %v2921, %v2920
    %v2938 = vpack.c.bf16 %v2923, %v2922
    %v2939 = vpack.c.bf16 %v2925, %v2924
    %v2940 = vpack.c.bf16 %v2927, %v2926
    %v2941 = vpack.c.bf16 %v2929, %v2928
    %2942 = vrot.lane.b32.xlu0 %v2270, 64
    %v2943 = vpop.permute.xlu0 %2942
    %2944 = vrot.lane.b32.xlu0 %v2271, 64
    %v2945 = vpop.permute.xlu0 %2944
    %2946 = vrot.lane.b32.xlu0 %v2272, 64
    %v2947 = vpop.permute.xlu0 %2946
    %v2952 = vsel %vm819, %v2930, 0
    %v2955 = vsel %vm819, %v2931, 0
    %v2958 = vsel %vm819, %v2932, 0
    %2960 = vmatprep.subr.bf16.mxu0 0
    %2961 = vmatpush1.bf16.msra.mxu0 %v2943
    %2962 = vmatprep.subr.bf16.mxu0 0
    %2963 = vmatpush1.bf16.msra.mxu0 %v2945
    %2964 = vmatprep.subr.bf16.mxu0 0
    %2965 = vmatpush1.bf16.msra.mxu0 %v2947
    %2966 = vmatprep.subr.bf16.mxu0 0
    %2967 = vmatpush1.bf16.msra.mxu0 0
    %2968 = vmatprep.subr.bf16.mxu0 0
    %2969 = vmatpush1.bf16.msra.mxu0 0
    %2970 = vmatprep.subr.bf16.mxu0 0
    %2971 = vmatpush1.bf16.msra.mxu0 0
    %2972 = vmatprep.subr.bf16.mxu0 0
    %2973 = vmatpush1.bf16.msra.mxu0 0
    %2974 = vmatprep.subr.bf16.mxu0 0
    %2975 = vmatpush1.bf16.msra.mxu0 0
    %2976 = vmatprep.subr.bf16.mxu0 0
    %2977 = vmatpush1.bf16.msra.mxu0 0
    %2978 = vmatprep.subr.bf16.mxu0 0
    %2979 = vmatpush1.bf16.msra.mxu0 0
    %2980 = vmatprep.subr.bf16.mxu0 0
    %2981 = vmatpush1.bf16.msra.mxu0 0
    %2982 = vmatprep.subr.bf16.mxu0 0
    %2983 = vmatpush1.bf16.msra.mxu0 0
    %2984 = vmatprep.subr.bf16.mxu0 0
    %2985 = vmatpush1.bf16.msra.mxu0 0
    %2986 = vmatprep.subr.bf16.mxu0 0
    %2987 = vmatpush1.bf16.msra.mxu0 0
    %2988 = vmatprep.subr.bf16.mxu0 0
    %2989 = vmatpush1.bf16.msra.mxu0 0
    %2990 = vmatprep.subr.bf16.mxu0 0
    %2991 = vmatpush1.bf16.msra.mxu0 0
    %2992 = vmatprep.mubr.bf16.mxu0 0
    %2993 = vmatmul.mubr.bf16.gmra.mrb[0].mxu0 %v2952
    %v2994 = vpop.f32.mrb[0].mxu0
    %v2995 = vadd.f32 0.0, %v2994
    %v2996 = vpop.f32.mrb[0].mxu0
    %v2997 = vpop.f32.mrb[0].mxu0
    %v2998 = vadd.f32 0.0, %v2997
    %v2999 = vpop.f32.mrb[0].mxu0
    %3000 = vmatprep.mubr.bf16.mxu0 0
    %3001 = vmatmul.mubr.bf16.gmra.mrb[0].mxu0 %v2955
    %v3002 = vpop.f32.mrb[0].mxu0
    %v3003 = vadd.f32 0.0, %v3002
    %v3004 = vpop.f32.mrb[0].mxu0
    %v3005 = vpop.f32.mrb[0].mxu0
    %v3006 = vadd.f32 0.0, %v3005
    %v3007 = vpop.f32.mrb[0].mxu0
    %3008 = vmatprep.mubr.bf16.mxu0 0
    %3009 = vmatmul.mubr.bf16.gmra.mrb[0].mxu0 %v2958
    %v3010 = vpop.f32.mrb[0].mxu0
    %v3011 = vadd.f32 0.0, %v3010
    %v3012 = vpop.f32.mrb[0].mxu0
    %v3013 = vpop.f32.mrb[0].mxu0
    %v3014 = vadd.f32 0.0, %v3013
    %v3015 = vpop.f32.mrb[0].mxu0
    %3016 = vdwg.mxu0
    %3017 = vrot.lane.b32.xlu0 %v2277, 64
    %v3018 = vpop.permute.xlu0 %3017
    %3019 = vrot.lane.b32.xlu0 %v2279, 64
    %v3020 = vpop.permute.xlu0 %3019
    %3021 = vrot.lane.b32.xlu0 %v2281, 64
    %v3022 = vpop.permute.xlu0 %3021
    %v3027 = vsel %vm819, %v2933, 0
    %v3030 = vsel %vm819, %v2934, 0
    %v3033 = vsel %vm819, %v2935, 0
    %3035 = vmatprep.subr.bf16.mxu0 0
    %3036 = vmatpush1.bf16.msra.mxu0 %v3018
    %3037 = vmatprep.subr.bf16.mxu0 0
    %3038 = vmatpush1.bf16.msra.mxu0 %v3020
    %3039 = vmatprep.subr.bf16.mxu0 0
    %3040 = vmatpush1.bf16.msra.mxu0 %v3022
    %3041 = vmatprep.subr.bf16.mxu0 0
    %3042 = vmatpush1.bf16.msra.mxu0 0
    %3043 = vmatprep.subr.bf16.mxu0 0
    %3044 = vmatpush1.bf16.msra.mxu0 0
    %3045 = vmatprep.subr.bf16.mxu0 0
    %3046 = vmatpush1.bf16.msra.mxu0 0
    %3047 = vmatprep.subr.bf16.mxu0 0
    %3048 = vmatpush1.bf16.msra.mxu0 0
    %3049 = vmatprep.subr.bf16.mxu0 0
    %3050 = vmatpush1.bf16.msra.mxu0 0
    %3051 = vmatprep.subr.bf16.mxu0 0
    %3052 = vmatpush1.bf16.msra.mxu0 0
    %3053 = vmatprep.subr.bf16.mxu0 0
    %3054 = vmatpush1.bf16.msra.mxu0 0
    %3055 = vmatprep.subr.bf16.mxu0 0
    %3056 = vmatpush1.bf16.msra.mxu0 0
    %3057 = vmatprep.subr.bf16.mxu0 0
    %3058 = vmatpush1.bf16.msra.mxu0 0
    %3059 = vmatprep.subr.bf16.mxu0 0
    %3060 = vmatpush1.bf16.msra.mxu0 0
    %3061 = vmatprep.subr.bf16.mxu0 0
    %3062 = vmatpush1.bf16.msra.mxu0 0
    %3063 = vmatprep.subr.bf16.mxu0 0
    %3064 = vmatpush1.bf16.msra.mxu0 0
    %3065 = vmatprep.subr.bf16.mxu0 0
    %3066 = vmatpush1.bf16.msra.mxu0 0
    %3067 = vmatprep.mubr.bf16.mxu0 0
    %3068 = vmatmul.mubr.bf16.gmra.mrb[0].mxu0 %v3027
    %v3069 = vpop.f32.mrb[0].mxu0
    %v3070 = vadd.f32 0.0, %v3069
    %v3071 = vpop.f32.mrb[0].mxu0
    %v3072 = vpop.f32.mrb[0].mxu0
    %v3073 = vadd.f32 0.0, %v3072
    %v3074 = vpop.f32.mrb[0].mxu0
    %3075 = vmatprep.mubr.bf16.mxu0 0
    %3076 = vmatmul.mubr.bf16.gmra.mrb[0].mxu0 %v3030
    %v3077 = vpop.f32.mrb[0].mxu0
    %v3078 = vadd.f32 0.0, %v3077
    %v3079 = vpop.f32.mrb[0].mxu0
    %v3080 = vpop.f32.mrb[0].mxu0
    %v3081 = vadd.f32 0.0, %v3080
    %v3082 = vpop.f32.mrb[0].mxu0
    %3083 = vmatprep.mubr.bf16.mxu0 0
    %3084 = vmatmul.mubr.bf16.gmra.mrb[0].mxu0 %v3033
    %v3085 = vpop.f32.mrb[0].mxu0
    %v3086 = vadd.f32 0.0, %v3085
    %v3087 = vpop.f32.mrb[0].mxu0
    %v3088 = vpop.f32.mrb[0].mxu0
    %v3089 = vadd.f32 0.0, %v3088
    %v3090 = vpop.f32.mrb[0].mxu0
    %3091 = vdwg.mxu0
    %3092 = vrot.lane.b32.xlu0 %v2283, 64
    %v3093 = vpop.permute.xlu0 %3092
    %3094 = vrot.lane.b32.xlu0 %v2285, 64
    %v3095 = vpop.permute.xlu0 %3094
    %3096 = vrot.lane.b32.xlu0 %v2287, 64
    %v3097 = vpop.permute.xlu0 %3096
    %v3102 = vsel %vm819, %v2936, 0
    %v3105 = vsel %vm819, %v2937, 0
    %v3108 = vsel %vm819, %v2938, 0
    %3110 = vmatprep.subr.bf16.mxu0 0
    %3111 = vmatpush1.bf16.msra.mxu0 %v3093
    %3112 = vmatprep.subr.bf16.mxu0 0
    %3113 = vmatpush1.bf16.msra.mxu0 %v3095
    %3114 = vmatprep.subr.bf16.mxu0 0
    %3115 = vmatpush1.bf16.msra.mxu0 %v3097
    %3116 = vmatprep.subr.bf16.mxu0 0
    %3117 = vmatpush1.bf16.msra.mxu0 0
    %3118 = vmatprep.subr.bf16.mxu0 0
    %3119 = vmatpush1.bf16.msra.mxu0 0
    %3120 = vmatprep.subr.bf16.mxu0 0
    %3121 = vmatpush1.bf16.msra.mxu0 0
    %3122 = vmatprep.subr.bf16.mxu0 0
    %3123 = vmatpush1.bf16.msra.mxu0 0
    %3124 = vmatprep.subr.bf16.mxu0 0
    %3125 = vmatpush1.bf16.msra.mxu0 0
    %3126 = vmatprep.subr.bf16.mxu0 0
    %3127 = vmatpush1.bf16.msra.mxu0 0
    %3128 = vmatprep.subr.bf16.mxu0 0
    %3129 = vmatpush1.bf16.msra.mxu0 0
    %3130 = vmatprep.subr.bf16.mxu0 0
    %3131 = vmatpush1.bf16.msra.mxu0 0
    %3132 = vmatprep.subr.bf16.mxu0 0
    %3133 = vmatpush1.bf16.msra.mxu0 0
    %3134 = vmatprep.subr.bf16.mxu0 0
    %3135 = vmatpush1.bf16.msra.mxu0 0
    %3136 = vmatprep.subr.bf16.mxu0 0
    %3137 = vmatpush1.bf16.msra.mxu0 0
    %3138 = vmatprep.subr.bf16.mxu0 0
    %3139 = vmatpush1.bf16.msra.mxu0 0
    %3140 = vmatprep.subr.bf16.mxu0 0
    %3141 = vmatpush1.bf16.msra.mxu0 0
    %3142 = vmatprep.mubr.bf16.mxu0 0
    %3143 = vmatmul.mubr.bf16.gmra.mrb[0].mxu0 %v3102
    %v3144 = vpop.f32.mrb[0].mxu0
    %v3145 = vadd.f32 0.0, %v3144
    %v3146 = vpop.f32.mrb[0].mxu0
    %v3147 = vpop.f32.mrb[0].mxu0
    %v3148 = vadd.f32 0.0, %v3147
    %v3149 = vpop.f32.mrb[0].mxu0
    %3150 = vmatprep.mubr.bf16.mxu0 0
    %3151 = vmatmul.mubr.bf16.gmra.mrb[0].mxu0 %v3105
    %v3152 = vpop.f32.mrb[0].mxu0
    %v3153 = vadd.f32 0.0, %v3152
    %v3154 = vpop.f32.mrb[0].mxu0
    %v3155 = vpop.f32.mrb[0].mxu0
    %v3156 = vadd.f32 0.0, %v3155
    %v3157 = vpop.f32.mrb[0].mxu0
    %3158 = vmatprep.mubr.bf16.mxu0 0
    %3159 = vmatmul.mubr.bf16.gmra.mrb[0].mxu0 %v3108
    %v3160 = vpop.f32.mrb[0].mxu0
    %v3161 = vadd.f32 0.0, %v3160
    %v3162 = vpop.f32.mrb[0].mxu0
    %v3163 = vpop.f32.mrb[0].mxu0
    %v3164 = vadd.f32 0.0, %v3163
    %v3165 = vpop.f32.mrb[0].mxu0
    %3166 = vdwg.mxu0
    %3167 = vrot.lane.b32.xlu0 %v2289, 64
    %v3168 = vpop.permute.xlu0 %3167
    %3169 = vrot.lane.b32.xlu0 %v2291, 64
    %v3170 = vpop.permute.xlu0 %3169
    %3171 = vrot.lane.b32.xlu0 %v2293, 64
    %v3172 = vpop.permute.xlu0 %3171
    %v3177 = vsel %vm819, %v2939, 0
    %v3180 = vsel %vm819, %v2940, 0
    %v3183 = vsel %vm819, %v2941, 0
    %3185 = vmatprep.subr.bf16.mxu0 0
    %3186 = vmatpush1.bf16.msra.mxu0 %v3168
    %3187 = vmatprep.subr.bf16.mxu0 0
    %3188 = vmatpush1.bf16.msra.mxu0 %v3170
    %3189 = vmatprep.subr.bf16.mxu0 0
    %3190 = vmatpush1.bf16.msra.mxu0 %v3172
    %3191 = vmatprep.subr.bf16.mxu0 0
    %3192 = vmatpush1.bf16.msra.mxu0 0
    %3193 = vmatprep.subr.bf16.mxu0 0
    %3194 = vmatpush1.bf16.msra.mxu0 0
    %3195 = vmatprep.subr.bf16.mxu0 0
    %3196 = vmatpush1.bf16.msra.mxu0 0
    %3197 = vmatprep.subr.bf16.mxu0 0
    %3198 = vmatpush1.bf16.msra.mxu0 0
    %3199 = vmatprep.subr.bf16.mxu0 0
    %3200 = vmatpush1.bf16.msra.mxu0 0
    %3201 = vmatprep.subr.bf16.mxu0 0
    %3202 = vmatpush1.bf16.msra.mxu0 0
    %3203 = vmatprep.subr.bf16.mxu0 0
    %3204 = vmatpush1.bf16.msra.mxu0 0
    %3205 = vmatprep.subr.bf16.mxu0 0
    %3206 = vmatpush1.bf16.msra.mxu0 0
    %3207 = vmatprep.subr.bf16.mxu0 0
    %3208 = vmatpush1.bf16.msra.mxu0 0
    %3209 = vmatprep.subr.bf16.mxu0 0
    %3210 = vmatpush1.bf16.msra.mxu0 0
    %3211 = vmatprep.subr.bf16.mxu0 0
    %3212 = vmatpush1.bf16.msra.mxu0 0
    %3213 = vmatprep.subr.bf16.mxu0 0
    %3214 = vmatpush1.bf16.msra.mxu0 0
    %3215 = vmatprep.subr.bf16.mxu0 0
    %3216 = vmatpush1.bf16.msra.mxu0 0
    %3217 = vmatprep.mubr.bf16.mxu0 0
    %3218 = vmatmul.mubr.bf16.gmra.mrb[0].mxu0 %v3177
    %v3219 = vpop.f32.mrb[0].mxu0
    %v3220 = vadd.f32 0.0, %v3219
    %v3221 = vpop.f32.mrb[0].mxu0
    %v3222 = vpop.f32.mrb[0].mxu0
    %v3223 = vadd.f32 0.0, %v3222
    %v3224 = vpop.f32.mrb[0].mxu0
    %3225 = vmatprep.mubr.bf16.mxu0 0
    %3226 = vmatmul.mubr.bf16.gmra.mrb[0].mxu0 %v3180
    %v3227 = vpop.f32.mrb[0].mxu0
    %v3228 = vadd.f32 0.0, %v3227
    %v3229 = vpop.f32.mrb[0].mxu0
    %v3230 = vpop.f32.mrb[0].mxu0
    %v3231 = vadd.f32 0.0, %v3230
    %v3232 = vpop.f32.mrb[0].mxu0
    %3233 = vmatprep.mubr.bf16.mxu0 0
    %3234 = vmatmul.mubr.bf16.gmra.mrb[0].mxu0 %v3183
    %v3235 = vpop.f32.mrb[0].mxu0
    %v3236 = vadd.f32 0.0, %v3235
    %v3237 = vpop.f32.mrb[0].mxu0
    %v3238 = vpop.f32.mrb[0].mxu0
    %v3239 = vadd.f32 0.0, %v3238
    %v3240 = vpop.f32.mrb[0].mxu0
    %3241 = vdwg.mxu0
    %v3242 = vpack.c.bf16 %v2998, %v2995
    %v3243 = vpack.c.bf16 %v3006, %v3003
    %v3244 = vpack.c.bf16 %v3014, %v3011
    %v3245 = vpack.c.bf16 %v3073, %v3070
    %v3246 = vpack.c.bf16 %v3081, %v3078
    %v3247 = vpack.c.bf16 %v3089, %v3086
    %v3248 = vpack.c.bf16 %v3148, %v3145
    %v3249 = vpack.c.bf16 %v3156, %v3153
    %v3250 = vpack.c.bf16 %v3164, %v3161
    %v3251 = vpack.c.bf16 %v3223, %v3220
    %v3252 = vpack.c.bf16 %v3231, %v3228
    %v3253 = vpack.c.bf16 %v3239, %v3236
    %s3254 = scalar_lea.vmem %s4, 16
    %v3255 = vld [vmem:[%s3254] sm:$0xf]
    %v3256 = vld [vmem:[%s3254 + $0x4] sm:$0xf]
    %v3257 = vld [vmem:[%s3254 + $0x8] sm:$0xf]
    %v3258 = vld [vmem:[%s3254 + $0xc] sm:$0xf]
    %v3260 = vsel %vm452, %v3242, 0
    %v3263 = vsel %vm452, %v3243, 0
    %v3266 = vsel %vm452, %v3244, 0
    %v3269 = vsel %vm1421, %v3255, 0
    %3271 = vmatprep.subr.bf16.mxu0 0
    %3272 = vmatpush1.bf16.msra.mxu0 %v3269
    %3273 = vmatprep.subr.bf16.mxu0 0
    %3274 = vmatpush1.bf16.msra.mxu0 0
    %3275 = vmatprep.subr.bf16.mxu0 0
    %3276 = vmatpush1.bf16.msra.mxu0 0
    %3277 = vmatprep.subr.bf16.mxu0 0
    %3278 = vmatpush1.bf16.msra.mxu0 0
    %3279 = vmatprep.subr.bf16.mxu0 0
    %3280 = vmatpush1.bf16.msra.mxu0 0
    %3281 = vmatprep.subr.bf16.mxu0 0
    %3282 = vmatpush1.bf16.msra.mxu0 0
    %3283 = vmatprep.subr.bf16.mxu0 0
    %3284 = vmatpush1.bf16.msra.mxu0 0
    %3285 = vmatprep.subr.bf16.mxu0 0
    %3286 = vmatpush1.bf16.msra.mxu0 0
    %3287 = vmatprep.subr.bf16.mxu0 0
    %3288 = vmatpush1.bf16.msra.mxu0 0
    %3289 = vmatprep.subr.bf16.mxu0 0
    %3290 = vmatpush1.bf16.msra.mxu0 0
    %3291 = vmatprep.subr.bf16.mxu0 0
    %3292 = vmatpush1.bf16.msra.mxu0 0
    %3293 = vmatprep.subr.bf16.mxu0 0
    %3294 = vmatpush1.bf16.msra.mxu0 0
    %3295 = vmatprep.subr.bf16.mxu0 0
    %3296 = vmatpush1.bf16.msra.mxu0 0
    %3297 = vmatprep.subr.bf16.mxu0 0
    %3298 = vmatpush1.bf16.msra.mxu0 0
    %3299 = vmatprep.subr.bf16.mxu0 0
    %3300 = vmatpush1.bf16.msra.mxu0 0
    %3301 = vmatprep.subr.bf16.mxu0 0
    %3302 = vmatpush1.bf16.msra.mxu0 0
    %3303 = vmatprep.mubr.bf16.mxu0 0
    %3304 = vmatmul.mubr.bf16.gmra.mrb[0].mxu0 %v3260
    %v3305 = vpop.f32.mrb[0].mxu0
    %v3306 = vadd.f32 0.0, %v3305
    %v3307 = vpop.f32.mrb[0].mxu0
    %v3308 = vpop.f32.mrb[0].mxu0
    %v3309 = vadd.f32 0.0, %v3308
    %v3310 = vpop.f32.mrb[0].mxu0
    %3311 = vmatprep.mubr.bf16.mxu0 0
    %3312 = vmatmul.mubr.bf16.gmra.mrb[0].mxu0 %v3263
    %v3313 = vpop.f32.mrb[0].mxu0
    %v3314 = vadd.f32 0.0, %v3313
    %v3315 = vpop.f32.mrb[0].mxu0
    %v3316 = vpop.f32.mrb[0].mxu0
    %v3317 = vadd.f32 0.0, %v3316
    %v3318 = vpop.f32.mrb[0].mxu0
    %3319 = vmatprep.mubr.bf16.mxu0 0
    %3320 = vmatmul.mubr.bf16.gmra.mrb[0].mxu0 %v3266
    %v3321 = vpop.f32.mrb[0].mxu0
    %v3322 = vadd.f32 0.0, %v3321
    %v3323 = vpop.f32.mrb[0].mxu0
    %v3324 = vpop.f32.mrb[0].mxu0
    %v3325 = vadd.f32 0.0, %v3324
    %v3326 = vpop.f32.mrb[0].mxu0
    %3327 = vdwg.mxu0
    %v3329 = vsel %vm452, %v3245, 0
    %v3332 = vsel %vm452, %v3246, 0
    %v3335 = vsel %vm452, %v3247, 0
    %v3338 = vsel %vm1421, %v3256, 0
    %3340 = vmatprep.subr.bf16.mxu0 0
    %3341 = vmatpush1.bf16.msra.mxu0 %v3338
    %3342 = vmatprep.subr.bf16.mxu0 0
    %3343 = vmatpush1.bf16.msra.mxu0 0
    %3344 = vmatprep.subr.bf16.mxu0 0
    %3345 = vmatpush1.bf16.msra.mxu0 0
    %3346 = vmatprep.subr.bf16.mxu0 0
    %3347 = vmatpush1.bf16.msra.mxu0 0
    %3348 = vmatprep.subr.bf16.mxu0 0
    %3349 = vmatpush1.bf16.msra.mxu0 0
    %3350 = vmatprep.subr.bf16.mxu0 0
    %3351 = vmatpush1.bf16.msra.mxu0 0
    %3352 = vmatprep.subr.bf16.mxu0 0
    %3353 = vmatpush1.bf16.msra.mxu0 0
    %3354 = vmatprep.subr.bf16.mxu0 0
    %3355 = vmatpush1.bf16.msra.mxu0 0
    %3356 = vmatprep.subr.bf16.mxu0 0
    %3357 = vmatpush1.bf16.msra.mxu0 0
    %3358 = vmatprep.subr.bf16.mxu0 0
    %3359 = vmatpush1.bf16.msra.mxu0 0
    %3360 = vmatprep.subr.bf16.mxu0 0
    %3361 = vmatpush1.bf16.msra.mxu0 0
    %3362 = vmatprep.subr.bf16.mxu0 0
    %3363 = vmatpush1.bf16.msra.mxu0 0
    %3364 = vmatprep.subr.bf16.mxu0 0
    %3365 = vmatpush1.bf16.msra.mxu0 0
    %3366 = vmatprep.subr.bf16.mxu0 0
    %3367 = vmatpush1.bf16.msra.mxu0 0
    %3368 = vmatprep.subr.bf16.mxu0 0
    %3369 = vmatpush1.bf16.msra.mxu0 0
    %3370 = vmatprep.subr.bf16.mxu0 0
    %3371 = vmatpush1.bf16.msra.mxu0 0
    %3372 = vmatprep.mubr.bf16.mxu0 0
    %3373 = vmatmul.mubr.bf16.gmra.mrb[0].mxu0 %v3329
    %v3374 = vpop.f32.mrb[0].mxu0
    %v3375 = vadd.f32 0.0, %v3374
    %v3376 = vpop.f32.mrb[0].mxu0
    %v3377 = vpop.f32.mrb[0].mxu0
    %v3378 = vadd.f32 0.0, %v3377
    %v3379 = vpop.f32.mrb[0].mxu0
    %3380 = vmatprep.mubr.bf16.mxu0 0
    %3381 = vmatmul.mubr.bf16.gmra.mrb[0].mxu0 %v3332
    %v3382 = vpop.f32.mrb[0].mxu0
    %v3383 = vadd.f32 0.0, %v3382
    %v3384 = vpop.f32.mrb[0].mxu0
    %v3385 = vpop.f32.mrb[0].mxu0
    %v3386 = vadd.f32 0.0, %v3385
    %v3387 = vpop.f32.mrb[0].mxu0
    %3388 = vmatprep.mubr.bf16.mxu0 0
    %3389 = vmatmul.mubr.bf16.gmra.mrb[0].mxu0 %v3335
    %v3390 = vpop.f32.mrb[0].mxu0
    %v3391 = vadd.f32 0.0, %v3390
    %v3392 = vpop.f32.mrb[0].mxu0
    %v3393 = vpop.f32.mrb[0].mxu0
    %v3394 = vadd.f32 0.0, %v3393
    %v3395 = vpop.f32.mrb[0].mxu0
    %3396 = vdwg.mxu0
    %v3398 = vsel %vm452, %v3248, 0
    %v3401 = vsel %vm452, %v3249, 0
    %v3404 = vsel %vm452, %v3250, 0
    %v3407 = vsel %vm1421, %v3257, 0
    %3409 = vmatprep.subr.bf16.mxu0 0
    %3410 = vmatpush1.bf16.msra.mxu0 %v3407
    %3411 = vmatprep.subr.bf16.mxu0 0
    %3412 = vmatpush1.bf16.msra.mxu0 0
    %3413 = vmatprep.subr.bf16.mxu0 0
    %3414 = vmatpush1.bf16.msra.mxu0 0
    %3415 = vmatprep.subr.bf16.mxu0 0
    %3416 = vmatpush1.bf16.msra.mxu0 0
    %3417 = vmatprep.subr.bf16.mxu0 0
    %3418 = vmatpush1.bf16.msra.mxu0 0
    %3419 = vmatprep.subr.bf16.mxu0 0
    %3420 = vmatpush1.bf16.msra.mxu0 0
    %3421 = vmatprep.subr.bf16.mxu0 0
    %3422 = vmatpush1.bf16.msra.mxu0 0
    %3423 = vmatprep.subr.bf16.mxu0 0
    %3424 = vmatpush1.bf16.msra.mxu0 0
    %3425 = vmatprep.subr.bf16.mxu0 0
    %3426 = vmatpush1.bf16.msra.mxu0 0
    %3427 = vmatprep.subr.bf16.mxu0 0
    %3428 = vmatpush1.bf16.msra.mxu0 0
    %3429 = vmatprep.subr.bf16.mxu0 0
    %3430 = vmatpush1.bf16.msra.mxu0 0
    %3431 = vmatprep.subr.bf16.mxu0 0
    %3432 = vmatpush1.bf16.msra.mxu0 0
    %3433 = vmatprep.subr.bf16.mxu0 0
    %3434 = vmatpush1.bf16.msra.mxu0 0
    %3435 = vmatprep.subr.bf16.mxu0 0
    %3436 = vmatpush1.bf16.msra.mxu0 0
    %3437 = vmatprep.subr.bf16.mxu0 0
    %3438 = vmatpush1.bf16.msra.mxu0 0
    %3439 = vmatprep.subr.bf16.mxu0 0
    %3440 = vmatpush1.bf16.msra.mxu0 0
    %3441 = vmatprep.mubr.bf16.mxu0 0
    %3442 = vmatmul.mubr.bf16.gmra.mrb[0].mxu0 %v3398
    %v3443 = vpop.f32.mrb[0].mxu0
    %v3444 = vadd.f32 0.0, %v3443
    %v3445 = vpop.f32.mrb[0].mxu0
    %v3446 = vpop.f32.mrb[0].mxu0
    %v3447 = vadd.f32 0.0, %v3446
    %v3448 = vpop.f32.mrb[0].mxu0
    %3449 = vmatprep.mubr.bf16.mxu0 0
    %3450 = vmatmul.mubr.bf16.gmra.mrb[0].mxu0 %v3401
    %v3451 = vpop.f32.mrb[0].mxu0
    %v3452 = vadd.f32 0.0, %v3451
    %v3453 = vpop.f32.mrb[0].mxu0
    %v3454 = vpop.f32.mrb[0].mxu0
    %v3455 = vadd.f32 0.0, %v3454
    %v3456 = vpop.f32.mrb[0].mxu0
    %3457 = vmatprep.mubr.bf16.mxu0 0
    %3458 = vmatmul.mubr.bf16.gmra.mrb[0].mxu0 %v3404
    %v3459 = vpop.f32.mrb[0].mxu0
    %v3460 = vadd.f32 0.0, %v3459
    %v3461 = vpop.f32.mrb[0].mxu0
    %v3462 = vpop.f32.mrb[0].mxu0
    %v3463 = vadd.f32 0.0, %v3462
    %v3464 = vpop.f32.mrb[0].mxu0
    %3465 = vdwg.mxu0
    %v3467 = vsel %vm452, %v3251, 0
    %v3470 = vsel %vm452, %v3252, 0
    %v3473 = vsel %vm452, %v3253, 0
    %v3476 = vsel %vm1421, %v3258, 0
    %3478 = vmatprep.subr.bf16.mxu0 0
    %3479 = vmatpush1.bf16.msra.mxu0 %v3476
    %3480 = vmatprep.subr.bf16.mxu0 0
    %3481 = vmatpush1.bf16.msra.mxu0 0
    %3482 = vmatprep.subr.bf16.mxu0 0
    %3483 = vmatpush1.bf16.msra.mxu0 0
    %3484 = vmatprep.subr.bf16.mxu0 0
    %3485 = vmatpush1.bf16.msra.mxu0 0
    %3486 = vmatprep.subr.bf16.mxu0 0
    %3487 = vmatpush1.bf16.msra.mxu0 0
    %3488 = vmatprep.subr.bf16.mxu0 0
    %3489 = vmatpush1.bf16.msra.mxu0 0
    %3490 = vmatprep.subr.bf16.mxu0 0
    %3491 = vmatpush1.bf16.msra.mxu0 0
    %3492 = vmatprep.subr.bf16.mxu0 0
    %3493 = vmatpush1.bf16.msra.mxu0 0
    %3494 = vmatprep.subr.bf16.mxu0 0
    %3495 = vmatpush1.bf16.msra.mxu0 0
    %3496 = vmatprep.subr.bf16.mxu0 0
    %3497 = vmatpush1.bf16.msra.mxu0 0
    %3498 = vmatprep.subr.bf16.mxu0 0
    %3499 = vmatpush1.bf16.msra.mxu0 0
    %3500 = vmatprep.subr.bf16.mxu0 0
    %3501 = vmatpush1.bf16.msra.mxu0 0
    %3502 = vmatprep.subr.bf16.mxu0 0
    %3503 = vmatpush1.bf16.msra.mxu0 0
    %3504 = vmatprep.subr.bf16.mxu0 0
    %3505 = vmatpush1.bf16.msra.mxu0 0
    %3506 = vmatprep.subr.bf16.mxu0 0
    %3507 = vmatpush1.bf16.msra.mxu0 0
    %3508 = vmatprep.subr.bf16.mxu0 0
    %3509 = vmatpush1.bf16.msra.mxu0 0
    %3510 = vmatprep.mubr.bf16.mxu0 0
    %3511 = vmatmul.mubr.bf16.gmra.mrb[0].mxu0 %v3467
    %v3512 = vpop.f32.mrb[0].mxu0
    %v3513 = vadd.f32 0.0, %v3512
    %v3514 = vpop.f32.mrb[0].mxu0
    %v3515 = vpop.f32.mrb[0].mxu0
    %v3516 = vadd.f32 0.0, %v3515
    %v3517 = vpop.f32.mrb[0].mxu0
    %3518 = vmatprep.mubr.bf16.mxu0 0
    %3519 = vmatmul.mubr.bf16.gmra.mrb[0].mxu0 %v3470
    %v3520 = vpop.f32.mrb[0].mxu0
    %v3521 = vadd.f32 0.0, %v3520
    %v3522 = vpop.f32.mrb[0].mxu0
    %v3523 = vpop.f32.mrb[0].mxu0
    %v3524 = vadd.f32 0.0, %v3523
    %v3525 = vpop.f32.mrb[0].mxu0
    %3526 = vmatprep.mubr.bf16.mxu0 0
    %3527 = vmatmul.mubr.bf16.gmra.mrb[0].mxu0 %v3473
    %v3528 = vpop.f32.mrb[0].mxu0
    %v3529 = vadd.f32 0.0, %v3528
    %v3530 = vpop.f32.mrb[0].mxu0
    %v3531 = vpop.f32.mrb[0].mxu0
    %v3532 = vadd.f32 0.0, %v3531
    %v3533 = vpop.f32.mrb[0].mxu0
    %3534 = vdwg.mxu0
    %v3535 = vadd.f32 %v3306, %v3375
    %v3536 = vadd.f32 %v3309, %v3378
    %v3537 = vadd.f32 %v3314, %v3383
    %v3538 = vadd.f32 %v3317, %v3386
    %v3539 = vadd.f32 %v3322, %v3391
    %v3540 = vadd.f32 %v3325, %v3394
    %v3541 = vadd.f32 %v3535, %v3444
    %v3542 = vadd.f32 %v3536, %v3447
    %v3543 = vadd.f32 %v3537, %v3452
    %v3544 = vadd.f32 %v3538, %v3455
    %v3545 = vadd.f32 %v3539, %v3460
    %v3546 = vadd.f32 %v3540, %v3463
    %v3547 = vadd.f32 %v3541, %v3513
    %v3548 = vadd.f32 %v3542, %v3516
    %v3549 = vadd.f32 %v3543, %v3521
    %v3550 = vadd.f32 %v3544, %v3524
    %v3551 = vadd.f32 %v3545, %v3529
    %v3552 = vadd.f32 %v3546, %v3532
    %v3553 = vadd.f32 %v2074, %v3547
    %v3554 = vadd.f32 %v2075, %v3548
    %v3555 = vadd.f32 %v2076, %v3549
    %v3556 = vadd.f32 %v2077, %v3550
    %v3557 = vadd.f32 %v2078, %v3551
    %v3558 = vadd.f32 %v2079, %v3552
    %v3559 = vlaneseq
    %v3560 = vshrl.u32 %v3559, 7
    %v3561 = vsub.s32 3, %v3560
    %v3562 = vrot.slane %v2081, %v3561
    %v3563 = vadd.f32 %v3553, %v3562
    %v3564 = vadd.f32 %v3554, %v3562
    %v3565 = vadd.f32 %v3555, %v3562
    %v3566 = vadd.f32 %v3556, %v3562
    %v3567 = vadd.f32 %v3557, %v3562
    %v3568 = vadd.f32 %v3558, %v3562
    %v3569 = vsel %vm233, %v3563, 0.0
    %3570 = vadd.xlane.f32.xlu0 %v3569
    %v3571 = vpop.xlane.xlu0 %3570
    %v3572 = vsel %vm233, %v3564, 0.0
    %3573 = vadd.xlane.f32.xlu0 %v3572
    %v3574 = vpop.xlane.xlu0 %3573
    %v3575 = vsel %vm233, %v3565, 0.0
    %3576 = vadd.xlane.f32.xlu0 %v3575
    %v3577 = vpop.xlane.xlu0 %3576
    %v3578 = vsel %vm233, %v3566, 0.0
    %3579 = vadd.xlane.f32.xlu0 %v3578
    %v3580 = vpop.xlane.xlu0 %3579
    %v3581 = vsel %vm233, %v3567, 0.0
    %3582 = vadd.xlane.f32.xlu0 %v3581
    %v3583 = vpop.xlane.xlu0 %3582
    %v3584 = vsel %vm233, %v3568, 0.0
    %3585 = vadd.xlane.f32.xlu0 %v3584
    %v3586 = vpop.xlane.xlu0 %3585
    %v3587 = vmul.f32 %v3571, %v252
    %v3588 = vmul.f32 %v3574, %v252
    %v3589 = vmul.f32 %v3577, %v252
    %v3590 = vmul.f32 %v3580, %v252
    %v3591 = vmul.f32 %v3583, %v252
    %v3592 = vmul.f32 %v3586, %v252
    %v3593 = vsub.f32 %v3563, %v3587
    %v3594 = vsub.f32 %v3564, %v3588
    %v3595 = vsub.f32 %v3565, %v3589
    %v3596 = vsub.f32 %v3566, %v3590
    %v3597 = vsub.f32 %v3567, %v3591
    %v3598 = vsub.f32 %v3568, %v3592
    %v3599 = vmul.f32 %v3593, %v3593
    %v3600 = vmul.f32 %v3594, %v3594
    %v3601 = vmul.f32 %v3595, %v3595
    %v3602 = vmul.f32 %v3596, %v3596
    %v3603 = vmul.f32 %v3597, %v3597
    %v3604 = vmul.f32 %v3598, %v3598
    %v3605 = vsel %vm233, %v3599, 0.0
    %3606 = vadd.xlane.f32.xlu0 %v3605
    %v3607 = vpop.xlane.xlu0 %3606
    %v3608 = vsel %vm233, %v3600, 0.0
    %3609 = vadd.xlane.f32.xlu0 %v3608
    %v3610 = vpop.xlane.xlu0 %3609
    %v3611 = vsel %vm233, %v3601, 0.0
    %3612 = vadd.xlane.f32.xlu0 %v3611
    %v3613 = vpop.xlane.xlu0 %3612
    %v3614 = vsel %vm233, %v3602, 0.0
    %3615 = vadd.xlane.f32.xlu0 %v3614
    %v3616 = vpop.xlane.xlu0 %3615
    %v3617 = vsel %vm233, %v3603, 0.0
    %3618 = vadd.xlane.f32.xlu0 %v3617
    %v3619 = vpop.xlane.xlu0 %3618
    %v3620 = vsel %vm233, %v3604, 0.0
    %3621 = vadd.xlane.f32.xlu0 %v3620
    %v3622 = vpop.xlane.xlu0 %3621
    %v3623 = vmul.f32 %v3607, %v252
    %v3624 = vmul.f32 %v3610, %v252
    %v3625 = vmul.f32 %v3613, %v252
    %v3626 = vmul.f32 %v3616, %v252
    %v3627 = vmul.f32 %v3619, %v252
    %v3628 = vmul.f32 %v3622, %v252
    %v3629 = vadd.f32 %v3623, 1e-06
    %v3630 = vadd.f32 %v3624, 1e-06
    %v3631 = vadd.f32 %v3625, 1e-06
    %v3632 = vadd.f32 %v3626, 1e-06
    %v3633 = vadd.f32 %v3627, 1e-06
    %v3634 = vadd.f32 %v3628, 1e-06
    %v3635 = vrsqrt.pop %v3629
    %v3636 = vrsqrt.pop %v3630
    %v3637 = vrsqrt.pop %v3631
    %v3638 = vrsqrt.pop %v3632
    %v3639 = vrsqrt.pop %v3633
    %v3640 = vrsqrt.pop %v3634
    %v3641 = vmul.f32 %v3593, %v3635
    %v3642 = vmul.f32 %v3594, %v3636
    %v3643 = vmul.f32 %v3595, %v3637
    %v3644 = vmul.f32 %v3596, %v3638
    %v3645 = vmul.f32 %v3597, %v3639
    %v3646 = vmul.f32 %v3598, %v3640
    %v3647 = vlaneseq
    %v3648 = vshrl.u32 %v3647, 7
    %v3649 = vsub.s32 4, %v3648
    %v3650 = vrot.slane %v2081, %v3649
    %v3651 = vmul.f32 %v3641, %v3650
    %v3652 = vmul.f32 %v3642, %v3650
    %v3653 = vmul.f32 %v3643, %v3650
    %v3654 = vmul.f32 %v3644, %v3650
    %v3655 = vmul.f32 %v3645, %v3650
    %v3656 = vmul.f32 %v3646, %v3650
    %v3657 = vlaneseq
    %v3658 = vshrl.u32 %v3657, 7
    %v3659 = vsub.s32 5, %v3658
    %v3660 = vrot.slane %v2081, %v3659
    %v3661 = vadd.f32 %v3651, %v3660
    %v3662 = vadd.f32 %v3652, %v3660
    %v3663 = vadd.f32 %v3653, %v3660
    %v3664 = vadd.f32 %v3654, %v3660
    %v3665 = vadd.f32 %v3655, %v3660
    %v3666 = vadd.f32 %v3656, %v3660
    %v3667 = vpack.c.bf16 %v3662, %v3661
    %v3668 = vpack.c.bf16 %v3664, %v3663
    %v3669 = vpack.c.bf16 %v3666, %v3665
    %s3670 = scalar_lea.vmem %s5, 16
    %v3671 = vld [vmem:[%s3670] sm:$0xf]
    %v3672 = vld [vmem:[%s3670 + $0x4] sm:$0xf]
    %v3673 = vld [vmem:[%s3670 + $0x8] sm:$0xf]
    %v3674 = vld [vmem:[%s3670 + $0xc] sm:$0xf]
    %v3675 = vlaneseq
    %v3676 = vshrl.u32 %v3675, 7
    %v3677 = vsub.s32 6, %v3676
    %v3678 = vrot.slane %v2081, %v3677
    %v3683 = vunpack.c.l.b16 %v3671
    %v3684 = vunpack.c.l.b16 %v3672
    %v3685 = vunpack.c.l.b16 %v3673
    %v3686 = vunpack.c.l.b16 %v3674
    %v3687 = vpack.c.b16 %v3684, %v3683
    %v3688 = vpack.c.b16 %v3686, %v3685
    %v3692 = vsel %vm233, %v3667, 0
    %v3695 = vsel %vm233, %v3668, 0
    %v3698 = vsel %vm233, %v3669, 0
    %3700 = vmatprep.subr.bf16.mxu0 0
    %3701 = vmatpush1.bf16.msra.mxu0 %v3687
    %3702 = vmatprep.subr.bf16.mxu0 0
    %3703 = vmatpush1.bf16.msra.mxu0 %v3688
    %3704 = vmatprep.subr.bf16.mxu0 0
    %3705 = vmatpush1.bf16.msra.mxu0 0
    %3706 = vmatprep.subr.bf16.mxu0 0
    %3707 = vmatpush1.bf16.msra.mxu0 0
    %3708 = vmatprep.subr.bf16.mxu0 0
    %3709 = vmatpush1.bf16.msra.mxu0 0
    %3710 = vmatprep.subr.bf16.mxu0 0
    %3711 = vmatpush1.bf16.msra.mxu0 0
    %3712 = vmatprep.subr.bf16.mxu0 0
    %3713 = vmatpush1.bf16.msra.mxu0 0
    %3714 = vmatprep.subr.bf16.mxu0 0
    %3715 = vmatpush1.bf16.msra.mxu0 0
    %3716 = vmatprep.subr.bf16.mxu0 0
    %3717 = vmatpush1.bf16.msra.mxu0 0
    %3718 = vmatprep.subr.bf16.mxu0 0
    %3719 = vmatpush1.bf16.msra.mxu0 0
    %3720 = vmatprep.subr.bf16.mxu0 0
    %3721 = vmatpush1.bf16.msra.mxu0 0
    %3722 = vmatprep.subr.bf16.mxu0 0
    %3723 = vmatpush1.bf16.msra.mxu0 0
    %3724 = vmatprep.subr.bf16.mxu0 0
    %3725 = vmatpush1.bf16.msra.mxu0 0
    %3726 = vmatprep.subr.bf16.mxu0 0
    %3727 = vmatpush1.bf16.msra.mxu0 0
    %3728 = vmatprep.subr.bf16.mxu0 0
    %3729 = vmatpush1.bf16.msra.mxu0 0
    %3730 = vmatprep.subr.bf16.mxu0 0
    %3731 = vmatpush1.bf16.msra.mxu0 0
    %3732 = vmatprep.mubr.bf16.mxu0 0
    %3733 = vmatmul.mubr.bf16.gmra.mrb[0].mxu0 %v3692
    %v3734 = vpop.f32.mrb[0].mxu0
    %v3735 = vadd.f32 %v3678, %v3734
    %v3736 = vpop.f32.mrb[0].mxu0
    %v3737 = vpop.f32.mrb[0].mxu0
    %v3738 = vadd.f32 %v3678, %v3737
    %v3739 = vpop.f32.mrb[0].mxu0
    %3740 = vmatprep.mubr.bf16.mxu0 0
    %3741 = vmatmul.mubr.bf16.gmra.mrb[0].mxu0 %v3695
    %v3742 = vpop.f32.mrb[0].mxu0
    %v3743 = vadd.f32 %v3678, %v3742
    %v3744 = vpop.f32.mrb[0].mxu0
    %v3745 = vpop.f32.mrb[0].mxu0
    %v3746 = vadd.f32 %v3678, %v3745
    %v3747 = vpop.f32.mrb[0].mxu0
    %3748 = vmatprep.mubr.bf16.mxu0 0
    %3749 = vmatmul.mubr.bf16.gmra.mrb[0].mxu0 %v3698
    %v3750 = vpop.f32.mrb[0].mxu0
    %v3751 = vadd.f32 %v3678, %v3750
    %v3752 = vpop.f32.mrb[0].mxu0
    %v3753 = vpop.f32.mrb[0].mxu0
    %v3754 = vadd.f32 %v3678, %v3753
    %v3755 = vpop.f32.mrb[0].mxu0
    %3756 = vdwg.mxu0
    %v3757 = vmul.f32 %v3735, 0.5
    %v3758 = vmul.f32 %v3738, 0.5
    %v3759 = vmul.f32 %v3743, 0.5
    %v3760 = vmul.f32 %v3746, 0.5
    %v3761 = vmul.f32 %v3751, 0.5
    %v3762 = vmul.f32 %v3754, 0.5
    %v3763 = vmul.f32 %v3735, 0.70710677
    %v3764 = vmul.f32 %v3738, 0.70710677
    %v3765 = vmul.f32 %v3743, 0.70710677
    %v3766 = vmul.f32 %v3746, 0.70710677
    %v3767 = vmul.f32 %v3751, 0.70710677
    %v3768 = vmul.f32 %v3754, 0.70710677
    %v3769 = verf.f32.pop %v3763
    %v3770 = verf.f32.pop %v3764
    %v3771 = verf.f32.pop %v3765
    %v3772 = verf.f32.pop %v3766
    %v3773 = verf.f32.pop %v3767
    %v3774 = verf.f32.pop %v3768
    %v3775 = vadd.f32 %v3769, 1.0
    %v3776 = vadd.f32 %v3770, 1.0
    %v3777 = vadd.f32 %v3771, 1.0
    %v3778 = vadd.f32 %v3772, 1.0
    %v3779 = vadd.f32 %v3773, 1.0
    %v3780 = vadd.f32 %v3774, 1.0
    %v3781 = vmul.f32 %v3757, %v3775
    %v3782 = vmul.f32 %v3758, %v3776
    %v3783 = vmul.f32 %v3759, %v3777
    %v3784 = vmul.f32 %v3760, %v3778
    %v3785 = vmul.f32 %v3761, %v3779
    %v3786 = vmul.f32 %v3762, %v3780
    %v3787 = vpack.c.bf16 %v3782, %v3781
    %v3788 = vpack.c.bf16 %v3784, %v3783
    %v3789 = vpack.c.bf16 %v3786, %v3785
    %s3790 = scalar_lea.vmem %s6, 64
    %v3791 = vld [vmem:[%s3790] sm:$0xf]
    %v3792 = vld [vmem:[%s3790 + $0x4] sm:$0xf]
    %v3793 = vld [vmem:[%s3790 + $0x8] sm:$0xf]
    %v3794 = vld [vmem:[%s3790 + $0xc] sm:$0xf]
    %v3795 = vld [vmem:[%s3790 + $0x10] sm:$0xf]
    %v3796 = vld [vmem:[%s3790 + $0x14] sm:$0xf]
    %v3797 = vld [vmem:[%s3790 + $0x18] sm:$0xf]
    %v3798 = vld [vmem:[%s3790 + $0x1c] sm:$0xf]
    %v3799 = vld [vmem:[%s3790 + $0x20] sm:$0xf]
    %v3800 = vld [vmem:[%s3790 + $0x24] sm:$0xf]
    %v3801 = vld [vmem:[%s3790 + $0x28] sm:$0xf]
    %v3802 = vld [vmem:[%s3790 + $0x2c] sm:$0xf]
    %v3803 = vld [vmem:[%s3790 + $0x30] sm:$0xf]
    %v3804 = vld [vmem:[%s3790 + $0x34] sm:$0xf]
    %v3805 = vld [vmem:[%s3790 + $0x38] sm:$0xf]
    %v3806 = vld [vmem:[%s3790 + $0x3c] sm:$0xf]
    %v3823 = vunpack.c.l.b16 %v3791
    %v3824 = vunpack.c.l.b16 %v3792
    %v3825 = vunpack.c.l.b16 %v3793
    %v3826 = vunpack.c.l.b16 %v3794
    %v3827 = vunpack.c.l.b16 %v3795
    %v3828 = vunpack.c.l.b16 %v3796
    %v3829 = vunpack.c.l.b16 %v3797
    %v3830 = vunpack.c.l.b16 %v3798
    %v3831 = vunpack.c.l.b16 %v3799
    %v3832 = vunpack.c.l.b16 %v3800
    %v3833 = vunpack.c.l.b16 %v3801
    %v3834 = vunpack.c.l.b16 %v3802
    %v3835 = vunpack.c.l.b16 %v3803
    %v3836 = vunpack.c.l.b16 %v3804
    %v3837 = vunpack.c.l.b16 %v3805
    %v3838 = vunpack.c.l.b16 %v3806
    %v3839 = vpack.c.b16 %v3824, %v3823
    %v3840 = vpack.c.b16 %v3826, %v3825
    %v3841 = vpack.c.b16 %v3828, %v3827
    %v3842 = vpack.c.b16 %v3830, %v3829
    %v3843 = vpack.c.b16 %v3832, %v3831
    %v3844 = vpack.c.b16 %v3834, %v3833
    %v3845 = vpack.c.b16 %v3836, %v3835
    %v3846 = vpack.c.b16 %v3838, %v3837
    %3855 = vmatprep.subr.bf16.mxu0 0
    %3856 = vmatpush1.bf16.msra.mxu0 %v3839
    %3857 = vmatprep.subr.bf16.mxu0 0
    %3858 = vmatpush1.bf16.msra.mxu0 %v3840
    %3859 = vmatprep.subr.bf16.mxu0 0
    %3860 = vmatpush1.bf16.msra.mxu0 %v3841
    %3861 = vmatprep.subr.bf16.mxu0 0
    %3862 = vmatpush1.bf16.msra.mxu0 %v3842
    %3863 = vmatprep.subr.bf16.mxu0 0
    %3864 = vmatpush1.bf16.msra.mxu0 %v3843
    %3865 = vmatprep.subr.bf16.mxu0 0
    %3866 = vmatpush1.bf16.msra.mxu0 %v3844
    %3867 = vmatprep.subr.bf16.mxu0 0
    %3868 = vmatpush1.bf16.msra.mxu0 %v3845
    %3869 = vmatprep.subr.bf16.mxu0 0
    %3870 = vmatpush1.bf16.msra.mxu0 %v3846
    %3871 = vmatprep.subr.bf16.mxu0 0
    %3872 = vmatpush1.bf16.msra.mxu0 0
    %3873 = vmatprep.subr.bf16.mxu0 0
    %3874 = vmatpush1.bf16.msra.mxu0 0
    %3875 = vmatprep.subr.bf16.mxu0 0
    %3876 = vmatpush1.bf16.msra.mxu0 0
    %3877 = vmatprep.subr.bf16.mxu0 0
    %3878 = vmatpush1.bf16.msra.mxu0 0
    %3879 = vmatprep.subr.bf16.mxu0 0
    %3880 = vmatpush1.bf16.msra.mxu0 0
    %3881 = vmatprep.subr.bf16.mxu0 0
    %3882 = vmatpush1.bf16.msra.mxu0 0
    %3883 = vmatprep.subr.bf16.mxu0 0
    %3884 = vmatpush1.bf16.msra.mxu0 0
    %3885 = vmatprep.subr.bf16.mxu0 0
    %3886 = vmatpush1.bf16.msra.mxu0 0
    %3887 = vmatprep.mubr.bf16.mxu0 0
    %3888 = vmatmul.mubr.bf16.gmra.mrb[0].mxu0 %v3787
    %v3889 = vpop.f32.mrb[0].mxu0
    %v3890 = vadd.f32 0.0, %v3889
    %v3891 = vpop.f32.mrb[0].mxu0
    %v3892 = vpop.f32.mrb[0].mxu0
    %v3893 = vpop.f32.mrb[0].mxu0
    %3894 = vmatprep.mubr.bf16.mxu0 0
    %3895 = vmatmul.mubr.bf16.gmra.mrb[0].mxu0 %v3788
    %v3896 = vpop.f32.mrb[0].mxu0
    %v3897 = vpop.f32.mrb[0].mxu0
    %v3898 = vpop.f32.mrb[0].mxu0
    %v3899 = vadd.f32 0.0, %v3898
    %v3900 = vpop.f32.mrb[0].mxu0
    %3901 = vmatprep.mubr.bf16.mxu0 0
    %3902 = vmatmul.mubr.bf16.gmra.mrb[0].mxu0 %v3789
    %v3903 = vpop.f32.mrb[0].mxu0
    %v3904 = vpop.f32.mrb[0].mxu0
    %v3905 = vpop.f32.mrb[0].mxu0
    %v3906 = vpop.f32.mrb[0].mxu0
    %3907 = vdwg.mxu0
    %v3908 = vadd.f32 %v3563, %v3890
    %v3909 = vadd.f32 %v3566, %v3899
    %v3910 = vlaneseq
    %v3911 = vshrl.u32 %v3910, 7
    %v3912 = vsub.s32 7, %v3911
    %v3913 = vrot.slane %v2081, %v3912
    %v3914 = vadd.f32 %v3908, %v3913
    %v3915 = vadd.f32 %v3909, %v3913
    %v3917 = vrot.slane %v3915, 7
    %vm3919 = vcmask 1040384
    %v3920 = vsel %vm3919, %v3914, %v3917
    %s3921 = scalar_lea.vmem %s8, 16
    %v3922 = vld [vmem:[%s3921] sm:$0xff]
    %vm3923 = vcmask 254976
    %v3924 = vsel %vm3923, %v3920, 0.0
    %3925 = vadd.xlane.f32.xlu0 %v3924
    %v3926 = vpop.xlane.xlu0 %3925
    %v3927 = vmul.f32 %v3926, %v252
    %v3928 = vsub.f32 %v3920, %v3927
    %v3929 = vmul.f32 %v3928, %v3928
    %v3930 = vsel %vm3923, %v3929, 0.0
    %3931 = vadd.xlane.f32.xlu0 %v3930
    %v3932 = vpop.xlane.xlu0 %3931
    %v3933 = vmul.f32 %v3932, %v252
    %v3934 = vadd.f32 %v3933, 1e-06
    %v3935 = vrsqrt.pop %v3934
    %v3936 = vmul.f32 %v3928, %v3935
    %v3937 = vlaneseq
    %v3938 = vshrl.u32 %v3937, 7
    %v3939 = vsub.s32 0, %v3938
    %v3940 = vrot.slane %v3922, %v3939
    %v3941 = vmul.f32 %v3936, %v3940
    %v3942 = vlaneseq
    %v3943 = vshrl.u32 %v3942, 7
    %v3944 = vsub.s32 1, %v3943
    %v3945 = vrot.slane %v3922, %v3944
    %v3946 = vadd.f32 %v3941, %v3945
    %v3947 = vpack.c.bf16 %v3946, %v3946
    %v3948 = vld [vmem:[%s7] sm:$0xf]
    %v3949 = vld [vmem:[%s7 + $0x4] sm:$0xf]
    %v3950 = vld [vmem:[%s7 + $0x8] sm:$0xf]
    %v3951 = vld [vmem:[%s7 + $0xc] sm:$0xf]
    %v3952 = vlaneseq
    %v3953 = vshrl.u32 %v3952, 7
    %v3954 = vsub.s32 2, %v3953
    %v3955 = vrot.slane %v3922, %v3954
    %v3960 = vunpack.c.l.b16 %v3948
    %v3961 = vunpack.c.l.b16 %v3949
    %v3962 = vunpack.c.l.b16 %v3950
    %v3963 = vunpack.c.l.b16 %v3951
    %v3964 = vpack.c.b16 %v3961, %v3960
    %v3965 = vpack.c.b16 %v3963, %v3962
    %v3969 = vsel %vm233, %v3947, 0
    %3971 = vmatprep.subr.bf16.mxu0 0
    %3972 = vmatpush1.bf16.msra.mxu0 %v3964
    %3973 = vmatprep.subr.bf16.mxu0 0
    %3974 = vmatpush1.bf16.msra.mxu0 %v3965
    %3975 = vmatprep.subr.bf16.mxu0 0
    %3976 = vmatpush1.bf16.msra.mxu0 0
    %3977 = vmatprep.subr.bf16.mxu0 0
    %3978 = vmatpush1.bf16.msra.mxu0 0
    %3979 = vmatprep.subr.bf16.mxu0 0
    %3980 = vmatpush1.bf16.msra.mxu0 0
    %3981 = vmatprep.subr.bf16.mxu0 0
    %3982 = vmatpush1.bf16.msra.mxu0 0
    %3983 = vmatprep.subr.bf16.mxu0 0
    %3984 = vmatpush1.bf16.msra.mxu0 0
    %3985 = vmatprep.subr.bf16.mxu0 0
    %3986 = vmatpush1.bf16.msra.mxu0 0
    %3987 = vmatprep.subr.bf16.mxu0 0
    %3988 = vmatpush1.bf16.msra.mxu0 0
    %3989 = vmatprep.subr.bf16.mxu0 0
    %3990 = vmatpush1.bf16.msra.mxu0 0
    %3991 = vmatprep.subr.bf16.mxu0 0
    %3992 = vmatpush1.bf16.msra.mxu0 0
    %3993 = vmatprep.subr.bf16.mxu0 0
    %3994 = vmatpush1.bf16.msra.mxu0 0
    %3995 = vmatprep.subr.bf16.mxu0 0
    %3996 = vmatpush1.bf16.msra.mxu0 0
    %3997 = vmatprep.subr.bf16.mxu0 0
    %3998 = vmatpush1.bf16.msra.mxu0 0
    %3999 = vmatprep.subr.bf16.mxu0 0
    %4000 = vmatpush1.bf16.msra.mxu0 0
    %4001 = vmatprep.subr.bf16.mxu0 0
    %4002 = vmatpush1.bf16.msra.mxu0 0
    %4003 = vmatprep.mubr.bf16.mxu0 0
    %4004 = vmatmul.mubr.bf16.gmra.mrb[0].mxu0 %v3969
    %v4005 = vpop.f32.mrb[0].mxu0
    %v4006 = vadd.f32 %v3955, %v4005
    %v4007 = vpop.f32.mrb[0].mxu0
    %v4008 = vpop.f32.mrb[0].mxu0
    %v4009 = vpop.f32.mrb[0].mxu0
    %4010 = vdwg.mxu0
    %4011 = vst [vmem:[#allocation2] sm:$0x3] %v4006
    // Predicated region
    $region38: #{vit_forward.1} parent=1 // pred_check
      _
    $region39: #{vit_forward.1} parent=1 // pred_check_branch
      %4013 = sbr.rel (0) target = $region41
    $region40: #{vit_forward.1} parent=1 // pred_region
      %s4015 = ssub.s32 32, 32
      %4016 = vsyncadd [#allocation3], %s4015
      %s4018 = sshll.u32 [#allocation2], 4
      %s4019 = int_to_ptr.vmem [resolvable:$true] %s4018
      %4021 = dma.vmem_to_hbm [thread:$0]  %s4019, 32, %s9, [#allocation3]
    $region41: #{vit_forward.1} parent=1 // pred_fallthru
      _
    // Predicated region
    $region42: #{vit_forward.1} parent=1 // pred_check
      _
    $region43: #{vit_forward.1} parent=1 // pred_check_branch
      %4023 = sbr.rel (0) target = $region45
    $region44: #{vit_forward.1} parent=1 // pred_region
      %4024 = dma.done [#allocation3], 32
    $region45: #{vit_forward.1} parent=1 // pred_fallthru
      _
    %4025 = vsyncpa [#allocation3], 1

</llo_original>
